<compile_context>
chip_gen: v6e
topology: v6e:2x2x1
jax: 0.10.0
libtpu: 0.0.40
codegen_flags: <defaults>
</compile_context>

<pallas_src>
import math

import jax
import jax.numpy as jnp
from jax.experimental import pallas as pl
from jax.experimental.pallas import tpu as pltpu

# ----------------------------------------------------------------------------
# Model configuration (small but structurally faithful to the module)
# ----------------------------------------------------------------------------
ATTR_SPLIT = [9, 10, 5, 2, 9, 3, 2]           # attribute_number_subnetwork
NUM_ATTRS = sum(ATTR_SPLIT)                   # 40
NUM_SUB = 7                                   # self.subnetwork
INPUT_DIM = 2 * 8 * 8                         # flattened NCHW input (=128)
H1 = 128                                      # subnetwork_hidden_layer1 (small stand-in)
H2 = 256                                      # subnetwork_hidden_layer2 (small stand-in)
GF_DIM = NUM_SUB * H1                         # 896
H2_CAT = NUM_SUB * H2                         # 1792
GHID1 = 256                                   # identity/contrastive hidden 1 (small)
GHID2 = 128                                   # identity/contrastive hidden 2 (small)
IDENTITY_NUM = 16                             # stand-in for cfg.train_identity_num
ATTR_PAD = 128                                # lane-padded attribute logits
ID_PAD = 128                                  # lane-padded identity logits


def _round_up(x, m):
    return (x + m - 1) // m * m


# ----------------------------------------------------------------------------
# Single fused Pallas kernel: entire forward pass, intermediates in VMEM scratch
# ----------------------------------------------------------------------------
def _fused_forward_kernel(
        x_ref,
        w1_ref, b1_ref,
        w2_ref, b2_ref,
        w3_ref, b3_ref,
        wi1_ref, bi1_ref, wi2_ref, bi2_ref, wi3_ref, bi3_ref,
        wc1_ref, bc1_ref, wc2_ref, bc2_ref,
        res_ref, ids_ref, cf_ref,
        gf_ref, h2_ref):
    f32 = jnp.float32

    # subnetwork1_* : one dense matmul producing the concatenated global_feature
    gf_ref[...] = (jnp.dot(x_ref[...], w1_ref[...].astype(f32),
                           preferred_element_type=f32) + b1_ref[...])

    # subnetwork2_* first Linear: dense per-subnetwork blocks (no block-diag zeros).
    # BN(H1) is pre-folded into w2/b2; Dropout is eval-mode identity.
    for i in range(NUM_SUB):
        h = jnp.maximum(gf_ref[:, i * H1:(i + 1) * H1], 0.0)
        h2_ref[:, i * H2:(i + 1) * H2] = (
            jnp.dot(h, w2_ref[i].astype(f32), preferred_element_type=f32)
            + b2_ref[:, i * H2:(i + 1) * H2])

    # subnetwork2_* second Linear: block-diag over the concatenated h2 (BN(H2) folded),
    # lane-padded to 128 output columns, then sigmoid.
    h2r = jnp.maximum(h2_ref[...], 0.0)
    logits = (jnp.dot(h2r, w3_ref[...].astype(f32), preferred_element_type=f32)
              + b3_ref[...])
    res_ref[...] = jax.nn.sigmoid(logits)

    gf = gf_ref[...]

    # identity_network(global_feature)   (BN layers folded into wi2/wi3)
    id1 = (jnp.dot(gf, wi1_ref[...].astype(f32), preferred_element_type=f32)
           + bi1_ref[...])
    id2 = (jnp.dot(jnp.maximum(id1, 0.0), wi2_ref[...].astype(f32),
                   preferred_element_type=f32) + bi2_ref[...])
    ids_ref[...] = (jnp.dot(jnp.maximum(id2, 0.0), wi3_ref[...].astype(f32),
                            preferred_element_type=f32) + bi3_ref[...])

    # global_contrastive_network(global_feature)   (BN folded into wc2)
    c1 = (jnp.dot(gf, wc1_ref[...].astype(f32), preferred_element_type=f32)
          + bc1_ref[...])
    cf_ref[...] = (jnp.dot(jnp.maximum(c1, 0.0), wc2_ref[...].astype(f32),
                           preferred_element_type=f32) + bc2_ref[...])


_PARAM_ORDER = ['W1', 'b1', 'W2', 'b2', 'W3', 'b3',
                'Wi1', 'bi1', 'Wi2', 'bi2', 'Wi3', 'bi3',
                'Wc1', 'bc1', 'Wc2', 'bc2']


@jax.jit
def forward(x, params):
    # TODO(synk): Dropout(p=0.5) is eval-mode identity; training-mode masking not implemented.
    B = x.shape[0]
    Bp = _round_up(max(B, 1), 8)                      # sublane-align batch
    xf = x.reshape(B, -1).astype(jnp.float32)
    xp = jnp.zeros((Bp, INPUT_DIM), jnp.float32).at[:B].set(xf)

    res_p, ids_p, cf_p = pl.pallas_call(
        _fused_forward_kernel,
        out_shape=(
            jax.ShapeDtypeStruct((Bp, ATTR_PAD), jnp.float32),
            jax.ShapeDtypeStruct((Bp, ID_PAD), jnp.float32),
            jax.ShapeDtypeStruct((Bp, GHID2), jnp.float32),
        ),
        scratch_shapes=[
            pltpu.VMEM((Bp, GF_DIM), jnp.float32),    # global_feature
            pltpu.VMEM((Bp, H2_CAT), jnp.float32),    # concatenated h2
        ],
    )(xp, *[params[k] for k in _PARAM_ORDER])

    return (res_p[:B, :NUM_ATTRS],
            ids_p[:B, :IDENTITY_NUM],
            cf_p[:B])


# ----------------------------------------------------------------------------
# Deterministic parameter construction (BN folded, dense blocks, padded, bf16)
# ----------------------------------------------------------------------------
def _linear_params(key, fan_in, fan_out):
    kw, kb = jax.random.split(key)
    bound = 1.0 / math.sqrt(fan_in)
    w = jax.random.uniform(kw, (fan_in, fan_out), jnp.float32, -bound, bound)
    b = jax.random.uniform(kb, (fan_out,), jnp.float32, -bound, bound)
    return w, b


def _bn_affine(key, dim, eps=1e-5):
    """Eval-mode BatchNorm1d folded to y = x * s + t."""
    kg, kb, km, kv = jax.random.split(key, 4)
    gamma = 1.0 + 0.1 * jax.random.normal(kg, (dim,), jnp.float32)
    beta = 0.1 * jax.random.normal(kb, (dim,), jnp.float32)
    mean = 0.1 * jax.random.normal(km, (dim,), jnp.float32)
    var = jnp.abs(1.0 + 0.1 * jax.random.normal(kv, (dim,), jnp.float32))
    s = gamma / jnp.sqrt(var + eps)
    t = beta - mean * s
    return s, t


def _fold_bn_into_linear(s, t, w, b):
    # (relu(x)*s + t) @ w + b  ==  relu(x) @ (s[:,None]*w) + (b + t @ w)
    return s[:, None] * w, b + t @ w


def _block_diag(blocks):
    rows = sum(b.shape[0] for b in blocks)
    cols = sum(b.shape[1] for b in blocks)
    out = jnp.zeros((rows, cols), jnp.float32)
    r = c = 0
    for blk in blocks:
        out = out.at[r:r + blk.shape[0], c:c + blk.shape[1]].set(blk)
        r += blk.shape[0]
        c += blk.shape[1]
    return out


def init_params(key):
    keys = iter(jax.random.split(key, 64))
    p = {}

    # 7x subnetwork1 : Linear(D, H1), concatenated into one dense matmul
    w1s, b1s = zip(*[_linear_params(next(keys), INPUT_DIM, H1)
                     for _ in range(NUM_SUB)])
    p['W1'] = jnp.concatenate(w1s, axis=1).astype(jnp.bfloat16)       # (D, 7*H1)
    p['b1'] = jnp.concatenate(b1s)[None, :]                           # (1, 7*H1)

    # 7x subnetwork2 stage 1: ReLU -> BN(H1) -> Dropout -> Linear(H1, H2)  [BN folded]
    w2f, b2f = [], []
    for _ in range(NUM_SUB):
        s1, t1 = _bn_affine(next(keys), H1)
        w2, b2 = _linear_params(next(keys), H1, H2)
        wf, bf = _fold_bn_into_linear(s1, t1, w2, b2)
        w2f.append(wf)
        b2f.append(bf)
    p['W2'] = jnp.stack(w2f).astype(jnp.bfloat16)                     # (7, H1, H2) dense
    p['b2'] = jnp.concatenate(b2f)[None, :]                           # (1, 7*H2)

    # 7x subnetwork2 stage 2: ReLU -> BN(H2) -> Dropout -> Linear(H2, n_i)
    # BN folded per block, then block-diag over concatenated h2, lane-padded to 128.
    w3_blocks, b3_parts = [], []
    for n in ATTR_SPLIT:
        s2, t2 = _bn_affine(next(keys), H2)
        w3, b3 = _linear_params(next(keys), H2, n)
        wf, bf = _fold_bn_into_linear(s2, t2, w3, b3)
        w3_blocks.append(wf)
        b3_parts.append(bf)
    w3_bd = _block_diag(w3_blocks)                                    # (7*H2, 40)
    p['W3'] = (jnp.zeros((H2_CAT, ATTR_PAD), jnp.float32)
               .at[:, :NUM_ATTRS].set(w3_bd).astype(jnp.bfloat16))
    p['b3'] = (jnp.zeros((1, ATTR_PAD), jnp.float32)
               .at[0, :NUM_ATTRS].set(jnp.concatenate(b3_parts)))

    # identity_network
    wi1, bi1 = _linear_params(next(keys), GF_DIM, GHID1)
    si1, ti1 = _bn_affine(next(keys), GHID1)
    wi2, bi2 = _linear_params(next(keys), GHID1, GHID2)
    si2, ti2 = _bn_affine(next(keys), GHID2)
    wi3, bi3 = _linear_params(next(keys), GHID2, IDENTITY_NUM)
    wi2f, bi2f = _fold_bn_into_linear(si1, ti1, wi2, bi2)
    wi3f, bi3f = _fold_bn_into_linear(si2, ti2, wi3, bi3)
    p['Wi1'] = wi1.astype(jnp.bfloat16)
    p['bi1'] = bi1[None, :]
    p['Wi2'] = wi2f.astype(jnp.bfloat16)
    p['bi2'] = bi2f[None, :]
    p['Wi3'] = (jnp.zeros((GHID2, ID_PAD), jnp.float32)
                .at[:, :IDENTITY_NUM].set(wi3f).astype(jnp.bfloat16))
    p['bi3'] = (jnp.zeros((1, ID_PAD), jnp.float32)
                .at[0, :IDENTITY_NUM].set(bi3f))

    # global_contrastive_network
    wc1, bc1 = _linear_params(next(keys), GF_DIM, GHID1)
    sc1, tc1 = _bn_affine(next(keys), GHID1)
    wc2, bc2 = _linear_params(next(keys), GHID1, GHID2)
    wc2f, bc2f = _fold_bn_into_linear(sc1, tc1, wc2, bc2)
    p['Wc1'] = wc1.astype(jnp.bfloat16)
    p['bc1'] = bc1[None, :]
    p['Wc2'] = wc2f.astype(jnp.bfloat16)
    p['bc2'] = bc2f[None, :]
    return p


# ----------------------------------------------------------------------------
# Pure-JAX reference (same folded params, f32 math) for correctness
# ----------------------------------------------------------------------------
def reference(x, p):
    f = lambda a: a.astype(jnp.float32)
    B = x.shape[0]
    x = x.reshape(B, -1).astype(jnp.float32)

    gf = x @ f(p['W1']) + p['b1']
    g = jnp.maximum(gf, 0.0)
    h2_parts = []
    for i in range(NUM_SUB):
        h2_parts.append(g[:, i * H1:(i + 1) * H1] @ f(p['W2'][i])
                        + p['b2'][:, i * H2:(i + 1) * H2])
    h2 = jnp.concatenate(h2_parts, axis=-1)
    res = jax.nn.sigmoid(jnp.maximum(h2, 0.0) @ f(p['W3']) + p['b3'])[:, :NUM_ATTRS]

    id1 = gf @ f(p['Wi1']) + p['bi1']
    id2 = jnp.maximum(id1, 0.0) @ f(p['Wi2']) + p['bi2']
    ids = (jnp.maximum(id2, 0.0) @ f(p['Wi3']) + p['bi3'])[:, :IDENTITY_NUM]

    c1 = gf @ f(p['Wc1']) + p['bc1']
    cf = jnp.maximum(c1, 0.0) @ f(p['Wc2']) + p['bc2']
    return res, ids, cf


if __name__ == "__main__":
    key = jax.random.PRNGKey(0)
    k_params, k_x = jax.random.split(key)
    params = init_params(k_params)

    # NCHW-style input, flattened by the forward pass: (B, C, H, W) = (4, 2, 8, 8)
    x = jax.random.normal(k_x, (4, 2, 8, 8), jnp.float32)

    res, identity_scores, contrastive = jax.block_until_ready(forward(x, params))
    r_res, r_ids, r_cf = reference(x, params)

    assert res.shape == (4, NUM_ATTRS)
    assert identity_scores.shape == (4, IDENTITY_NUM)
    assert contrastive.shape == (4, GHID2)
    assert jnp.allclose(res, r_res, rtol=1e-3, atol=1e-3)
    assert jnp.allclose(identity_scores, r_ids, rtol=1e-3, atol=1e-3)
    assert jnp.allclose(contrastive, r_cf, rtol=1e-3, atol=1e-3)

    print("KERNEL_OK")
</pallas_src>

<mosaic_0001>
module attributes {stable_mosaic.version = 11 : i64} {
  func.func @_fused_forward_kernel(%arg0: memref<8x128xf32, #tpu.memory_space<vmem>>, %arg1: memref<128x896xbf16, #tpu.memory_space<vmem>>, %arg2: memref<1x896xf32, #tpu.memory_space<vmem>>, %arg3: memref<7x128x256xbf16, #tpu.memory_space<vmem>>, %arg4: memref<1x1792xf32, #tpu.memory_space<vmem>>, %arg5: memref<1792x128xbf16, #tpu.memory_space<vmem>>, %arg6: memref<1x128xf32, #tpu.memory_space<vmem>>, %arg7: memref<896x256xbf16, #tpu.memory_space<vmem>>, %arg8: memref<1x256xf32, #tpu.memory_space<vmem>>, %arg9: memref<256x128xbf16, #tpu.memory_space<vmem>>, %arg10: memref<1x128xf32, #tpu.memory_space<vmem>>, %arg11: memref<128x128xbf16, #tpu.memory_space<vmem>>, %arg12: memref<1x128xf32, #tpu.memory_space<vmem>>, %arg13: memref<896x256xbf16, #tpu.memory_space<vmem>>, %arg14: memref<1x256xf32, #tpu.memory_space<vmem>>, %arg15: memref<256x128xbf16, #tpu.memory_space<vmem>>, %arg16: memref<1x128xf32, #tpu.memory_space<vmem>>, %arg17: memref<8x128xf32, #tpu.memory_space<vmem>>, %arg18: memref<8x128xf32, #tpu.memory_space<vmem>>, %arg19: memref<8x128xf32, #tpu.memory_space<vmem>>, %arg20: memref<8x896xf32, #tpu.memory_space<vmem>>, %arg21: memref<8x1792xf32, #tpu.memory_space<vmem>>) attributes {dimension_semantics = [], scalar_prefetch = 0 : i64, scratch_operands = 2 : i64, tpu.core_type = #tpu.core_type<tc>} {
    %c0 = arith.constant 0 : index
    %c0_0 = arith.constant 0 : index
    %0 = vector.load %arg0[%c0, %c0_0] : memref<8x128xf32, #tpu.memory_space<vmem>>, vector<8x128xf32>
    %c0_1 = arith.constant 0 : index
    %c0_2 = arith.constant 0 : index
    %1 = vector.load %arg1[%c0_1, %c0_2] : memref<128x896xbf16, #tpu.memory_space<vmem>>, vector<128x896xbf16>
    %2 = arith.extf %1 : vector<128x896xbf16> to vector<128x896xf32>
    %cst = arith.constant dense<0.000000e+00> : vector<8x896xf32>
    %3 = tpu.matmul %0, %2, %cst {dimension_numbers = #tpu.dot_dimension_numbers<[1], [0], [0], [1], [0, 0, 1, 1], [], []>} : vector<8x128xf32>, vector<128x896xf32>, vector<8x896xf32> -> vector<8x896xf32>
    %c0_3 = arith.constant 0 : index
    %c0_4 = arith.constant 0 : index
    %4 = vector.load %arg2[%c0_3, %c0_4] : memref<1x896xf32, #tpu.memory_space<vmem>>, vector<1x896xf32>
    %5 = vector.broadcast %4 : vector<1x896xf32> to vector<8x896xf32>
    %6 = arith.addf %3, %5 : vector<8x896xf32>
    %c0_5 = arith.constant 0 : index
    %c0_6 = arith.constant 0 : index
    %7 = vector.load %arg20[%c0_5, %c0_6] : memref<8x896xf32, #tpu.memory_space<vmem>>, vector<8x896xf32>
    tpu.vector_store %arg20[%c0_5, %c0_6], %6 {strides = array<i32>} : memref<8x896xf32, #tpu.memory_space<vmem>>, vector<8x896xf32>,
    %c0_7 = arith.constant 0 : index
    %c0_8 = arith.constant 0 : index
    %8 = vector.load %arg20[%c0_7, %c0_8] : memref<8x896xf32, #tpu.memory_space<vmem>>, vector<8x128xf32>
    %cst_9 = arith.constant 0.000000e+00 : f32
    %9 = vector.broadcast %cst_9 : f32 to vector<8x128xf32>
    %10 = arith.maximumf %8, %9 : vector<8x128xf32>
    %c0_10 = arith.constant 0 : index
    %c0_11 = arith.constant 0 : index
    %c0_12 = arith.constant 0 : index
    %11 = vector.load %arg3[%c0_10, %c0_11, %c0_12] : memref<7x128x256xbf16, #tpu.memory_space<vmem>>, vector<1x128x256xbf16>
    %12 = vector.shape_cast %11 : vector<1x128x256xbf16> to vector<128x256xbf16>
    %13 = arith.extf %12 : vector<128x256xbf16> to vector<128x256xf32>
    %cst_13 = arith.constant dense<0.000000e+00> : vector<8x256xf32>
    %14 = tpu.matmul %10, %13, %cst_13 {dimension_numbers = #tpu.dot_dimension_numbers<[1], [0], [0], [1], [0, 0, 1, 1], [], []>} : vector<8x128xf32>, vector<128x256xf32>, vector<8x256xf32> -> vector<8x256xf32>
    %c0_14 = arith.constant 0 : index
    %c0_15 = arith.constant 0 : index
    %15 = vector.load %arg4[%c0_14, %c0_15] : memref<1x1792xf32, #tpu.memory_space<vmem>>, vector<1x256xf32>
    %16 = vector.broadcast %15 : vector<1x256xf32> to vector<8x256xf32>
    %17 = arith.addf %14, %16 : vector<8x256xf32>
    %c0_16 = arith.constant 0 : index
    %c0_17 = arith.constant 0 : index
    %18 = vector.load %arg21[%c0_16, %c0_17] : memref<8x1792xf32, #tpu.memory_space<vmem>>, vector<8x256xf32>
    tpu.vector_store %arg21[%c0_16, %c0_17], %17 {strides = array<i32>} : memref<8x1792xf32, #tpu.memory_space<vmem>>, vector<8x256xf32>,
    %c0_18 = arith.constant 0 : index
    %c128 = arith.constant 128 : index
    %19 = vector.load %arg20[%c0_18, %c128] : memref<8x896xf32, #tpu.memory_space<vmem>>, vector<8x128xf32>
    %cst_19 = arith.constant 0.000000e+00 : f32
    %20 = vector.broadcast %cst_19 : f32 to vector<8x128xf32>
    %21 = arith.maximumf %19, %20 : vector<8x128xf32>
    %c1 = arith.constant 1 : index
    %c0_20 = arith.constant 0 : index
    %c0_21 = arith.constant 0 : index
    %22 = vector.load %arg3[%c1, %c0_20, %c0_21] : memref<7x128x256xbf16, #tpu.memory_space<vmem>>, vector<1x128x256xbf16>
    %23 = vector.shape_cast %22 : vector<1x128x256xbf16> to vector<128x256xbf16>
    %24 = arith.extf %23 : vector<128x256xbf16> to vector<128x256xf32>
    %cst_22 = arith.constant dense<0.000000e+00> : vector<8x256xf32>
    %25 = tpu.matmul %21, %24, %cst_22 {dimension_numbers = #tpu.dot_dimension_numbers<[1], [0], [0], [1], [0, 0, 1, 1], [], []>} : vector<8x128xf32>, vector<128x256xf32>, vector<8x256xf32> -> vector<8x256xf32>
    %c0_23 = arith.constant 0 : index
    %c256 = arith.constant 256 : index
    %26 = vector.load %arg4[%c0_23, %c256] : memref<1x1792xf32, #tpu.memory_space<vmem>>, vector<1x256xf32>
    %27 = vector.broadcast %26 : vector<1x256xf32> to vector<8x256xf32>
    %28 = arith.addf %25, %27 : vector<8x256xf32>
    %c0_24 = arith.constant 0 : index
    %c256_25 = arith.constant 256 : index
    %29 = vector.load %arg21[%c0_24, %c256_25] : memref<8x1792xf32, #tpu.memory_space<vmem>>, vector<8x256xf32>
    tpu.vector_store %arg21[%c0_24, %c256_25], %28 {strides = array<i32>} : memref<8x1792xf32, #tpu.memory_space<vmem>>, vector<8x256xf32>,
    %c0_26 = arith.constant 0 : index
    %c256_27 = arith.constant 256 : index
    %30 = vector.load %arg20[%c0_26, %c256_27] : memref<8x896xf32, #tpu.memory_space<vmem>>, vector<8x128xf32>
    %cst_28 = arith.constant 0.000000e+00 : f32
    %31 = vector.broadcast %cst_28 : f32 to vector<8x128xf32>
    %32 = arith.maximumf %30, %31 : vector<8x128xf32>
    %c2 = arith.constant 2 : index
    %c0_29 = arith.constant 0 : index
    %c0_30 = arith.constant 0 : index
    %33 = vector.load %arg3[%c2, %c0_29, %c0_30] : memref<7x128x256xbf16, #tpu.memory_space<vmem>>, vector<1x128x256xbf16>
    %34 = vector.shape_cast %33 : vector<1x128x256xbf16> to vector<128x256xbf16>
    %35 = arith.extf %34 : vector<128x256xbf16> to vector<128x256xf32>
    %cst_31 = arith.constant dense<0.000000e+00> : vector<8x256xf32>
    %36 = tpu.matmul %32, %35, %cst_31 {dimension_numbers = #tpu.dot_dimension_numbers<[1], [0], [0], [1], [0, 0, 1, 1], [], []>} : vector<8x128xf32>, vector<128x256xf32>, vector<8x256xf32> -> vector<8x256xf32>
    %c0_32 = arith.constant 0 : index
    %c512 = arith.constant 512 : index
    %37 = vector.load %arg4[%c0_32, %c512] : memref<1x1792xf32, #tpu.memory_space<vmem>>, vector<1x256xf32>
    %38 = vector.broadcast %37 : vector<1x256xf32> to vector<8x256xf32>
    %39 = arith.addf %36, %38 : vector<8x256xf32>
    %c0_33 = arith.constant 0 : index
    %c512_34 = arith.constant 512 : index
    %40 = vector.load %arg21[%c0_33, %c512_34] : memref<8x1792xf32, #tpu.memory_space<vmem>>, vector<8x256xf32>
    tpu.vector_store %arg21[%c0_33, %c512_34], %39 {strides = array<i32>} : memref<8x1792xf32, #tpu.memory_space<vmem>>, vector<8x256xf32>,
    %c0_35 = arith.constant 0 : index
    %c384 = arith.constant 384 : index
    %41 = vector.load %arg20[%c0_35, %c384] : memref<8x896xf32, #tpu.memory_space<vmem>>, vector<8x128xf32>
    %cst_36 = arith.constant 0.000000e+00 : f32
    %42 = vector.broadcast %cst_36 : f32 to vector<8x128xf32>
    %43 = arith.maximumf %41, %42 : vector<8x128xf32>
    %c3 = arith.constant 3 : index
    %c0_37 = arith.constant 0 : index
    %c0_38 = arith.constant 0 : index
    %44 = vector.load %arg3[%c3, %c0_37, %c0_38] : memref<7x128x256xbf16, #tpu.memory_space<vmem>>, vector<1x128x256xbf16>
    %45 = vector.shape_cast %44 : vector<1x128x256xbf16> to vector<128x256xbf16>
    %46 = arith.extf %45 : vector<128x256xbf16> to vector<128x256xf32>
    %cst_39 = arith.constant dense<0.000000e+00> : vector<8x256xf32>
    %47 = tpu.matmul %43, %46, %cst_39 {dimension_numbers = #tpu.dot_dimension_numbers<[1], [0], [0], [1], [0, 0, 1, 1], [], []>} : vector<8x128xf32>, vector<128x256xf32>, vector<8x256xf32> -> vector<8x256xf32>
    %c0_40 = arith.constant 0 : index
    %c768 = arith.constant 768 : index
    %48 = vector.load %arg4[%c0_40, %c768] : memref<1x1792xf32, #tpu.memory_space<vmem>>, vector<1x256xf32>
    %49 = vector.broadcast %48 : vector<1x256xf32> to vector<8x256xf32>
    %50 = arith.addf %47, %49 : vector<8x256xf32>
    %c0_41 = arith.constant 0 : index
    %c768_42 = arith.constant 768 : index
    %51 = vector.load %arg21[%c0_41, %c768_42] : memref<8x1792xf32, #tpu.memory_space<vmem>>, vector<8x256xf32>
    tpu.vector_store %arg21[%c0_41, %c768_42], %50 {strides = array<i32>} : memref<8x1792xf32, #tpu.memory_space<vmem>>, vector<8x256xf32>,
    %c0_43 = arith.constant 0 : index
    %c512_44 = arith.constant 512 : index
    %52 = vector.load %arg20[%c0_43, %c512_44] : memref<8x896xf32, #tpu.memory_space<vmem>>, vector<8x128xf32>
    %cst_45 = arith.constant 0.000000e+00 : f32
    %53 = vector.broadcast %cst_45 : f32 to vector<8x128xf32>
    %54 = arith.maximumf %52, %53 : vector<8x128xf32>
    %c4 = arith.constant 4 : index
    %c0_46 = arith.constant 0 : index
    %c0_47 = arith.constant 0 : index
    %55 = vector.load %arg3[%c4, %c0_46, %c0_47] : memref<7x128x256xbf16, #tpu.memory_space<vmem>>, vector<1x128x256xbf16>
    %56 = vector.shape_cast %55 : vector<1x128x256xbf16> to vector<128x256xbf16>
    %57 = arith.extf %56 : vector<128x256xbf16> to vector<128x256xf32>
    %cst_48 = arith.constant dense<0.000000e+00> : vector<8x256xf32>
    %58 = tpu.matmul %54, %57, %cst_48 {dimension_numbers = #tpu.dot_dimension_numbers<[1], [0], [0], [1], [0, 0, 1, 1], [], []>} : vector<8x128xf32>, vector<128x256xf32>, vector<8x256xf32> -> vector<8x256xf32>
    %c0_49 = arith.constant 0 : index
    %c1024 = arith.constant 1024 : index
    %59 = vector.load %arg4[%c0_49, %c1024] : memref<1x1792xf32, #tpu.memory_space<vmem>>, vector<1x256xf32>
    %60 = vector.broadcast %59 : vector<1x256xf32> to vector<8x256xf32>
    %61 = arith.addf %58, %60 : vector<8x256xf32>
    %c0_50 = arith.constant 0 : index
    %c1024_51 = arith.constant 1024 : index
    %62 = vector.load %arg21[%c0_50, %c1024_51] : memref<8x1792xf32, #tpu.memory_space<vmem>>, vector<8x256xf32>
    tpu.vector_store %arg21[%c0_50, %c1024_51], %61 {strides = array<i32>} : memref<8x1792xf32, #tpu.memory_space<vmem>>, vector<8x256xf32>,
    %c0_52 = arith.constant 0 : index
    %c640 = arith.constant 640 : index
    %63 = vector.load %arg20[%c0_52, %c640] : memref<8x896xf32, #tpu.memory_space<vmem>>, vector<8x128xf32>
    %cst_53 = arith.constant 0.000000e+00 : f32
    %64 = vector.broadcast %cst_53 : f32 to vector<8x128xf32>
    %65 = arith.maximumf %63, %64 : vector<8x128xf32>
    %c5 = arith.constant 5 : index
    %c0_54 = arith.constant 0 : index
    %c0_55 = arith.constant 0 : index
    %66 = vector.load %arg3[%c5, %c0_54, %c0_55] : memref<7x128x256xbf16, #tpu.memory_space<vmem>>, vector<1x128x256xbf16>
    %67 = vector.shape_cast %66 : vector<1x128x256xbf16> to vector<128x256xbf16>
    %68 = arith.extf %67 : vector<128x256xbf16> to vector<128x256xf32>
    %cst_56 = arith.constant dense<0.000000e+00> : vector<8x256xf32>
    %69 = tpu.matmul %65, %68, %cst_56 {dimension_numbers = #tpu.dot_dimension_numbers<[1], [0], [0], [1], [0, 0, 1, 1], [], []>} : vector<8x128xf32>, vector<128x256xf32>, vector<8x256xf32> -> vector<8x256xf32>
    %c0_57 = arith.constant 0 : index
    %c1280 = arith.constant 1280 : index
    %70 = vector.load %arg4[%c0_57, %c1280] : memref<1x1792xf32, #tpu.memory_space<vmem>>, vector<1x256xf32>
    %71 = vector.broadcast %70 : vector<1x256xf32> to vector<8x256xf32>
    %72 = arith.addf %69, %71 : vector<8x256xf32>
    %c0_58 = arith.constant 0 : index
    %c1280_59 = arith.constant 1280 : index
    %73 = vector.load %arg21[%c0_58, %c1280_59] : memref<8x1792xf32, #tpu.memory_space<vmem>>, vector<8x256xf32>
    tpu.vector_store %arg21[%c0_58, %c1280_59], %72 {strides = array<i32>} : memref<8x1792xf32, #tpu.memory_space<vmem>>, vector<8x256xf32>,
    %c0_60 = arith.constant 0 : index
    %c768_61 = arith.constant 768 : index
    %74 = vector.load %arg20[%c0_60, %c768_61] : memref<8x896xf32, #tpu.memory_space<vmem>>, vector<8x128xf32>
    %cst_62 = arith.constant 0.000000e+00 : f32
    %75 = vector.broadcast %cst_62 : f32 to vector<8x128xf32>
    %76 = arith.maximumf %74, %75 : vector<8x128xf32>
    %c6 = arith.constant 6 : index
    %c0_63 = arith.constant 0 : index
    %c0_64 = arith.constant 0 : index
    %77 = vector.load %arg3[%c6, %c0_63, %c0_64] : memref<7x128x256xbf16, #tpu.memory_space<vmem>>, vector<1x128x256xbf16>
    %78 = vector.shape_cast %77 : vector<1x128x256xbf16> to vector<128x256xbf16>
    %79 = arith.extf %78 : vector<128x256xbf16> to vector<128x256xf32>
    %cst_65 = arith.constant dense<0.000000e+00> : vector<8x256xf32>
    %80 = tpu.matmul %76, %79, %cst_65 {dimension_numbers = #tpu.dot_dimension_numbers<[1], [0], [0], [1], [0, 0, 1, 1], [], []>} : vector<8x128xf32>, vector<128x256xf32>, vector<8x256xf32> -> vector<8x256xf32>
    %c0_66 = arith.constant 0 : index
    %c1536 = arith.constant 1536 : index
    %81 = vector.load %arg4[%c0_66, %c1536] : memref<1x1792xf32, #tpu.memory_space<vmem>>, vector<1x256xf32>
    %82 = vector.broadcast %81 : vector<1x256xf32> to vector<8x256xf32>
    %83 = arith.addf %80, %82 : vector<8x256xf32>
    %c0_67 = arith.constant 0 : index
    %c1536_68 = arith.constant 1536 : index
    %84 = vector.load %arg21[%c0_67, %c1536_68] : memref<8x1792xf32, #tpu.memory_space<vmem>>, vector<8x256xf32>
    tpu.vector_store %arg21[%c0_67, %c1536_68], %83 {strides = array<i32>} : memref<8x1792xf32, #tpu.memory_space<vmem>>, vector<8x256xf32>,
    %c0_69 = arith.constant 0 : index
    %c0_70 = arith.constant 0 : index
    %85 = vector.load %arg21[%c0_69, %c0_70] : memref<8x1792xf32, #tpu.memory_space<vmem>>, vector<8x1792xf32>
    %cst_71 = arith.constant 0.000000e+00 : f32
    %86 = vector.broadcast %cst_71 : f32 to vector<8x1792xf32>
    %87 = arith.maximumf %85, %86 : vector<8x1792xf32>
    %c0_72 = arith.constant 0 : index
    %c0_73 = arith.constant 0 : index
    %88 = vector.load %arg5[%c0_72, %c0_73] : memref<1792x128xbf16, #tpu.memory_space<vmem>>, vector<1792x128xbf16>
    %89 = arith.extf %88 : vector<1792x128xbf16> to vector<1792x128xf32>
    %cst_74 = arith.constant dense<0.000000e+00> : vector<8x128xf32>
    %90 = tpu.matmul %87, %89, %cst_74 {dimension_numbers = #tpu.dot_dimension_numbers<[1], [0], [0], [1], [0, 0, 1, 1], [], []>} : vector<8x1792xf32>, vector<1792x128xf32>, vector<8x128xf32> -> vector<8x128xf32>
    %c0_75 = arith.constant 0 : index
    %c0_76 = arith.constant 0 : index
    %91 = vector.load %arg6[%c0_75, %c0_76] : memref<1x128xf32, #tpu.memory_space<vmem>>, vector<1x128xf32>
    %92 = vector.broadcast %91 : vector<1x128xf32> to vector<8x128xf32>
    %93 = arith.addf %90, %92 : vector<8x128xf32>
    %94 = arith.negf %93 : vector<8x128xf32>
    %95 = math.exp %94 : vector<8x128xf32>
    %cst_77 = arith.constant 1.000000e+00 : f32
    %96 = vector.broadcast %cst_77 : f32 to vector<8x128xf32>
    %97 = arith.addf %96, %95 : vector<8x128xf32>
    %98 = arith.divf %96, %97 : vector<8x128xf32>
    %c0_78 = arith.constant 0 : index
    %c0_79 = arith.constant 0 : index
    %99 = vector.load %arg17[%c0_78, %c0_79] : memref<8x128xf32, #tpu.memory_space<vmem>>, vector<8x128xf32>
    tpu.vector_store %arg17[%c0_78, %c0_79], %98 {strides = array<i32>} : memref<8x128xf32, #tpu.memory_space<vmem>>, vector<8x128xf32>,
    %c0_80 = arith.constant 0 : index
    %c0_81 = arith.constant 0 : index
    %100 = vector.load %arg20[%c0_80, %c0_81] : memref<8x896xf32, #tpu.memory_space<vmem>>, vector<8x896xf32>
    %c0_82 = arith.constant 0 : index
    %c0_83 = arith.constant 0 : index
    %101 = vector.load %arg7[%c0_82, %c0_83] : memref<896x256xbf16, #tpu.memory_space<vmem>>, vector<896x256xbf16>
    %102 = arith.extf %101 : vector<896x256xbf16> to vector<896x256xf32>
    %cst_84 = arith.constant dense<0.000000e+00> : vector<8x256xf32>
    %103 = tpu.matmul %100, %102, %cst_84 {dimension_numbers = #tpu.dot_dimension_numbers<[1], [0], [0], [1], [0, 0, 1, 1], [], []>} : vector<8x896xf32>, vector<896x256xf32>, vector<8x256xf32> -> vector<8x256xf32>
    %c0_85 = arith.constant 0 : index
    %c0_86 = arith.constant 0 : index
    %104 = vector.load %arg8[%c0_85, %c0_86] : memref<1x256xf32, #tpu.memory_space<vmem>>, vector<1x256xf32>
    %105 = vector.broadcast %104 : vector<1x256xf32> to vector<8x256xf32>
    %106 = arith.addf %103, %105 : vector<8x256xf32>
    %cst_87 = arith.constant 0.000000e+00 : f32
    %107 = vector.broadcast %cst_87 : f32 to vector<8x256xf32>
    %108 = arith.maximumf %106, %107 : vector<8x256xf32>
    %c0_88 = arith.constant 0 : index
    %c0_89 = arith.constant 0 : index
    %109 = vector.load %arg9[%c0_88, %c0_89] : memref<256x128xbf16, #tpu.memory_space<vmem>>, vector<256x128xbf16>
    %110 = arith.extf %109 : vector<256x128xbf16> to vector<256x128xf32>
    %cst_90 = arith.constant dense<0.000000e+00> : vector<8x128xf32>
    %111 = tpu.matmul %108, %110, %cst_90 {dimension_numbers = #tpu.dot_dimension_numbers<[1], [0], [0], [1], [0, 0, 1, 1], [], []>} : vector<8x256xf32>, vector<256x128xf32>, vector<8x128xf32> -> vector<8x128xf32>
    %c0_91 = arith.constant 0 : index
    %c0_92 = arith.constant 0 : index
    %112 = vector.load %arg10[%c0_91, %c0_92] : memref<1x128xf32, #tpu.memory_space<vmem>>, vector<1x128xf32>
    %113 = vector.broadcast %112 : vector<1x128xf32> to vector<8x128xf32>
    %114 = arith.addf %111, %113 : vector<8x128xf32>
    %cst_93 = arith.constant 0.000000e+00 : f32
    %115 = vector.broadcast %cst_93 : f32 to vector<8x128xf32>
    %116 = arith.maximumf %114, %115 : vector<8x128xf32>
    %c0_94 = arith.constant 0 : index
    %c0_95 = arith.constant 0 : index
    %117 = vector.load %arg11[%c0_94, %c0_95] : memref<128x128xbf16, #tpu.memory_space<vmem>>, vector<128x128xbf16>
    %118 = arith.extf %117 : vector<128x128xbf16> to vector<128x128xf32>
    %cst_96 = arith.constant dense<0.000000e+00> : vector<8x128xf32>
    %119 = tpu.matmul %116, %118, %cst_96 {dimension_numbers = #tpu.dot_dimension_numbers<[1], [0], [0], [1], [0, 0, 1, 1], [], []>} : vector<8x128xf32>, vector<128x128xf32>, vector<8x128xf32> -> vector<8x128xf32>
    %c0_97 = arith.constant 0 : index
    %c0_98 = arith.constant 0 : index
    %120 = vector.load %arg12[%c0_97, %c0_98] : memref<1x128xf32, #tpu.memory_space<vmem>>, vector<1x128xf32>
    %121 = vector.broadcast %120 : vector<1x128xf32> to vector<8x128xf32>
    %122 = arith.addf %119, %121 : vector<8x128xf32>
    %c0_99 = arith.constant 0 : index
    %c0_100 = arith.constant 0 : index
    %123 = vector.load %arg18[%c0_99, %c0_100] : memref<8x128xf32, #tpu.memory_space<vmem>>, vector<8x128xf32>
    tpu.vector_store %arg18[%c0_99, %c0_100], %122 {strides = array<i32>} : memref<8x128xf32, #tpu.memory_space<vmem>>, vector<8x128xf32>,
    %c0_101 = arith.constant 0 : index
    %c0_102 = arith.constant 0 : index
    %124 = vector.load %arg13[%c0_101, %c0_102] : memref<896x256xbf16, #tpu.memory_space<vmem>>, vector<896x256xbf16>
    %125 = arith.extf %124 : vector<896x256xbf16> to vector<896x256xf32>
    %cst_103 = arith.constant dense<0.000000e+00> : vector<8x256xf32>
    %126 = tpu.matmul %100, %125, %cst_103 {dimension_numbers = #tpu.dot_dimension_numbers<[1], [0], [0], [1], [0, 0, 1, 1], [], []>} : vector<8x896xf32>, vector<896x256xf32>, vector<8x256xf32> -> vector<8x256xf32>
    %c0_104 = arith.constant 0 : index
    %c0_105 = arith.constant 0 : index
    %127 = vector.load %arg14[%c0_104, %c0_105] : memref<1x256xf32, #tpu.memory_space<vmem>>, vector<1x256xf32>
    %128 = vector.broadcast %127 : vector<1x256xf32> to vector<8x256xf32>
    %129 = arith.addf %126, %128 : vector<8x256xf32>
    %cst_106 = arith.constant 0.000000e+00 : f32
    %130 = vector.broadcast %cst_106 : f32 to vector<8x256xf32>
    %131 = arith.maximumf %129, %130 : vector<8x256xf32>
    %c0_107 = arith.constant 0 : index
    %c0_108 = arith.constant 0 : index
    %132 = vector.load %arg15[%c0_107, %c0_108] : memref<256x128xbf16, #tpu.memory_space<vmem>>, vector<256x128xbf16>
    %133 = arith.extf %132 : vector<256x128xbf16> to vector<256x128xf32>
    %cst_109 = arith.constant dense<0.000000e+00> : vector<8x128xf32>
    %134 = tpu.matmul %131, %133, %cst_109 {dimension_numbers = #tpu.dot_dimension_numbers<[1], [0], [0], [1], [0, 0, 1, 1], [], []>} : vector<8x256xf32>, vector<256x128xf32>, vector<8x128xf32> -> vector<8x128xf32>
    %c0_110 = arith.constant 0 : index
    %c0_111 = arith.constant 0 : index
    %135 = vector.load %arg16[%c0_110, %c0_111] : memref<1x128xf32, #tpu.memory_space<vmem>>, vector<1x128xf32>
    %136 = vector.broadcast %135 : vector<1x128xf32> to vector<8x128xf32>
    %137 = arith.addf %134, %136 : vector<8x128xf32>
    %c0_112 = arith.constant 0 : index
    %c0_113 = arith.constant 0 : index
    %138 = vector.load %arg19[%c0_112, %c0_113] : memref<8x128xf32, #tpu.memory_space<vmem>>, vector<8x128xf32>
    tpu.vector_store %arg19[%c0_112, %c0_113], %137 {strides = array<i32>} : memref<8x128xf32, #tpu.memory_space<vmem>>, vector<8x128xf32>,
    return
  }
}

</mosaic_0001>

<llo_original>
// kernel: forward.1
$region0: #{forward.1}
  #allocation0 [shape = 'u32[]', space=smem, size = 0x4, offset = 0x4, fixed_abs, tag = 'smem constant byte address 0x4 - core index']
  #allocation1 [shape = 'u32[144,128]{1,0:T(1,128)}', space=vmem, size = 0x12000, scoped, tag = 'internal scratch']
  #allocation2 [shape = 'f32[8,896]{1,0:T(8,128)}', space=vmem, size = 0x7000, scoped, tag = 'scratch operand']
  #allocation3 [shape = 'f32[8,1792]{1,0:T(8,128)}', space=vmem, size = 0xe000, scoped, tag = 'scratch operand']
  %s0 = inlined_call_operand.vmem [shape: f32[8,128], index: 0, kind: input, shape index: {}]
  %s1 = inlined_call_operand.hbm [shape: bf16[128,896], index: 1, kind: input, shape index: {}]
  %s2 = inlined_call_operand.vmem [shape: f32[1,896], index: 2, kind: input, shape index: {}]
  %s3 = inlined_call_operand.hbm [shape: bf16[7,128,256], index: 3, kind: input, shape index: {}]
  %s4 = inlined_call_operand.vmem [shape: f32[1,1792], index: 4, kind: input, shape index: {}]
  %s5 = inlined_call_operand.hbm [shape: bf16[1792,128], index: 5, kind: input, shape index: {}]
  %s6 = inlined_call_operand.vmem [shape: f32[1,128], index: 6, kind: input, shape index: {}]
  %s7 = inlined_call_operand.hbm [shape: bf16[896,256], index: 7, kind: input, shape index: {}]
  %s8 = inlined_call_operand.vmem [shape: f32[1,256], index: 8, kind: input, shape index: {}]
  %s9 = inlined_call_operand.hbm [shape: bf16[256,128], index: 9, kind: input, shape index: {}]
  %s10 = inlined_call_operand.vmem [shape: f32[1,128], index: 10, kind: input, shape index: {}]
  %s11 = inlined_call_operand.vmem [shape: bf16[128,128], index: 11, kind: input, shape index: {}]
  %s12 = inlined_call_operand.vmem [shape: f32[1,128], index: 12, kind: input, shape index: {}]
  %s13 = inlined_call_operand.hbm [shape: bf16[896,256], index: 13, kind: input, shape index: {}]
  %s14 = inlined_call_operand.vmem [shape: f32[1,256], index: 14, kind: input, shape index: {}]
  %s15 = inlined_call_operand.hbm [shape: bf16[256,128], index: 15, kind: input, shape index: {}]
  %s16 = inlined_call_operand.vmem [shape: f32[1,128], index: 16, kind: input, shape index: {}]
  %s17 = inlined_call_operand.vmem [shape: f32[8,128], index: 17, kind: output, shape index: {0}]
  %s18 = inlined_call_operand.vmem [shape: f32[8,128], index: 18, kind: output, shape index: {1}]
  %s19 = inlined_call_operand.vmem [shape: f32[8,128], index: 19, kind: output, shape index: {2}]
  %20 = xla_tuple %s17, %s18, %s19
  %s21 = sld [smem:[#allocation0]]
  $region122: #{forward.1} parent=0
    _
  %s23 = ssub.s32 1, %s21
  %s24 = scalar_select 0, %s23, %s21
  $region1: #{forward.1} parent=0
    #allocation4 [shape = 'u8[229376]{0}', space=vmem, size = 0x38000, scoped, tag = 'input window, operand 1, single buffered']
    #allocation5 [shape = 's32[1]{0}', space=sflag, size = 0x4, scoped, tag = 'scoped memory for forward.1']
    #allocation6 [shape = 'u8[458752]{0}', space=vmem, size = 0x70000, scoped, tag = 'input window, operand 3, single buffered']
    #allocation7 [shape = 's32[1]{0}', space=sflag, size = 0x4, scoped, tag = 'scoped memory for forward.1']
    #allocation8 [shape = 'u8[458752]{0}', space=vmem, size = 0x70000, scoped, tag = 'input window, operand 5, single buffered']
    #allocation9 [shape = 'u8[458752]{0}', space=vmem, size = 0x70000, scoped, tag = 'input window, operand 7, single buffered']
    #allocation10 [shape = 's32[1]{0}', space=sflag, size = 0x4, scoped, tag = 'scoped memory for forward.1']
    #allocation11 [shape = 'u8[65536]{0}', space=vmem, size = 0x10000, scoped, tag = 'input window, operand 9, single buffered']
    #allocation12 [shape = 'u8[458752]{0}', space=vmem, size = 0x70000, scoped, tag = 'input window, operand 13, single buffered']
    #allocation13 [shape = 's32[1]{0}', space=sflag, size = 0x4, scoped, tag = 'scoped memory for forward.1']
    #allocation14 [shape = 'u8[65536]{0}', space=vmem, size = 0x10000, scoped, tag = 'input window, operand 15, single buffered']
    %25 = vsyncpa [#allocation5], 0
    %26 = vsyncpa [#allocation7], 0
    %27 = vsyncpa [#allocation10], 0
    %28 = vsyncpa [#allocation13], 0
    // Predicated region
    $region2: #{forward.1} parent=1 // pred_check
      _
    $region3: #{forward.1} parent=1 // pred_check_branch
      %30 = sbr.rel (0) target = $region5
    $region4: #{forward.1} parent=1 // pred_region
      _
    $region5: #{forward.1} parent=1 // pred_fallthru
      _
    // Predicated region
    $region6: #{forward.1} parent=1 // pred_check
      _
    $region7: #{forward.1} parent=1 // pred_check_branch
      %32 = sbr.rel (0) target = $region9
    $region8: #{forward.1} parent=1 // pred_region
      %s34 = ssub.s32 7168, 7168
      %35 = vsyncadd [#allocation5], %s34
      %s36 = sshll.u32 [#allocation4], 4
      %s37 = int_to_ptr.vmem [resolvable:$true] %s36
      %42 = dma.hbm_to_vmem [thread:$0]  %s1, 7168, %s37, [#allocation5], 448, 448, 28
    $region9: #{forward.1} parent=1 // pred_fallthru
      _
    // Predicated region
    $region10: #{forward.1} parent=1 // pred_check
      _
    $region11: #{forward.1} parent=1 // pred_check_branch
      %44 = sbr.rel (0) target = $region13
    $region12: #{forward.1} parent=1 // pred_region
      _
    $region13: #{forward.1} parent=1 // pred_fallthru
      _
    // Predicated region
    $region14: #{forward.1} parent=1 // pred_check
      _
    $region15: #{forward.1} parent=1 // pred_check_branch
      %46 = sbr.rel (0) target = $region17
    $region16: #{forward.1} parent=1 // pred_region
      %s48 = ssub.s32 14336, 14336
      %49 = vsyncadd [#allocation7], %s48
      %s50 = sshll.u32 [#allocation6], 4
      %s51 = int_to_ptr.vmem [resolvable:$true] %s50
      %56 = dma.hbm_to_vmem [thread:$0]  %s3, 14336, %s51, [#allocation7], 128, 128, 8
    $region17: #{forward.1} parent=1 // pred_fallthru
      _
    // Predicated region
    $region18: #{forward.1} parent=1 // pred_check
      _
    $region19: #{forward.1} parent=1 // pred_check_branch
      %58 = sbr.rel (0) target = $region21
    $region20: #{forward.1} parent=1 // pred_region
      _
    $region21: #{forward.1} parent=1 // pred_fallthru
      _
    // Predicated region
    $region22: #{forward.1} parent=1 // pred_check
      _
    $region23: #{forward.1} parent=1 // pred_check_branch
      %60 = sbr.rel (0) target = $region25
    $region24: #{forward.1} parent=1 // pred_region
      %s62 = ssub.s32 14336, 14336
      %63 = vsyncadd [#allocation7], %s62
      %s64 = sshll.u32 [#allocation8], 4
      %s65 = int_to_ptr.vmem [resolvable:$true] %s64
      %70 = dma.hbm_to_vmem [thread:$0]  %s5, 14336, %s65, [#allocation7], 64, 64, 4
    $region25: #{forward.1} parent=1 // pred_fallthru
      _
    // Predicated region
    $region26: #{forward.1} parent=1 // pred_check
      _
    $region27: #{forward.1} parent=1 // pred_check_branch
      %72 = sbr.rel (0) target = $region29
    $region28: #{forward.1} parent=1 // pred_region
      _
    $region29: #{forward.1} parent=1 // pred_fallthru
      _
    // Predicated region
    $region30: #{forward.1} parent=1 // pred_check
      _
    $region31: #{forward.1} parent=1 // pred_check_branch
      %74 = sbr.rel (0) target = $region33
    $region32: #{forward.1} parent=1 // pred_region
      %s76 = ssub.s32 14336, 14336
      %77 = vsyncadd [#allocation10], %s76
      %s78 = sshll.u32 [#allocation9], 4
      %s79 = int_to_ptr.vmem [resolvable:$true] %s78
      %84 = dma.hbm_to_vmem [thread:$0]  %s7, 14336, %s79, [#allocation10], 128, 128, 8
    $region33: #{forward.1} parent=1 // pred_fallthru
      _
    // Predicated region
    $region34: #{forward.1} parent=1 // pred_check
      _
    $region35: #{forward.1} parent=1 // pred_check_branch
      %86 = sbr.rel (0) target = $region37
    $region36: #{forward.1} parent=1 // pred_region
      _
    $region37: #{forward.1} parent=1 // pred_fallthru
      _
    // Predicated region
    $region38: #{forward.1} parent=1 // pred_check
      _
    $region39: #{forward.1} parent=1 // pred_check_branch
      %88 = sbr.rel (0) target = $region41
    $region40: #{forward.1} parent=1 // pred_region
      %s90 = ssub.s32 2048, 2048
      %91 = vsyncadd [#allocation10], %s90
      %s92 = sshll.u32 [#allocation11], 4
      %s93 = int_to_ptr.vmem [resolvable:$true] %s92
      %98 = dma.hbm_to_vmem [thread:$0]  %s9, 2048, %s93, [#allocation10], 64, 64, 4
    $region41: #{forward.1} parent=1 // pred_fallthru
      _
    // Predicated region
    $region42: #{forward.1} parent=1 // pred_check
      _
    $region43: #{forward.1} parent=1 // pred_check_branch
      %100 = sbr.rel (0) target = $region45
    $region44: #{forward.1} parent=1 // pred_region
      _
    $region45: #{forward.1} parent=1 // pred_fallthru
      _
    // Predicated region
    $region46: #{forward.1} parent=1 // pred_check
      _
    $region47: #{forward.1} parent=1 // pred_check_branch
      %102 = sbr.rel (0) target = $region49
    $region48: #{forward.1} parent=1 // pred_region
      _
    $region49: #{forward.1} parent=1 // pred_fallthru
      _
    // Predicated region
    $region50: #{forward.1} parent=1 // pred_check
      _
    $region51: #{forward.1} parent=1 // pred_check_branch
      %104 = sbr.rel (0) target = $region53
    $region52: #{forward.1} parent=1 // pred_region
      _
    $region53: #{forward.1} parent=1 // pred_fallthru
      _
    // Predicated region
    $region54: #{forward.1} parent=1 // pred_check
      _
    $region55: #{forward.1} parent=1 // pred_check_branch
      %106 = sbr.rel (0) target = $region57
    $region56: #{forward.1} parent=1 // pred_region
      %s108 = ssub.s32 14336, 14336
      %109 = vsyncadd [#allocation13], %s108
      %s110 = sshll.u32 [#allocation12], 4
      %s111 = int_to_ptr.vmem [resolvable:$true] %s110
      %116 = dma.hbm_to_vmem [thread:$0]  %s13, 14336, %s111, [#allocation13], 128, 128, 8
    $region57: #{forward.1} parent=1 // pred_fallthru
      _
    // Predicated region
    $region58: #{forward.1} parent=1 // pred_check
      _
    $region59: #{forward.1} parent=1 // pred_check_branch
      %118 = sbr.rel (0) target = $region61
    $region60: #{forward.1} parent=1 // pred_region
      _
    $region61: #{forward.1} parent=1 // pred_fallthru
      _
    // Predicated region
    $region62: #{forward.1} parent=1 // pred_check
      _
    $region63: #{forward.1} parent=1 // pred_check_branch
      %120 = sbr.rel (0) target = $region65
    $region64: #{forward.1} parent=1 // pred_region
      %s122 = ssub.s32 2048, 2048
      %123 = vsyncadd [#allocation13], %s122
      %s124 = sshll.u32 [#allocation14], 4
      %s125 = int_to_ptr.vmem [resolvable:$true] %s124
      %130 = dma.hbm_to_vmem [thread:$0]  %s15, 2048, %s125, [#allocation13], 64, 64, 4
    $region65: #{forward.1} parent=1 // pred_fallthru
      _
    // Predicated region
    $region66: #{forward.1} parent=1 // pred_check
      _
    $region67: #{forward.1} parent=1 // pred_check_branch
      %132 = sbr.rel (0) target = $region69
    $region68: #{forward.1} parent=1 // pred_region
      _
    $region69: #{forward.1} parent=1 // pred_fallthru
      _
    // Predicated region
    $region70: #{forward.1} parent=1 // pred_check
      _
    $region71: #{forward.1} parent=1 // pred_check_branch
      %134 = sbr.rel (0) target = $region73
    $region72: #{forward.1} parent=1 // pred_region
      %135 = dma.done [#allocation5], 7168
    $region73: #{forward.1} parent=1 // pred_fallthru
      _
    // Predicated region
    $region74: #{forward.1} parent=1 // pred_check
      _
    $region75: #{forward.1} parent=1 // pred_check_branch
      %137 = sbr.rel (0) target = $region77
    $region76: #{forward.1} parent=1 // pred_region
      %138 = dma.done [#allocation7], 14336
    $region77: #{forward.1} parent=1 // pred_fallthru
      _
    // Predicated region
    $region78: #{forward.1} parent=1 // pred_check
      _
    $region79: #{forward.1} parent=1 // pred_check_branch
      %140 = sbr.rel (0) target = $region81
    $region80: #{forward.1} parent=1 // pred_region
      %141 = dma.done [#allocation7], 14336
    $region81: #{forward.1} parent=1 // pred_fallthru
      _
    // Predicated region
    $region82: #{forward.1} parent=1 // pred_check
      _
    $region83: #{forward.1} parent=1 // pred_check_branch
      %143 = sbr.rel (0) target = $region85
    $region84: #{forward.1} parent=1 // pred_region
      %144 = dma.done [#allocation10], 14336
    $region85: #{forward.1} parent=1 // pred_fallthru
      _
    // Predicated region
    $region86: #{forward.1} parent=1 // pred_check
      _
    $region87: #{forward.1} parent=1 // pred_check_branch
      %146 = sbr.rel (0) target = $region89
    $region88: #{forward.1} parent=1 // pred_region
      %147 = dma.done [#allocation10], 2048
    $region89: #{forward.1} parent=1 // pred_fallthru
      _
    // Predicated region
    $region90: #{forward.1} parent=1 // pred_check
      _
    $region91: #{forward.1} parent=1 // pred_check_branch
      %149 = sbr.rel (0) target = $region93
    $region92: #{forward.1} parent=1 // pred_region
      %150 = dma.done [#allocation13], 14336
    $region93: #{forward.1} parent=1 // pred_fallthru
      _
    // Predicated region
    $region94: #{forward.1} parent=1 // pred_check
      _
    $region95: #{forward.1} parent=1 // pred_check_branch
      %152 = sbr.rel (0) target = $region97
    $region96: #{forward.1} parent=1 // pred_region
      %153 = dma.done [#allocation13], 2048
    $region97: #{forward.1} parent=1 // pred_fallthru
      _
    %v154 = vld [vmem:[%s0] sm:$0xff]
    %v155 = vld [vmem:[#allocation4] sm:$0xff]
    %v156 = vld [vmem:[#allocation4 + $0x8] sm:$0xff]
    %v157 = vld [vmem:[#allocation4 + $0x10] sm:$0xff]
    %v158 = vld [vmem:[#allocation4 + $0x18] sm:$0xf]
    %v159 = vld [vmem:[#allocation4 + $0x1c] sm:$0xff]
    %v160 = vld [vmem:[#allocation4 + $0x24] sm:$0xff]
    %v161 = vld [vmem:[#allocation4 + $0x2c] sm:$0xff]
    %v162 = vld [vmem:[#allocation4 + $0x34] sm:$0xf]
    %v163 = vld [vmem:[#allocation4 + $0x38] sm:$0xff]
    %v164 = vld [vmem:[#allocation4 + $0x40] sm:$0xff]
    %v165 = vld [vmem:[#allocation4 + $0x48] sm:$0xff]
    %v166 = vld [vmem:[#allocation4 + $0x50] sm:$0xf]
    %v167 = vld [vmem:[#allocation4 + $0x54] sm:$0xff]
    %v168 = vld [vmem:[#allocation4 + $0x5c] sm:$0xff]
    %v169 = vld [vmem:[#allocation4 + $0x64] sm:$0xff]
    %v170 = vld [vmem:[#allocation4 + $0x6c] sm:$0xf]
    %v171 = vld [vmem:[#allocation4 + $0x70] sm:$0xff]
    %v172 = vld [vmem:[#allocation4 + $0x78] sm:$0xff]
    %v173 = vld [vmem:[#allocation4 + $0x80] sm:$0xff]
    %v174 = vld [vmem:[#allocation4 + $0x88] sm:$0xf]
    %v175 = vld [vmem:[#allocation4 + $0x8c] sm:$0xff]
    %v176 = vld [vmem:[#allocation4 + $0x94] sm:$0xff]
    %v177 = vld [vmem:[#allocation4 + $0x9c] sm:$0xff]
    %v178 = vld [vmem:[#allocation4 + $0xa4] sm:$0xf]
    %v179 = vld [vmem:[#allocation4 + $0xa8] sm:$0xff]
    %v180 = vld [vmem:[#allocation4 + $0xb0] sm:$0xff]
    %v181 = vld [vmem:[#allocation4 + $0xb8] sm:$0xff]
    %v182 = vld [vmem:[#allocation4 + $0xc0] sm:$0xf]
    %v183 = vld [vmem:[#allocation4 + $0xc4] sm:$0xff]
    %v184 = vld [vmem:[#allocation4 + $0xcc] sm:$0xff]
    %v185 = vld [vmem:[#allocation4 + $0xd4] sm:$0xff]
    %v186 = vld [vmem:[#allocation4 + $0xdc] sm:$0xf]
    %v187 = vld [vmem:[#allocation4 + $0xe0] sm:$0xff]
    %v188 = vld [vmem:[#allocation4 + $0xe8] sm:$0xff]
    %v189 = vld [vmem:[#allocation4 + $0xf0] sm:$0xff]
    %v190 = vld [vmem:[#allocation4 + $0xf8] sm:$0xf]
    %v191 = vld [vmem:[#allocation4 + $0xfc] sm:$0xff]
    %v192 = vld [vmem:[#allocation4 + $0x104] sm:$0xff]
    %v193 = vld [vmem:[#allocation4 + $0x10c] sm:$0xff]
    %v194 = vld [vmem:[#allocation4 + $0x114] sm:$0xf]
    %v195 = vld [vmem:[#allocation4 + $0x118] sm:$0xff]
    %v196 = vld [vmem:[#allocation4 + $0x120] sm:$0xff]
    %v197 = vld [vmem:[#allocation4 + $0x128] sm:$0xff]
    %v198 = vld [vmem:[#allocation4 + $0x130] sm:$0xf]
    %v199 = vld [vmem:[#allocation4 + $0x134] sm:$0xff]
    %v200 = vld [vmem:[#allocation4 + $0x13c] sm:$0xff]
    %v201 = vld [vmem:[#allocation4 + $0x144] sm:$0xff]
    %v202 = vld [vmem:[#allocation4 + $0x14c] sm:$0xf]
    %v203 = vld [vmem:[#allocation4 + $0x150] sm:$0xff]
    %v204 = vld [vmem:[#allocation4 + $0x158] sm:$0xff]
    %v205 = vld [vmem:[#allocation4 + $0x160] sm:$0xff]
    %v206 = vld [vmem:[#allocation4 + $0x168] sm:$0xf]
    %v207 = vld [vmem:[#allocation4 + $0x16c] sm:$0xff]
    %v208 = vld [vmem:[#allocation4 + $0x174] sm:$0xff]
    %v209 = vld [vmem:[#allocation4 + $0x17c] sm:$0xff]
    %v210 = vld [vmem:[#allocation4 + $0x184] sm:$0xf]
    %v211 = vld [vmem:[#allocation4 + $0x188] sm:$0xff]
    %v212 = vld [vmem:[#allocation4 + $0x190] sm:$0xff]
    %v213 = vld [vmem:[#allocation4 + $0x198] sm:$0xff]
    %v214 = vld [vmem:[#allocation4 + $0x1a0] sm:$0xf]
    %v215 = vld [vmem:[#allocation4 + $0x1a4] sm:$0xff]
    %v216 = vld [vmem:[#allocation4 + $0x1ac] sm:$0xff]
    %v217 = vld [vmem:[#allocation4 + $0x1b4] sm:$0xff]
    %v218 = vld [vmem:[#allocation4 + $0x1bc] sm:$0xf]
    %v219 = vunpack.c.l.bf16 %v155
    %v220 = vunpack.c.h.bf16 %v155
    %v221 = vunpack.c.l.bf16 %v156
    %v222 = vunpack.c.h.bf16 %v156
    %v223 = vunpack.c.l.bf16 %v157
    %v224 = vunpack.c.h.bf16 %v157
    %v225 = vunpack.c.l.bf16 %v158
    %v226 = vunpack.c.l.bf16 %v159
    %v227 = vunpack.c.h.bf16 %v159
    %v228 = vunpack.c.l.bf16 %v160
    %v229 = vunpack.c.h.bf16 %v160
    %v230 = vunpack.c.l.bf16 %v161
    %v231 = vunpack.c.h.bf16 %v161
    %v232 = vunpack.c.l.bf16 %v162
    %v233 = vunpack.c.l.bf16 %v163
    %v234 = vunpack.c.h.bf16 %v163
    %v235 = vunpack.c.l.bf16 %v164
    %v236 = vunpack.c.h.bf16 %v164
    %v237 = vunpack.c.l.bf16 %v165
    %v238 = vunpack.c.h.bf16 %v165
    %v239 = vunpack.c.l.bf16 %v166
    %v240 = vunpack.c.l.bf16 %v167
    %v241 = vunpack.c.h.bf16 %v167
    %v242 = vunpack.c.l.bf16 %v168
    %v243 = vunpack.c.h.bf16 %v168
    %v244 = vunpack.c.l.bf16 %v169
    %v245 = vunpack.c.h.bf16 %v169
    %v246 = vunpack.c.l.bf16 %v170
    %v247 = vunpack.c.l.bf16 %v171
    %v248 = vunpack.c.h.bf16 %v171
    %v249 = vunpack.c.l.bf16 %v172
    %v250 = vunpack.c.h.bf16 %v172
    %v251 = vunpack.c.l.bf16 %v173
    %v252 = vunpack.c.h.bf16 %v173
    %v253 = vunpack.c.l.bf16 %v174
    %v254 = vunpack.c.l.bf16 %v175
    %v255 = vunpack.c.h.bf16 %v175
    %v256 = vunpack.c.l.bf16 %v176
    %v257 = vunpack.c.h.bf16 %v176
    %v258 = vunpack.c.l.bf16 %v177
    %v259 = vunpack.c.h.bf16 %v177
    %v260 = vunpack.c.l.bf16 %v178
    %v261 = vunpack.c.l.bf16 %v179
    %v262 = vunpack.c.h.bf16 %v179
    %v263 = vunpack.c.l.bf16 %v180
    %v264 = vunpack.c.h.bf16 %v180
    %v265 = vunpack.c.l.bf16 %v181
    %v266 = vunpack.c.h.bf16 %v181
    %v267 = vunpack.c.l.bf16 %v182
    %v268 = vunpack.c.l.bf16 %v183
    %v269 = vunpack.c.h.bf16 %v183
    %v270 = vunpack.c.l.bf16 %v184
    %v271 = vunpack.c.h.bf16 %v184
    %v272 = vunpack.c.l.bf16 %v185
    %v273 = vunpack.c.h.bf16 %v185
    %v274 = vunpack.c.l.bf16 %v186
    %v275 = vunpack.c.l.bf16 %v187
    %v276 = vunpack.c.h.bf16 %v187
    %v277 = vunpack.c.l.bf16 %v188
    %v278 = vunpack.c.h.bf16 %v188
    %v279 = vunpack.c.l.bf16 %v189
    %v280 = vunpack.c.h.bf16 %v189
    %v281 = vunpack.c.l.bf16 %v190
    %v282 = vunpack.c.l.bf16 %v191
    %v283 = vunpack.c.h.bf16 %v191
    %v284 = vunpack.c.l.bf16 %v192
    %v285 = vunpack.c.h.bf16 %v192
    %v286 = vunpack.c.l.bf16 %v193
    %v287 = vunpack.c.h.bf16 %v193
    %v288 = vunpack.c.l.bf16 %v194
    %v289 = vunpack.c.l.bf16 %v195
    %v290 = vunpack.c.h.bf16 %v195
    %v291 = vunpack.c.l.bf16 %v196
    %v292 = vunpack.c.h.bf16 %v196
    %v293 = vunpack.c.l.bf16 %v197
    %v294 = vunpack.c.h.bf16 %v197
    %v295 = vunpack.c.l.bf16 %v198
    %v296 = vunpack.c.l.bf16 %v199
    %v297 = vunpack.c.h.bf16 %v199
    %v298 = vunpack.c.l.bf16 %v200
    %v299 = vunpack.c.h.bf16 %v200
    %v300 = vunpack.c.l.bf16 %v201
    %v301 = vunpack.c.h.bf16 %v201
    %v302 = vunpack.c.l.bf16 %v202
    %v303 = vunpack.c.l.bf16 %v203
    %v304 = vunpack.c.h.bf16 %v203
    %v305 = vunpack.c.l.bf16 %v204
    %v306 = vunpack.c.h.bf16 %v204
    %v307 = vunpack.c.l.bf16 %v205
    %v308 = vunpack.c.h.bf16 %v205
    %v309 = vunpack.c.l.bf16 %v206
    %v310 = vunpack.c.l.bf16 %v207
    %v311 = vunpack.c.h.bf16 %v207
    %v312 = vunpack.c.l.bf16 %v208
    %v313 = vunpack.c.h.bf16 %v208
    %v314 = vunpack.c.l.bf16 %v209
    %v315 = vunpack.c.h.bf16 %v209
    %v316 = vunpack.c.l.bf16 %v210
    %v317 = vunpack.c.l.bf16 %v211
    %v318 = vunpack.c.h.bf16 %v211
    %v319 = vunpack.c.l.bf16 %v212
    %v320 = vunpack.c.h.bf16 %v212
    %v321 = vunpack.c.l.bf16 %v213
    %v322 = vunpack.c.h.bf16 %v213
    %v323 = vunpack.c.l.bf16 %v214
    %v324 = vunpack.c.l.bf16 %v215
    %v325 = vunpack.c.h.bf16 %v215
    %v326 = vunpack.c.l.bf16 %v216
    %v327 = vunpack.c.h.bf16 %v216
    %v328 = vunpack.c.l.bf16 %v217
    %v329 = vunpack.c.h.bf16 %v217
    %v330 = vunpack.c.l.bf16 %v218
    %v331 = vld [vmem:[%s2] sm:$0xff]
    %v333 = vlaneseq
    %v334 = vshrl.u32 %v333, 7
    %v335 = vsub.s32 0, %v334
    %v336 = vrot.slane %v331, %v335
    %v337 = vlaneseq
    %v338 = vshrl.u32 %v337, 7
    %v339 = vsub.s32 1, %v338
    %v340 = vrot.slane %v331, %v339
    %v341 = vlaneseq
    %v342 = vshrl.u32 %v341, 7
    %v343 = vsub.s32 2, %v342
    %v344 = vrot.slane %v331, %v343
    %v345 = vlaneseq
    %v346 = vshrl.u32 %v345, 7
    %v347 = vsub.s32 3, %v346
    %v348 = vrot.slane %v331, %v347
    %v349 = vlaneseq
    %v350 = vshrl.u32 %v349, 7
    %v351 = vsub.s32 4, %v350
    %v352 = vrot.slane %v331, %v351
    %v353 = vlaneseq
    %v354 = vshrl.u32 %v353, 7
    %v355 = vsub.s32 5, %v354
    %v356 = vrot.slane %v331, %v355
    %v357 = vlaneseq
    %v358 = vshrl.u32 %v357, 7
    %v359 = vsub.s32 6, %v358
    %v360 = vrot.slane %v331, %v359
    %368 = vmatprep.subr.mxu0 %v325
    %369 = vmatpush1.msra.mxu0 %v324
    %370 = vmatprep.subr.mxu0 %v318
    %371 = vmatpush1.msra.mxu0 %v317
    %372 = vmatprep.subr.mxu0 %v311
    %373 = vmatpush1.msra.mxu0 %v310
    %374 = vmatprep.subr.mxu0 %v304
    %375 = vmatpush1.msra.mxu0 %v303
    %376 = vmatprep.subr.mxu0 %v297
    %377 = vmatpush1.msra.mxu0 %v296
    %378 = vmatprep.subr.mxu0 %v290
    %379 = vmatpush1.msra.mxu0 %v289
    %380 = vmatprep.subr.mxu0 %v283
    %381 = vmatpush1.msra.mxu0 %v282
    %382 = vmatprep.subr.mxu0 %v276
    %383 = vmatpush1.msra.mxu0 %v275
    %384 = vmatprep.subr.mxu0 %v269
    %385 = vmatpush1.msra.mxu0 %v268
    %386 = vmatprep.subr.mxu0 %v262
    %387 = vmatpush1.msra.mxu0 %v261
    %388 = vmatprep.subr.mxu0 %v255
    %389 = vmatpush1.msra.mxu0 %v254
    %390 = vmatprep.subr.mxu0 %v248
    %391 = vmatpush1.msra.mxu0 %v247
    %392 = vmatprep.subr.mxu0 %v241
    %393 = vmatpush1.msra.mxu0 %v240
    %394 = vmatprep.subr.mxu0 %v234
    %395 = vmatpush1.msra.mxu0 %v233
    %396 = vmatprep.subr.mxu0 %v227
    %397 = vmatpush1.msra.mxu0 %v226
    %398 = vmatprep.subr.mxu0 %v220
    %399 = vmatpush1.msra.mxu0 %v219
    %400 = vmatprep.subr.mxu0 0.0
    %401 = vmatpush2.msra.mxu0 0.0
    %402 = vmatprep.subr.mxu0 0.0
    %403 = vmatpush2.msra.mxu0 0.0
    %404 = vmatprep.subr.mxu0 0.0
    %405 = vmatpush2.msra.mxu0 0.0
    %406 = vmatprep.subr.mxu0 0.0
    %407 = vmatpush2.msra.mxu0 0.0
    %408 = vmatprep.subr.mxu0 0.0
    %409 = vmatpush2.msra.mxu0 0.0
    %410 = vmatprep.subr.mxu0 0.0
    %411 = vmatpush2.msra.mxu0 0.0
    %412 = vmatprep.subr.mxu0 0.0
    %413 = vmatpush2.msra.mxu0 0.0
    %414 = vmatprep.subr.mxu0 0.0
    %415 = vmatpush2.msra.mxu0 0.0
    %416 = vmatprep.subr.mxu0 0.0
    %417 = vmatpush2.msra.mxu0 0.0
    %418 = vmatprep.subr.mxu0 0.0
    %419 = vmatpush2.msra.mxu0 0.0
    %420 = vmatprep.subr.mxu0 0.0
    %421 = vmatpush2.msra.mxu0 0.0
    %422 = vmatprep.subr.mxu0 0.0
    %423 = vmatpush2.msra.mxu0 0.0
    %424 = vmatprep.subr.mxu0 0.0
    %425 = vmatpush2.msra.mxu0 0.0
    %426 = vmatprep.subr.mxu0 0.0
    %427 = vmatpush2.msra.mxu0 0.0
    %428 = vmatprep.subr.mxu0 0.0
    %429 = vmatpush2.msra.mxu0 0.0
    %430 = vmatprep.subr.mxu0 0.0
    %431 = vmatpush2.msra.mxu0 0.0
    %432 = vmatprep.mubr.f32.mxu0 0.0
    %433 = vmatmul.mubr.f32.gmra.mxu0 %v154
    %v434 = vpop.f32.mrf.mxu0
    %v435 = vadd.f32 %v336, %v434
    %v436 = vpop.f32.mrf.mxu0
    %v437 = vadd.f32 %v340, %v436
    %438 = vdwg.mxu0
    %439 = vmatprep.subr.mxu0 %v327
    %440 = vmatpush1.msra.mxu0 %v326
    %441 = vmatprep.subr.mxu0 %v320
    %442 = vmatpush1.msra.mxu0 %v319
    %443 = vmatprep.subr.mxu0 %v313
    %444 = vmatpush1.msra.mxu0 %v312
    %445 = vmatprep.subr.mxu0 %v306
    %446 = vmatpush1.msra.mxu0 %v305
    %447 = vmatprep.subr.mxu0 %v299
    %448 = vmatpush1.msra.mxu0 %v298
    %449 = vmatprep.subr.mxu0 %v292
    %450 = vmatpush1.msra.mxu0 %v291
    %451 = vmatprep.subr.mxu0 %v285
    %452 = vmatpush1.msra.mxu0 %v284
    %453 = vmatprep.subr.mxu0 %v278
    %454 = vmatpush1.msra.mxu0 %v277
    %455 = vmatprep.subr.mxu0 %v271
    %456 = vmatpush1.msra.mxu0 %v270
    %457 = vmatprep.subr.mxu0 %v264
    %458 = vmatpush1.msra.mxu0 %v263
    %459 = vmatprep.subr.mxu0 %v257
    %460 = vmatpush1.msra.mxu0 %v256
    %461 = vmatprep.subr.mxu0 %v250
    %462 = vmatpush1.msra.mxu0 %v249
    %463 = vmatprep.subr.mxu0 %v243
    %464 = vmatpush1.msra.mxu0 %v242
    %465 = vmatprep.subr.mxu0 %v236
    %466 = vmatpush1.msra.mxu0 %v235
    %467 = vmatprep.subr.mxu0 %v229
    %468 = vmatpush1.msra.mxu0 %v228
    %469 = vmatprep.subr.mxu0 %v222
    %470 = vmatpush1.msra.mxu0 %v221
    %471 = vmatprep.subr.mxu0 0.0
    %472 = vmatpush2.msra.mxu0 0.0
    %473 = vmatprep.subr.mxu0 0.0
    %474 = vmatpush2.msra.mxu0 0.0
    %475 = vmatprep.subr.mxu0 0.0
    %476 = vmatpush2.msra.mxu0 0.0
    %477 = vmatprep.subr.mxu0 0.0
    %478 = vmatpush2.msra.mxu0 0.0
    %479 = vmatprep.subr.mxu0 0.0
    %480 = vmatpush2.msra.mxu0 0.0
    %481 = vmatprep.subr.mxu0 0.0
    %482 = vmatpush2.msra.mxu0 0.0
    %483 = vmatprep.subr.mxu0 0.0
    %484 = vmatpush2.msra.mxu0 0.0
    %485 = vmatprep.subr.mxu0 0.0
    %486 = vmatpush2.msra.mxu0 0.0
    %487 = vmatprep.subr.mxu0 0.0
    %488 = vmatpush2.msra.mxu0 0.0
    %489 = vmatprep.subr.mxu0 0.0
    %490 = vmatpush2.msra.mxu0 0.0
    %491 = vmatprep.subr.mxu0 0.0
    %492 = vmatpush2.msra.mxu0 0.0
    %493 = vmatprep.subr.mxu0 0.0
    %494 = vmatpush2.msra.mxu0 0.0
    %495 = vmatprep.subr.mxu0 0.0
    %496 = vmatpush2.msra.mxu0 0.0
    %497 = vmatprep.subr.mxu0 0.0
    %498 = vmatpush2.msra.mxu0 0.0
    %499 = vmatprep.subr.mxu0 0.0
    %500 = vmatpush2.msra.mxu0 0.0
    %501 = vmatprep.subr.mxu0 0.0
    %502 = vmatpush2.msra.mxu0 0.0
    %503 = vmatprep.mubr.f32.mxu0 0.0
    %504 = vmatmul.mubr.f32.gmra.mxu0 %v154
    %v505 = vpop.f32.mrf.mxu0
    %v506 = vadd.f32 %v344, %v505
    %v507 = vpop.f32.mrf.mxu0
    %v508 = vadd.f32 %v348, %v507
    %509 = vdwg.mxu0
    %510 = vmatprep.subr.mxu0 %v329
    %511 = vmatpush1.msra.mxu0 %v328
    %512 = vmatprep.subr.mxu0 %v322
    %513 = vmatpush1.msra.mxu0 %v321
    %514 = vmatprep.subr.mxu0 %v315
    %515 = vmatpush1.msra.mxu0 %v314
    %516 = vmatprep.subr.mxu0 %v308
    %517 = vmatpush1.msra.mxu0 %v307
    %518 = vmatprep.subr.mxu0 %v301
    %519 = vmatpush1.msra.mxu0 %v300
    %520 = vmatprep.subr.mxu0 %v294
    %521 = vmatpush1.msra.mxu0 %v293
    %522 = vmatprep.subr.mxu0 %v287
    %523 = vmatpush1.msra.mxu0 %v286
    %524 = vmatprep.subr.mxu0 %v280
    %525 = vmatpush1.msra.mxu0 %v279
    %526 = vmatprep.subr.mxu0 %v273
    %527 = vmatpush1.msra.mxu0 %v272
    %528 = vmatprep.subr.mxu0 %v266
    %529 = vmatpush1.msra.mxu0 %v265
    %530 = vmatprep.subr.mxu0 %v259
    %531 = vmatpush1.msra.mxu0 %v258
    %532 = vmatprep.subr.mxu0 %v252
    %533 = vmatpush1.msra.mxu0 %v251
    %534 = vmatprep.subr.mxu0 %v245
    %535 = vmatpush1.msra.mxu0 %v244
    %536 = vmatprep.subr.mxu0 %v238
    %537 = vmatpush1.msra.mxu0 %v237
    %538 = vmatprep.subr.mxu0 %v231
    %539 = vmatpush1.msra.mxu0 %v230
    %540 = vmatprep.subr.mxu0 %v224
    %541 = vmatpush1.msra.mxu0 %v223
    %542 = vmatprep.subr.mxu0 0.0
    %543 = vmatpush2.msra.mxu0 0.0
    %544 = vmatprep.subr.mxu0 0.0
    %545 = vmatpush2.msra.mxu0 0.0
    %546 = vmatprep.subr.mxu0 0.0
    %547 = vmatpush2.msra.mxu0 0.0
    %548 = vmatprep.subr.mxu0 0.0
    %549 = vmatpush2.msra.mxu0 0.0
    %550 = vmatprep.subr.mxu0 0.0
    %551 = vmatpush2.msra.mxu0 0.0
    %552 = vmatprep.subr.mxu0 0.0
    %553 = vmatpush2.msra.mxu0 0.0
    %554 = vmatprep.subr.mxu0 0.0
    %555 = vmatpush2.msra.mxu0 0.0
    %556 = vmatprep.subr.mxu0 0.0
    %557 = vmatpush2.msra.mxu0 0.0
    %558 = vmatprep.subr.mxu0 0.0
    %559 = vmatpush2.msra.mxu0 0.0
    %560 = vmatprep.subr.mxu0 0.0
    %561 = vmatpush2.msra.mxu0 0.0
    %562 = vmatprep.subr.mxu0 0.0
    %563 = vmatpush2.msra.mxu0 0.0
    %564 = vmatprep.subr.mxu0 0.0
    %565 = vmatpush2.msra.mxu0 0.0
    %566 = vmatprep.subr.mxu0 0.0
    %567 = vmatpush2.msra.mxu0 0.0
    %568 = vmatprep.subr.mxu0 0.0
    %569 = vmatpush2.msra.mxu0 0.0
    %570 = vmatprep.subr.mxu0 0.0
    %571 = vmatpush2.msra.mxu0 0.0
    %572 = vmatprep.subr.mxu0 0.0
    %573 = vmatpush2.msra.mxu0 0.0
    %574 = vmatprep.mubr.f32.mxu0 0.0
    %575 = vmatmul.mubr.f32.gmra.mxu0 %v154
    %v576 = vpop.f32.mrf.mxu0
    %v577 = vadd.f32 %v352, %v576
    %v578 = vpop.f32.mrf.mxu0
    %v579 = vadd.f32 %v356, %v578
    %580 = vdwg.mxu0
    %581 = vmatprep.subr.mxu0 0.0
    %582 = vmatpush1.msra.mxu0 %v330
    %583 = vmatprep.subr.mxu0 0.0
    %584 = vmatpush1.msra.mxu0 %v323
    %585 = vmatprep.subr.mxu0 0.0
    %586 = vmatpush1.msra.mxu0 %v316
    %587 = vmatprep.subr.mxu0 0.0
    %588 = vmatpush1.msra.mxu0 %v309
    %589 = vmatprep.subr.mxu0 0.0
    %590 = vmatpush1.msra.mxu0 %v302
    %591 = vmatprep.subr.mxu0 0.0
    %592 = vmatpush1.msra.mxu0 %v295
    %593 = vmatprep.subr.mxu0 0.0
    %594 = vmatpush1.msra.mxu0 %v288
    %595 = vmatprep.subr.mxu0 0.0
    %596 = vmatpush1.msra.mxu0 %v281
    %597 = vmatprep.subr.mxu0 0.0
    %598 = vmatpush1.msra.mxu0 %v274
    %599 = vmatprep.subr.mxu0 0.0
    %600 = vmatpush1.msra.mxu0 %v267
    %601 = vmatprep.subr.mxu0 0.0
    %602 = vmatpush1.msra.mxu0 %v260
    %603 = vmatprep.subr.mxu0 0.0
    %604 = vmatpush1.msra.mxu0 %v253
    %605 = vmatprep.subr.mxu0 0.0
    %606 = vmatpush1.msra.mxu0 %v246
    %607 = vmatprep.subr.mxu0 0.0
    %608 = vmatpush1.msra.mxu0 %v239
    %609 = vmatprep.subr.mxu0 0.0
    %610 = vmatpush1.msra.mxu0 %v232
    %611 = vmatprep.subr.mxu0 0.0
    %612 = vmatpush1.msra.mxu0 %v225
    %613 = vmatprep.subr.mxu0 0.0
    %614 = vmatpush2.msra.mxu0 0.0
    %615 = vmatprep.subr.mxu0 0.0
    %616 = vmatpush2.msra.mxu0 0.0
    %617 = vmatprep.subr.mxu0 0.0
    %618 = vmatpush2.msra.mxu0 0.0
    %619 = vmatprep.subr.mxu0 0.0
    %620 = vmatpush2.msra.mxu0 0.0
    %621 = vmatprep.subr.mxu0 0.0
    %622 = vmatpush2.msra.mxu0 0.0
    %623 = vmatprep.subr.mxu0 0.0
    %624 = vmatpush2.msra.mxu0 0.0
    %625 = vmatprep.subr.mxu0 0.0
    %626 = vmatpush2.msra.mxu0 0.0
    %627 = vmatprep.subr.mxu0 0.0
    %628 = vmatpush2.msra.mxu0 0.0
    %629 = vmatprep.subr.mxu0 0.0
    %630 = vmatpush2.msra.mxu0 0.0
    %631 = vmatprep.subr.mxu0 0.0
    %632 = vmatpush2.msra.mxu0 0.0
    %633 = vmatprep.subr.mxu0 0.0
    %634 = vmatpush2.msra.mxu0 0.0
    %635 = vmatprep.subr.mxu0 0.0
    %636 = vmatpush2.msra.mxu0 0.0
    %637 = vmatprep.subr.mxu0 0.0
    %638 = vmatpush2.msra.mxu0 0.0
    %639 = vmatprep.subr.mxu0 0.0
    %640 = vmatpush2.msra.mxu0 0.0
    %641 = vmatprep.subr.mxu0 0.0
    %642 = vmatpush2.msra.mxu0 0.0
    %643 = vmatprep.subr.mxu0 0.0
    %644 = vmatpush2.msra.mxu0 0.0
    %645 = vmatprep.mubr.f32.mxu0 0.0
    %646 = vmatmul.mubr.f32.gmra.mxu0 %v154
    %v647 = vpop.f32.mrf.mxu0
    %v648 = vadd.f32 %v360, %v647
    %v649 = vpop.f32.mrf.mxu0
    %650 = vdwg.mxu0
    %651 = vst [vmem:[#allocation2] sm:$0xff] %v435
    %652 = vst [vmem:[#allocation2 + $0x8] sm:$0xff] %v437
    %653 = vst [vmem:[#allocation2 + $0x10] sm:$0xff] %v506
    %654 = vst [vmem:[#allocation2 + $0x18] sm:$0xff] %v508
    %655 = vst [vmem:[#allocation2 + $0x20] sm:$0xff] %v577
    %656 = vst [vmem:[#allocation2 + $0x28] sm:$0xff] %v579
    %657 = vst [vmem:[#allocation2 + $0x30] sm:$0xff] %v648
    %v658 = vld [vmem:[#allocation2] sm:$0xff]
    %v659 = vmax.f32 %v658, 0.0
    %v660 = vld [vmem:[#allocation6] sm:$0xff]
    %v661 = vld [vmem:[#allocation6 + $0x8] sm:$0xff]
    %v662 = vld [vmem:[#allocation6 + $0x10] sm:$0xff]
    %v663 = vld [vmem:[#allocation6 + $0x18] sm:$0xff]
    %v664 = vld [vmem:[#allocation6 + $0x20] sm:$0xff]
    %v665 = vld [vmem:[#allocation6 + $0x28] sm:$0xff]
    %v666 = vld [vmem:[#allocation6 + $0x30] sm:$0xff]
    %v667 = vld [vmem:[#allocation6 + $0x38] sm:$0xff]
    %v668 = vld [vmem:[#allocation6 + $0x40] sm:$0xff]
    %v669 = vld [vmem:[#allocation6 + $0x48] sm:$0xff]
    %v670 = vld [vmem:[#allocation6 + $0x50] sm:$0xff]
    %v671 = vld [vmem:[#allocation6 + $0x58] sm:$0xff]
    %v672 = vld [vmem:[#allocation6 + $0x60] sm:$0xff]
    %v673 = vld [vmem:[#allocation6 + $0x68] sm:$0xff]
    %v674 = vld [vmem:[#allocation6 + $0x70] sm:$0xff]
    %v675 = vld [vmem:[#allocation6 + $0x78] sm:$0xff]
    %v676 = vunpack.c.l.bf16 %v660
    %v677 = vunpack.c.h.bf16 %v660
    %v678 = vunpack.c.l.bf16 %v661
    %v679 = vunpack.c.h.bf16 %v661
    %v680 = vunpack.c.l.bf16 %v662
    %v681 = vunpack.c.h.bf16 %v662
    %v682 = vunpack.c.l.bf16 %v663
    %v683 = vunpack.c.h.bf16 %v663
    %v684 = vunpack.c.l.bf16 %v664
    %v685 = vunpack.c.h.bf16 %v664
    %v686 = vunpack.c.l.bf16 %v665
    %v687 = vunpack.c.h.bf16 %v665
    %v688 = vunpack.c.l.bf16 %v666
    %v689 = vunpack.c.h.bf16 %v666
    %v690 = vunpack.c.l.bf16 %v667
    %v691 = vunpack.c.h.bf16 %v667
    %v692 = vunpack.c.l.bf16 %v668
    %v693 = vunpack.c.h.bf16 %v668
    %v694 = vunpack.c.l.bf16 %v669
    %v695 = vunpack.c.h.bf16 %v669
    %v696 = vunpack.c.l.bf16 %v670
    %v697 = vunpack.c.h.bf16 %v670
    %v698 = vunpack.c.l.bf16 %v671
    %v699 = vunpack.c.h.bf16 %v671
    %v700 = vunpack.c.l.bf16 %v672
    %v701 = vunpack.c.h.bf16 %v672
    %v702 = vunpack.c.l.bf16 %v673
    %v703 = vunpack.c.h.bf16 %v673
    %v704 = vunpack.c.l.bf16 %v674
    %v705 = vunpack.c.h.bf16 %v674
    %v706 = vunpack.c.l.bf16 %v675
    %v707 = vunpack.c.h.bf16 %v675
    %v708 = vld [vmem:[%s4] sm:$0x3]
    %v710 = vlaneseq
    %v711 = vshrl.u32 %v710, 7
    %v712 = vsub.s32 0, %v711
    %v713 = vrot.slane %v708, %v712
    %v714 = vlaneseq
    %v715 = vshrl.u32 %v714, 7
    %v716 = vsub.s32 1, %v715
    %v717 = vrot.slane %v708, %v716
    %720 = vmatprep.subr.mxu0 %v707
    %721 = vmatpush1.msra.mxu0 %v706
    %722 = vmatprep.subr.mxu0 %v705
    %723 = vmatpush1.msra.mxu0 %v704
    %724 = vmatprep.subr.mxu0 %v703
    %725 = vmatpush1.msra.mxu0 %v702
    %726 = vmatprep.subr.mxu0 %v701
    %727 = vmatpush1.msra.mxu0 %v700
    %728 = vmatprep.subr.mxu0 %v699
    %729 = vmatpush1.msra.mxu0 %v698
    %730 = vmatprep.subr.mxu0 %v697
    %731 = vmatpush1.msra.mxu0 %v696
    %732 = vmatprep.subr.mxu0 %v695
    %733 = vmatpush1.msra.mxu0 %v694
    %734 = vmatprep.subr.mxu0 %v693
    %735 = vmatpush1.msra.mxu0 %v692
    %736 = vmatprep.subr.mxu0 %v691
    %737 = vmatpush1.msra.mxu0 %v690
    %738 = vmatprep.subr.mxu0 %v689
    %739 = vmatpush1.msra.mxu0 %v688
    %740 = vmatprep.subr.mxu0 %v687
    %741 = vmatpush1.msra.mxu0 %v686
    %742 = vmatprep.subr.mxu0 %v685
    %743 = vmatpush1.msra.mxu0 %v684
    %744 = vmatprep.subr.mxu0 %v683
    %745 = vmatpush1.msra.mxu0 %v682
    %746 = vmatprep.subr.mxu0 %v681
    %747 = vmatpush1.msra.mxu0 %v680
    %748 = vmatprep.subr.mxu0 %v679
    %749 = vmatpush1.msra.mxu0 %v678
    %750 = vmatprep.subr.mxu0 %v677
    %751 = vmatpush1.msra.mxu0 %v676
    %752 = vmatprep.subr.mxu0 0.0
    %753 = vmatpush2.msra.mxu0 0.0
    %754 = vmatprep.subr.mxu0 0.0
    %755 = vmatpush2.msra.mxu0 0.0
    %756 = vmatprep.subr.mxu0 0.0
    %757 = vmatpush2.msra.mxu0 0.0
    %758 = vmatprep.subr.mxu0 0.0
    %759 = vmatpush2.msra.mxu0 0.0
    %760 = vmatprep.subr.mxu0 0.0
    %761 = vmatpush2.msra.mxu0 0.0
    %762 = vmatprep.subr.mxu0 0.0
    %763 = vmatpush2.msra.mxu0 0.0
    %764 = vmatprep.subr.mxu0 0.0
    %765 = vmatpush2.msra.mxu0 0.0
    %766 = vmatprep.subr.mxu0 0.0
    %767 = vmatpush2.msra.mxu0 0.0
    %768 = vmatprep.subr.mxu0 0.0
    %769 = vmatpush2.msra.mxu0 0.0
    %770 = vmatprep.subr.mxu0 0.0
    %771 = vmatpush2.msra.mxu0 0.0
    %772 = vmatprep.subr.mxu0 0.0
    %773 = vmatpush2.msra.mxu0 0.0
    %774 = vmatprep.subr.mxu0 0.0
    %775 = vmatpush2.msra.mxu0 0.0
    %776 = vmatprep.subr.mxu0 0.0
    %777 = vmatpush2.msra.mxu0 0.0
    %778 = vmatprep.subr.mxu0 0.0
    %779 = vmatpush2.msra.mxu0 0.0
    %780 = vmatprep.subr.mxu0 0.0
    %781 = vmatpush2.msra.mxu0 0.0
    %782 = vmatprep.subr.mxu0 0.0
    %783 = vmatpush2.msra.mxu0 0.0
    %784 = vmatprep.mubr.f32.mxu0 0.0
    %785 = vmatmul.mubr.f32.gmra.mxu0 %v659
    %v786 = vpop.f32.mrf.mxu0
    %v787 = vadd.f32 %v713, %v786
    %v788 = vpop.f32.mrf.mxu0
    %v789 = vadd.f32 %v717, %v788
    %790 = vdwg.mxu0
    %791 = vst [vmem:[#allocation3] sm:$0xff] %v787
    %792 = vst [vmem:[#allocation3 + $0x8] sm:$0xff] %v789
    %v793 = vld [vmem:[#allocation2 + $0x8] sm:$0xff]
    %v794 = vmax.f32 %v793, 0.0
    %s795 = scalar_lea.vmem [#allocation6], 128
    %v796 = vld [vmem:[%s795] sm:$0xff]
    %v797 = vld [vmem:[%s795 + $0x8] sm:$0xff]
    %v798 = vld [vmem:[%s795 + $0x10] sm:$0xff]
    %v799 = vld [vmem:[%s795 + $0x18] sm:$0xff]
    %v800 = vld [vmem:[%s795 + $0x20] sm:$0xff]
    %v801 = vld [vmem:[%s795 + $0x28] sm:$0xff]
    %v802 = vld [vmem:[%s795 + $0x30] sm:$0xff]
    %v803 = vld [vmem:[%s795 + $0x38] sm:$0xff]
    %v804 = vld [vmem:[%s795 + $0x40] sm:$0xff]
    %v805 = vld [vmem:[%s795 + $0x48] sm:$0xff]
    %v806 = vld [vmem:[%s795 + $0x50] sm:$0xff]
    %v807 = vld [vmem:[%s795 + $0x58] sm:$0xff]
    %v808 = vld [vmem:[%s795 + $0x60] sm:$0xff]
    %v809 = vld [vmem:[%s795 + $0x68] sm:$0xff]
    %v810 = vld [vmem:[%s795 + $0x70] sm:$0xff]
    %v811 = vld [vmem:[%s795 + $0x78] sm:$0xff]
    %v812 = vunpack.c.l.bf16 %v796
    %v813 = vunpack.c.h.bf16 %v796
    %v814 = vunpack.c.l.bf16 %v797
    %v815 = vunpack.c.h.bf16 %v797
    %v816 = vunpack.c.l.bf16 %v798
    %v817 = vunpack.c.h.bf16 %v798
    %v818 = vunpack.c.l.bf16 %v799
    %v819 = vunpack.c.h.bf16 %v799
    %v820 = vunpack.c.l.bf16 %v800
    %v821 = vunpack.c.h.bf16 %v800
    %v822 = vunpack.c.l.bf16 %v801
    %v823 = vunpack.c.h.bf16 %v801
    %v824 = vunpack.c.l.bf16 %v802
    %v825 = vunpack.c.h.bf16 %v802
    %v826 = vunpack.c.l.bf16 %v803
    %v827 = vunpack.c.h.bf16 %v803
    %v828 = vunpack.c.l.bf16 %v804
    %v829 = vunpack.c.h.bf16 %v804
    %v830 = vunpack.c.l.bf16 %v805
    %v831 = vunpack.c.h.bf16 %v805
    %v832 = vunpack.c.l.bf16 %v806
    %v833 = vunpack.c.h.bf16 %v806
    %v834 = vunpack.c.l.bf16 %v807
    %v835 = vunpack.c.h.bf16 %v807
    %v836 = vunpack.c.l.bf16 %v808
    %v837 = vunpack.c.h.bf16 %v808
    %v838 = vunpack.c.l.bf16 %v809
    %v839 = vunpack.c.h.bf16 %v809
    %v840 = vunpack.c.l.bf16 %v810
    %v841 = vunpack.c.h.bf16 %v810
    %v842 = vunpack.c.l.bf16 %v811
    %v843 = vunpack.c.h.bf16 %v811
    %v844 = vld [vmem:[%s4 + $0x2] sm:$0x3]
    %v846 = vlaneseq
    %v847 = vshrl.u32 %v846, 7
    %v848 = vsub.s32 0, %v847
    %v849 = vrot.slane %v844, %v848
    %v850 = vlaneseq
    %v851 = vshrl.u32 %v850, 7
    %v852 = vsub.s32 1, %v851
    %v853 = vrot.slane %v844, %v852
    %856 = vmatprep.subr.mxu0 %v843
    %857 = vmatpush1.msra.mxu0 %v842
    %858 = vmatprep.subr.mxu0 %v841
    %859 = vmatpush1.msra.mxu0 %v840
    %860 = vmatprep.subr.mxu0 %v839
    %861 = vmatpush1.msra.mxu0 %v838
    %862 = vmatprep.subr.mxu0 %v837
    %863 = vmatpush1.msra.mxu0 %v836
    %864 = vmatprep.subr.mxu0 %v835
    %865 = vmatpush1.msra.mxu0 %v834
    %866 = vmatprep.subr.mxu0 %v833
    %867 = vmatpush1.msra.mxu0 %v832
    %868 = vmatprep.subr.mxu0 %v831
    %869 = vmatpush1.msra.mxu0 %v830
    %870 = vmatprep.subr.mxu0 %v829
    %871 = vmatpush1.msra.mxu0 %v828
    %872 = vmatprep.subr.mxu0 %v827
    %873 = vmatpush1.msra.mxu0 %v826
    %874 = vmatprep.subr.mxu0 %v825
    %875 = vmatpush1.msra.mxu0 %v824
    %876 = vmatprep.subr.mxu0 %v823
    %877 = vmatpush1.msra.mxu0 %v822
    %878 = vmatprep.subr.mxu0 %v821
    %879 = vmatpush1.msra.mxu0 %v820
    %880 = vmatprep.subr.mxu0 %v819
    %881 = vmatpush1.msra.mxu0 %v818
    %882 = vmatprep.subr.mxu0 %v817
    %883 = vmatpush1.msra.mxu0 %v816
    %884 = vmatprep.subr.mxu0 %v815
    %885 = vmatpush1.msra.mxu0 %v814
    %886 = vmatprep.subr.mxu0 %v813
    %887 = vmatpush1.msra.mxu0 %v812
    %888 = vmatprep.subr.mxu0 0.0
    %889 = vmatpush2.msra.mxu0 0.0
    %890 = vmatprep.subr.mxu0 0.0
    %891 = vmatpush2.msra.mxu0 0.0
    %892 = vmatprep.subr.mxu0 0.0
    %893 = vmatpush2.msra.mxu0 0.0
    %894 = vmatprep.subr.mxu0 0.0
    %895 = vmatpush2.msra.mxu0 0.0
    %896 = vmatprep.subr.mxu0 0.0
    %897 = vmatpush2.msra.mxu0 0.0
    %898 = vmatprep.subr.mxu0 0.0
    %899 = vmatpush2.msra.mxu0 0.0
    %900 = vmatprep.subr.mxu0 0.0
    %901 = vmatpush2.msra.mxu0 0.0
    %902 = vmatprep.subr.mxu0 0.0
    %903 = vmatpush2.msra.mxu0 0.0
    %904 = vmatprep.subr.mxu0 0.0
    %905 = vmatpush2.msra.mxu0 0.0
    %906 = vmatprep.subr.mxu0 0.0
    %907 = vmatpush2.msra.mxu0 0.0
    %908 = vmatprep.subr.mxu0 0.0
    %909 = vmatpush2.msra.mxu0 0.0
    %910 = vmatprep.subr.mxu0 0.0
    %911 = vmatpush2.msra.mxu0 0.0
    %912 = vmatprep.subr.mxu0 0.0
    %913 = vmatpush2.msra.mxu0 0.0
    %914 = vmatprep.subr.mxu0 0.0
    %915 = vmatpush2.msra.mxu0 0.0
    %916 = vmatprep.subr.mxu0 0.0
    %917 = vmatpush2.msra.mxu0 0.0
    %918 = vmatprep.subr.mxu0 0.0
    %919 = vmatpush2.msra.mxu0 0.0
    %920 = vmatprep.mubr.f32.mxu0 0.0
    %921 = vmatmul.mubr.f32.gmra.mxu0 %v794
    %v922 = vpop.f32.mrf.mxu0
    %v923 = vadd.f32 %v849, %v922
    %v924 = vpop.f32.mrf.mxu0
    %v925 = vadd.f32 %v853, %v924
    %926 = vdwg.mxu0
    %927 = vst [vmem:[#allocation3 + $0x10] sm:$0xff] %v923
    %928 = vst [vmem:[#allocation3 + $0x18] sm:$0xff] %v925
    %v929 = vld [vmem:[#allocation2 + $0x10] sm:$0xff]
    %v930 = vmax.f32 %v929, 0.0
    %s931 = scalar_lea.vmem [#allocation6], 256
    %v932 = vld [vmem:[%s931] sm:$0xff]
    %v933 = vld [vmem:[%s931 + $0x8] sm:$0xff]
    %v934 = vld [vmem:[%s931 + $0x10] sm:$0xff]
    %v935 = vld [vmem:[%s931 + $0x18] sm:$0xff]
    %v936 = vld [vmem:[%s931 + $0x20] sm:$0xff]
    %v937 = vld [vmem:[%s931 + $0x28] sm:$0xff]
    %v938 = vld [vmem:[%s931 + $0x30] sm:$0xff]
    %v939 = vld [vmem:[%s931 + $0x38] sm:$0xff]
    %v940 = vld [vmem:[%s931 + $0x40] sm:$0xff]
    %v941 = vld [vmem:[%s931 + $0x48] sm:$0xff]
    %v942 = vld [vmem:[%s931 + $0x50] sm:$0xff]
    %v943 = vld [vmem:[%s931 + $0x58] sm:$0xff]
    %v944 = vld [vmem:[%s931 + $0x60] sm:$0xff]
    %v945 = vld [vmem:[%s931 + $0x68] sm:$0xff]
    %v946 = vld [vmem:[%s931 + $0x70] sm:$0xff]
    %v947 = vld [vmem:[%s931 + $0x78] sm:$0xff]
    %v948 = vunpack.c.l.bf16 %v932
    %v949 = vunpack.c.h.bf16 %v932
    %v950 = vunpack.c.l.bf16 %v933
    %v951 = vunpack.c.h.bf16 %v933
    %v952 = vunpack.c.l.bf16 %v934
    %v953 = vunpack.c.h.bf16 %v934
    %v954 = vunpack.c.l.bf16 %v935
    %v955 = vunpack.c.h.bf16 %v935
    %v956 = vunpack.c.l.bf16 %v936
    %v957 = vunpack.c.h.bf16 %v936
    %v958 = vunpack.c.l.bf16 %v937
    %v959 = vunpack.c.h.bf16 %v937
    %v960 = vunpack.c.l.bf16 %v938
    %v961 = vunpack.c.h.bf16 %v938
    %v962 = vunpack.c.l.bf16 %v939
    %v963 = vunpack.c.h.bf16 %v939
    %v964 = vunpack.c.l.bf16 %v940
    %v965 = vunpack.c.h.bf16 %v940
    %v966 = vunpack.c.l.bf16 %v941
    %v967 = vunpack.c.h.bf16 %v941
    %v968 = vunpack.c.l.bf16 %v942
    %v969 = vunpack.c.h.bf16 %v942
    %v970 = vunpack.c.l.bf16 %v943
    %v971 = vunpack.c.h.bf16 %v943
    %v972 = vunpack.c.l.bf16 %v944
    %v973 = vunpack.c.h.bf16 %v944
    %v974 = vunpack.c.l.bf16 %v945
    %v975 = vunpack.c.h.bf16 %v945
    %v976 = vunpack.c.l.bf16 %v946
    %v977 = vunpack.c.h.bf16 %v946
    %v978 = vunpack.c.l.bf16 %v947
    %v979 = vunpack.c.h.bf16 %v947
    %v980 = vld [vmem:[%s4 + $0x4] sm:$0x3]
    %v982 = vlaneseq
    %v983 = vshrl.u32 %v982, 7
    %v984 = vsub.s32 0, %v983
    %v985 = vrot.slane %v980, %v984
    %v986 = vlaneseq
    %v987 = vshrl.u32 %v986, 7
    %v988 = vsub.s32 1, %v987
    %v989 = vrot.slane %v980, %v988
    %992 = vmatprep.subr.mxu0 %v979
    %993 = vmatpush1.msra.mxu0 %v978
    %994 = vmatprep.subr.mxu0 %v977
    %995 = vmatpush1.msra.mxu0 %v976
    %996 = vmatprep.subr.mxu0 %v975
    %997 = vmatpush1.msra.mxu0 %v974
    %998 = vmatprep.subr.mxu0 %v973
    %999 = vmatpush1.msra.mxu0 %v972
    %1000 = vmatprep.subr.mxu0 %v971
    %1001 = vmatpush1.msra.mxu0 %v970
    %1002 = vmatprep.subr.mxu0 %v969
    %1003 = vmatpush1.msra.mxu0 %v968
    %1004 = vmatprep.subr.mxu0 %v967
    %1005 = vmatpush1.msra.mxu0 %v966
    %1006 = vmatprep.subr.mxu0 %v965
    %1007 = vmatpush1.msra.mxu0 %v964
    %1008 = vmatprep.subr.mxu0 %v963
    %1009 = vmatpush1.msra.mxu0 %v962
    %1010 = vmatprep.subr.mxu0 %v961
    %1011 = vmatpush1.msra.mxu0 %v960
    %1012 = vmatprep.subr.mxu0 %v959
    %1013 = vmatpush1.msra.mxu0 %v958
    %1014 = vmatprep.subr.mxu0 %v957
    %1015 = vmatpush1.msra.mxu0 %v956
    %1016 = vmatprep.subr.mxu0 %v955
    %1017 = vmatpush1.msra.mxu0 %v954
    %1018 = vmatprep.subr.mxu0 %v953
    %1019 = vmatpush1.msra.mxu0 %v952
    %1020 = vmatprep.subr.mxu0 %v951
    %1021 = vmatpush1.msra.mxu0 %v950
    %1022 = vmatprep.subr.mxu0 %v949
    %1023 = vmatpush1.msra.mxu0 %v948
    %1024 = vmatprep.subr.mxu0 0.0
    %1025 = vmatpush2.msra.mxu0 0.0
    %1026 = vmatprep.subr.mxu0 0.0
    %1027 = vmatpush2.msra.mxu0 0.0
    %1028 = vmatprep.subr.mxu0 0.0
    %1029 = vmatpush2.msra.mxu0 0.0
    %1030 = vmatprep.subr.mxu0 0.0
    %1031 = vmatpush2.msra.mxu0 0.0
    %1032 = vmatprep.subr.mxu0 0.0
    %1033 = vmatpush2.msra.mxu0 0.0
    %1034 = vmatprep.subr.mxu0 0.0
    %1035 = vmatpush2.msra.mxu0 0.0
    %1036 = vmatprep.subr.mxu0 0.0
    %1037 = vmatpush2.msra.mxu0 0.0
    %1038 = vmatprep.subr.mxu0 0.0
    %1039 = vmatpush2.msra.mxu0 0.0
    %1040 = vmatprep.subr.mxu0 0.0
    %1041 = vmatpush2.msra.mxu0 0.0
    %1042 = vmatprep.subr.mxu0 0.0
    %1043 = vmatpush2.msra.mxu0 0.0
    %1044 = vmatprep.subr.mxu0 0.0
    %1045 = vmatpush2.msra.mxu0 0.0
    %1046 = vmatprep.subr.mxu0 0.0
    %1047 = vmatpush2.msra.mxu0 0.0
    %1048 = vmatprep.subr.mxu0 0.0
    %1049 = vmatpush2.msra.mxu0 0.0
    %1050 = vmatprep.subr.mxu0 0.0
    %1051 = vmatpush2.msra.mxu0 0.0
    %1052 = vmatprep.subr.mxu0 0.0
    %1053 = vmatpush2.msra.mxu0 0.0
    %1054 = vmatprep.subr.mxu0 0.0
    %1055 = vmatpush2.msra.mxu0 0.0
    %1056 = vmatprep.mubr.f32.mxu0 0.0
    %1057 = vmatmul.mubr.f32.gmra.mxu0 %v930
    %v1058 = vpop.f32.mrf.mxu0
    %v1059 = vadd.f32 %v985, %v1058
    %v1060 = vpop.f32.mrf.mxu0
    %v1061 = vadd.f32 %v989, %v1060
    %1062 = vdwg.mxu0
    %1063 = vst [vmem:[#allocation3 + $0x20] sm:$0xff] %v1059
    %1064 = vst [vmem:[#allocation3 + $0x28] sm:$0xff] %v1061
    %v1065 = vld [vmem:[#allocation2 + $0x18] sm:$0xff]
    %v1066 = vmax.f32 %v1065, 0.0
    %s1067 = scalar_lea.vmem [#allocation6], 384
    %v1068 = vld [vmem:[%s1067] sm:$0xff]
    %v1069 = vld [vmem:[%s1067 + $0x8] sm:$0xff]
    %v1070 = vld [vmem:[%s1067 + $0x10] sm:$0xff]
    %v1071 = vld [vmem:[%s1067 + $0x18] sm:$0xff]
    %v1072 = vld [vmem:[%s1067 + $0x20] sm:$0xff]
    %v1073 = vld [vmem:[%s1067 + $0x28] sm:$0xff]
    %v1074 = vld [vmem:[%s1067 + $0x30] sm:$0xff]
    %v1075 = vld [vmem:[%s1067 + $0x38] sm:$0xff]
    %v1076 = vld [vmem:[%s1067 + $0x40] sm:$0xff]
    %v1077 = vld [vmem:[%s1067 + $0x48] sm:$0xff]
    %v1078 = vld [vmem:[%s1067 + $0x50] sm:$0xff]
    %v1079 = vld [vmem:[%s1067 + $0x58] sm:$0xff]
    %v1080 = vld [vmem:[%s1067 + $0x60] sm:$0xff]
    %v1081 = vld [vmem:[%s1067 + $0x68] sm:$0xff]
    %v1082 = vld [vmem:[%s1067 + $0x70] sm:$0xff]
    %v1083 = vld [vmem:[%s1067 + $0x78] sm:$0xff]
    %v1084 = vunpack.c.l.bf16 %v1068
    %v1085 = vunpack.c.h.bf16 %v1068
    %v1086 = vunpack.c.l.bf16 %v1069
    %v1087 = vunpack.c.h.bf16 %v1069
    %v1088 = vunpack.c.l.bf16 %v1070
    %v1089 = vunpack.c.h.bf16 %v1070
    %v1090 = vunpack.c.l.bf16 %v1071
    %v1091 = vunpack.c.h.bf16 %v1071
    %v1092 = vunpack.c.l.bf16 %v1072
    %v1093 = vunpack.c.h.bf16 %v1072
    %v1094 = vunpack.c.l.bf16 %v1073
    %v1095 = vunpack.c.h.bf16 %v1073
    %v1096 = vunpack.c.l.bf16 %v1074
    %v1097 = vunpack.c.h.bf16 %v1074
    %v1098 = vunpack.c.l.bf16 %v1075
    %v1099 = vunpack.c.h.bf16 %v1075
    %v1100 = vunpack.c.l.bf16 %v1076
    %v1101 = vunpack.c.h.bf16 %v1076
    %v1102 = vunpack.c.l.bf16 %v1077
    %v1103 = vunpack.c.h.bf16 %v1077
    %v1104 = vunpack.c.l.bf16 %v1078
    %v1105 = vunpack.c.h.bf16 %v1078
    %v1106 = vunpack.c.l.bf16 %v1079
    %v1107 = vunpack.c.h.bf16 %v1079
    %v1108 = vunpack.c.l.bf16 %v1080
    %v1109 = vunpack.c.h.bf16 %v1080
    %v1110 = vunpack.c.l.bf16 %v1081
    %v1111 = vunpack.c.h.bf16 %v1081
    %v1112 = vunpack.c.l.bf16 %v1082
    %v1113 = vunpack.c.h.bf16 %v1082
    %v1114 = vunpack.c.l.bf16 %v1083
    %v1115 = vunpack.c.h.bf16 %v1083
    %v1116 = vld [vmem:[%s4 + $0x6] sm:$0x3]
    %v1118 = vlaneseq
    %v1119 = vshrl.u32 %v1118, 7
    %v1120 = vsub.s32 0, %v1119
    %v1121 = vrot.slane %v1116, %v1120
    %v1122 = vlaneseq
    %v1123 = vshrl.u32 %v1122, 7
    %v1124 = vsub.s32 1, %v1123
    %v1125 = vrot.slane %v1116, %v1124
    %1128 = vmatprep.subr.mxu0 %v1115
    %1129 = vmatpush1.msra.mxu0 %v1114
    %1130 = vmatprep.subr.mxu0 %v1113
    %1131 = vmatpush1.msra.mxu0 %v1112
    %1132 = vmatprep.subr.mxu0 %v1111
    %1133 = vmatpush1.msra.mxu0 %v1110
    %1134 = vmatprep.subr.mxu0 %v1109
    %1135 = vmatpush1.msra.mxu0 %v1108
    %1136 = vmatprep.subr.mxu0 %v1107
    %1137 = vmatpush1.msra.mxu0 %v1106
    %1138 = vmatprep.subr.mxu0 %v1105
    %1139 = vmatpush1.msra.mxu0 %v1104
    %1140 = vmatprep.subr.mxu0 %v1103
    %1141 = vmatpush1.msra.mxu0 %v1102
    %1142 = vmatprep.subr.mxu0 %v1101
    %1143 = vmatpush1.msra.mxu0 %v1100
    %1144 = vmatprep.subr.mxu0 %v1099
    %1145 = vmatpush1.msra.mxu0 %v1098
    %1146 = vmatprep.subr.mxu0 %v1097
    %1147 = vmatpush1.msra.mxu0 %v1096
    %1148 = vmatprep.subr.mxu0 %v1095
    %1149 = vmatpush1.msra.mxu0 %v1094
    %1150 = vmatprep.subr.mxu0 %v1093
    %1151 = vmatpush1.msra.mxu0 %v1092
    %1152 = vmatprep.subr.mxu0 %v1091
    %1153 = vmatpush1.msra.mxu0 %v1090
    %1154 = vmatprep.subr.mxu0 %v1089
    %1155 = vmatpush1.msra.mxu0 %v1088
    %1156 = vmatprep.subr.mxu0 %v1087
    %1157 = vmatpush1.msra.mxu0 %v1086
    %1158 = vmatprep.subr.mxu0 %v1085
    %1159 = vmatpush1.msra.mxu0 %v1084
    %1160 = vmatprep.subr.mxu0 0.0
    %1161 = vmatpush2.msra.mxu0 0.0
    %1162 = vmatprep.subr.mxu0 0.0
    %1163 = vmatpush2.msra.mxu0 0.0
    %1164 = vmatprep.subr.mxu0 0.0
    %1165 = vmatpush2.msra.mxu0 0.0
    %1166 = vmatprep.subr.mxu0 0.0
    %1167 = vmatpush2.msra.mxu0 0.0
    %1168 = vmatprep.subr.mxu0 0.0
    %1169 = vmatpush2.msra.mxu0 0.0
    %1170 = vmatprep.subr.mxu0 0.0
    %1171 = vmatpush2.msra.mxu0 0.0
    %1172 = vmatprep.subr.mxu0 0.0
    %1173 = vmatpush2.msra.mxu0 0.0
    %1174 = vmatprep.subr.mxu0 0.0
    %1175 = vmatpush2.msra.mxu0 0.0
    %1176 = vmatprep.subr.mxu0 0.0
    %1177 = vmatpush2.msra.mxu0 0.0
    %1178 = vmatprep.subr.mxu0 0.0
    %1179 = vmatpush2.msra.mxu0 0.0
    %1180 = vmatprep.subr.mxu0 0.0
    %1181 = vmatpush2.msra.mxu0 0.0
    %1182 = vmatprep.subr.mxu0 0.0
    %1183 = vmatpush2.msra.mxu0 0.0
    %1184 = vmatprep.subr.mxu0 0.0
    %1185 = vmatpush2.msra.mxu0 0.0
    %1186 = vmatprep.subr.mxu0 0.0
    %1187 = vmatpush2.msra.mxu0 0.0
    %1188 = vmatprep.subr.mxu0 0.0
    %1189 = vmatpush2.msra.mxu0 0.0
    %1190 = vmatprep.subr.mxu0 0.0
    %1191 = vmatpush2.msra.mxu0 0.0
    %1192 = vmatprep.mubr.f32.mxu0 0.0
    %1193 = vmatmul.mubr.f32.gmra.mxu0 %v1066
    %v1194 = vpop.f32.mrf.mxu0
    %v1195 = vadd.f32 %v1121, %v1194
    %v1196 = vpop.f32.mrf.mxu0
    %v1197 = vadd.f32 %v1125, %v1196
    %1198 = vdwg.mxu0
    %1199 = vst [vmem:[#allocation3 + $0x30] sm:$0xff] %v1195
    %1200 = vst [vmem:[#allocation3 + $0x38] sm:$0xff] %v1197
    %v1201 = vld [vmem:[#allocation2 + $0x20] sm:$0xff]
    %v1202 = vmax.f32 %v1201, 0.0
    %s1203 = scalar_lea.vmem [#allocation6], 512
    %v1204 = vld [vmem:[%s1203] sm:$0xff]
    %v1205 = vld [vmem:[%s1203 + $0x8] sm:$0xff]
    %v1206 = vld [vmem:[%s1203 + $0x10] sm:$0xff]
    %v1207 = vld [vmem:[%s1203 + $0x18] sm:$0xff]
    %v1208 = vld [vmem:[%s1203 + $0x20] sm:$0xff]
    %v1209 = vld [vmem:[%s1203 + $0x28] sm:$0xff]
    %v1210 = vld [vmem:[%s1203 + $0x30] sm:$0xff]
    %v1211 = vld [vmem:[%s1203 + $0x38] sm:$0xff]
    %v1212 = vld [vmem:[%s1203 + $0x40] sm:$0xff]
    %v1213 = vld [vmem:[%s1203 + $0x48] sm:$0xff]
    %v1214 = vld [vmem:[%s1203 + $0x50] sm:$0xff]
    %v1215 = vld [vmem:[%s1203 + $0x58] sm:$0xff]
    %v1216 = vld [vmem:[%s1203 + $0x60] sm:$0xff]
    %v1217 = vld [vmem:[%s1203 + $0x68] sm:$0xff]
    %v1218 = vld [vmem:[%s1203 + $0x70] sm:$0xff]
    %v1219 = vld [vmem:[%s1203 + $0x78] sm:$0xff]
    %v1220 = vunpack.c.l.bf16 %v1204
    %v1221 = vunpack.c.h.bf16 %v1204
    %v1222 = vunpack.c.l.bf16 %v1205
    %v1223 = vunpack.c.h.bf16 %v1205
    %v1224 = vunpack.c.l.bf16 %v1206
    %v1225 = vunpack.c.h.bf16 %v1206
    %v1226 = vunpack.c.l.bf16 %v1207
    %v1227 = vunpack.c.h.bf16 %v1207
    %v1228 = vunpack.c.l.bf16 %v1208
    %v1229 = vunpack.c.h.bf16 %v1208
    %v1230 = vunpack.c.l.bf16 %v1209
    %v1231 = vunpack.c.h.bf16 %v1209
    %v1232 = vunpack.c.l.bf16 %v1210
    %v1233 = vunpack.c.h.bf16 %v1210
    %v1234 = vunpack.c.l.bf16 %v1211
    %v1235 = vunpack.c.h.bf16 %v1211
    %v1236 = vunpack.c.l.bf16 %v1212
    %v1237 = vunpack.c.h.bf16 %v1212
    %v1238 = vunpack.c.l.bf16 %v1213
    %v1239 = vunpack.c.h.bf16 %v1213
    %v1240 = vunpack.c.l.bf16 %v1214
    %v1241 = vunpack.c.h.bf16 %v1214
    %v1242 = vunpack.c.l.bf16 %v1215
    %v1243 = vunpack.c.h.bf16 %v1215
    %v1244 = vunpack.c.l.bf16 %v1216
    %v1245 = vunpack.c.h.bf16 %v1216
    %v1246 = vunpack.c.l.bf16 %v1217
    %v1247 = vunpack.c.h.bf16 %v1217
    %v1248 = vunpack.c.l.bf16 %v1218
    %v1249 = vunpack.c.h.bf16 %v1218
    %v1250 = vunpack.c.l.bf16 %v1219
    %v1251 = vunpack.c.h.bf16 %v1219
    %v1252 = vld [vmem:[%s4 + $0x8] sm:$0x3]
    %v1254 = vlaneseq
    %v1255 = vshrl.u32 %v1254, 7
    %v1256 = vsub.s32 0, %v1255
    %v1257 = vrot.slane %v1252, %v1256
    %v1258 = vlaneseq
    %v1259 = vshrl.u32 %v1258, 7
    %v1260 = vsub.s32 1, %v1259
    %v1261 = vrot.slane %v1252, %v1260
    %1264 = vmatprep.subr.mxu0 %v1251
    %1265 = vmatpush1.msra.mxu0 %v1250
    %1266 = vmatprep.subr.mxu0 %v1249
    %1267 = vmatpush1.msra.mxu0 %v1248
    %1268 = vmatprep.subr.mxu0 %v1247
    %1269 = vmatpush1.msra.mxu0 %v1246
    %1270 = vmatprep.subr.mxu0 %v1245
    %1271 = vmatpush1.msra.mxu0 %v1244
    %1272 = vmatprep.subr.mxu0 %v1243
    %1273 = vmatpush1.msra.mxu0 %v1242
    %1274 = vmatprep.subr.mxu0 %v1241
    %1275 = vmatpush1.msra.mxu0 %v1240
    %1276 = vmatprep.subr.mxu0 %v1239
    %1277 = vmatpush1.msra.mxu0 %v1238
    %1278 = vmatprep.subr.mxu0 %v1237
    %1279 = vmatpush1.msra.mxu0 %v1236
    %1280 = vmatprep.subr.mxu0 %v1235
    %1281 = vmatpush1.msra.mxu0 %v1234
    %1282 = vmatprep.subr.mxu0 %v1233
    %1283 = vmatpush1.msra.mxu0 %v1232
    %1284 = vmatprep.subr.mxu0 %v1231
    %1285 = vmatpush1.msra.mxu0 %v1230
    %1286 = vmatprep.subr.mxu0 %v1229
    %1287 = vmatpush1.msra.mxu0 %v1228
    %1288 = vmatprep.subr.mxu0 %v1227
    %1289 = vmatpush1.msra.mxu0 %v1226
    %1290 = vmatprep.subr.mxu0 %v1225
    %1291 = vmatpush1.msra.mxu0 %v1224
    %1292 = vmatprep.subr.mxu0 %v1223
    %1293 = vmatpush1.msra.mxu0 %v1222
    %1294 = vmatprep.subr.mxu0 %v1221
    %1295 = vmatpush1.msra.mxu0 %v1220
    %1296 = vmatprep.subr.mxu0 0.0
    %1297 = vmatpush2.msra.mxu0 0.0
    %1298 = vmatprep.subr.mxu0 0.0
    %1299 = vmatpush2.msra.mxu0 0.0
    %1300 = vmatprep.subr.mxu0 0.0
    %1301 = vmatpush2.msra.mxu0 0.0
    %1302 = vmatprep.subr.mxu0 0.0
    %1303 = vmatpush2.msra.mxu0 0.0
    %1304 = vmatprep.subr.mxu0 0.0
    %1305 = vmatpush2.msra.mxu0 0.0
    %1306 = vmatprep.subr.mxu0 0.0
    %1307 = vmatpush2.msra.mxu0 0.0
    %1308 = vmatprep.subr.mxu0 0.0
    %1309 = vmatpush2.msra.mxu0 0.0
    %1310 = vmatprep.subr.mxu0 0.0
    %1311 = vmatpush2.msra.mxu0 0.0
    %1312 = vmatprep.subr.mxu0 0.0
    %1313 = vmatpush2.msra.mxu0 0.0
    %1314 = vmatprep.subr.mxu0 0.0
    %1315 = vmatpush2.msra.mxu0 0.0
    %1316 = vmatprep.subr.mxu0 0.0
    %1317 = vmatpush2.msra.mxu0 0.0
    %1318 = vmatprep.subr.mxu0 0.0
    %1319 = vmatpush2.msra.mxu0 0.0
    %1320 = vmatprep.subr.mxu0 0.0
    %1321 = vmatpush2.msra.mxu0 0.0
    %1322 = vmatprep.subr.mxu0 0.0
    %1323 = vmatpush2.msra.mxu0 0.0
    %1324 = vmatprep.subr.mxu0 0.0
    %1325 = vmatpush2.msra.mxu0 0.0
    %1326 = vmatprep.subr.mxu0 0.0
    %1327 = vmatpush2.msra.mxu0 0.0
    %1328 = vmatprep.mubr.f32.mxu0 0.0
    %1329 = vmatmul.mubr.f32.gmra.mxu0 %v1202
    %v1330 = vpop.f32.mrf.mxu0
    %v1331 = vadd.f32 %v1257, %v1330
    %v1332 = vpop.f32.mrf.mxu0
    %v1333 = vadd.f32 %v1261, %v1332
    %1334 = vdwg.mxu0
    %1335 = vst [vmem:[#allocation3 + $0x40] sm:$0xff] %v1331
    %1336 = vst [vmem:[#allocation3 + $0x48] sm:$0xff] %v1333
    %v1337 = vld [vmem:[#allocation2 + $0x28] sm:$0xff]
    %v1338 = vmax.f32 %v1337, 0.0
    %s1339 = scalar_lea.vmem [#allocation6], 640
    %v1340 = vld [vmem:[%s1339] sm:$0xff]
    %v1341 = vld [vmem:[%s1339 + $0x8] sm:$0xff]
    %v1342 = vld [vmem:[%s1339 + $0x10] sm:$0xff]
    %v1343 = vld [vmem:[%s1339 + $0x18] sm:$0xff]
    %v1344 = vld [vmem:[%s1339 + $0x20] sm:$0xff]
    %v1345 = vld [vmem:[%s1339 + $0x28] sm:$0xff]
    %v1346 = vld [vmem:[%s1339 + $0x30] sm:$0xff]
    %v1347 = vld [vmem:[%s1339 + $0x38] sm:$0xff]
    %v1348 = vld [vmem:[%s1339 + $0x40] sm:$0xff]
    %v1349 = vld [vmem:[%s1339 + $0x48] sm:$0xff]
    %v1350 = vld [vmem:[%s1339 + $0x50] sm:$0xff]
    %v1351 = vld [vmem:[%s1339 + $0x58] sm:$0xff]
    %v1352 = vld [vmem:[%s1339 + $0x60] sm:$0xff]
    %v1353 = vld [vmem:[%s1339 + $0x68] sm:$0xff]
    %v1354 = vld [vmem:[%s1339 + $0x70] sm:$0xff]
    %v1355 = vld [vmem:[%s1339 + $0x78] sm:$0xff]
    %v1356 = vunpack.c.l.bf16 %v1340
    %v1357 = vunpack.c.h.bf16 %v1340
    %v1358 = vunpack.c.l.bf16 %v1341
    %v1359 = vunpack.c.h.bf16 %v1341
    %v1360 = vunpack.c.l.bf16 %v1342
    %v1361 = vunpack.c.h.bf16 %v1342
    %v1362 = vunpack.c.l.bf16 %v1343
    %v1363 = vunpack.c.h.bf16 %v1343
    %v1364 = vunpack.c.l.bf16 %v1344
    %v1365 = vunpack.c.h.bf16 %v1344
    %v1366 = vunpack.c.l.bf16 %v1345
    %v1367 = vunpack.c.h.bf16 %v1345
    %v1368 = vunpack.c.l.bf16 %v1346
    %v1369 = vunpack.c.h.bf16 %v1346
    %v1370 = vunpack.c.l.bf16 %v1347
    %v1371 = vunpack.c.h.bf16 %v1347
    %v1372 = vunpack.c.l.bf16 %v1348
    %v1373 = vunpack.c.h.bf16 %v1348
    %v1374 = vunpack.c.l.bf16 %v1349
    %v1375 = vunpack.c.h.bf16 %v1349
    %v1376 = vunpack.c.l.bf16 %v1350
    %v1377 = vunpack.c.h.bf16 %v1350
    %v1378 = vunpack.c.l.bf16 %v1351
    %v1379 = vunpack.c.h.bf16 %v1351
    %v1380 = vunpack.c.l.bf16 %v1352
    %v1381 = vunpack.c.h.bf16 %v1352
    %v1382 = vunpack.c.l.bf16 %v1353
    %v1383 = vunpack.c.h.bf16 %v1353
    %v1384 = vunpack.c.l.bf16 %v1354
    %v1385 = vunpack.c.h.bf16 %v1354
    %v1386 = vunpack.c.l.bf16 %v1355
    %v1387 = vunpack.c.h.bf16 %v1355
    %v1388 = vld [vmem:[%s4 + $0xa] sm:$0x3]
    %v1390 = vlaneseq
    %v1391 = vshrl.u32 %v1390, 7
    %v1392 = vsub.s32 0, %v1391
    %v1393 = vrot.slane %v1388, %v1392
    %v1394 = vlaneseq
    %v1395 = vshrl.u32 %v1394, 7
    %v1396 = vsub.s32 1, %v1395
    %v1397 = vrot.slane %v1388, %v1396
    %1400 = vmatprep.subr.mxu0 %v1387
    %1401 = vmatpush1.msra.mxu0 %v1386
    %1402 = vmatprep.subr.mxu0 %v1385
    %1403 = vmatpush1.msra.mxu0 %v1384
    %1404 = vmatprep.subr.mxu0 %v1383
    %1405 = vmatpush1.msra.mxu0 %v1382
    %1406 = vmatprep.subr.mxu0 %v1381
    %1407 = vmatpush1.msra.mxu0 %v1380
    %1408 = vmatprep.subr.mxu0 %v1379
    %1409 = vmatpush1.msra.mxu0 %v1378
    %1410 = vmatprep.subr.mxu0 %v1377
    %1411 = vmatpush1.msra.mxu0 %v1376
    %1412 = vmatprep.subr.mxu0 %v1375
    %1413 = vmatpush1.msra.mxu0 %v1374
    %1414 = vmatprep.subr.mxu0 %v1373
    %1415 = vmatpush1.msra.mxu0 %v1372
    %1416 = vmatprep.subr.mxu0 %v1371
    %1417 = vmatpush1.msra.mxu0 %v1370
    %1418 = vmatprep.subr.mxu0 %v1369
    %1419 = vmatpush1.msra.mxu0 %v1368
    %1420 = vmatprep.subr.mxu0 %v1367
    %1421 = vmatpush1.msra.mxu0 %v1366
    %1422 = vmatprep.subr.mxu0 %v1365
    %1423 = vmatpush1.msra.mxu0 %v1364
    %1424 = vmatprep.subr.mxu0 %v1363
    %1425 = vmatpush1.msra.mxu0 %v1362
    %1426 = vmatprep.subr.mxu0 %v1361
    %1427 = vmatpush1.msra.mxu0 %v1360
    %1428 = vmatprep.subr.mxu0 %v1359
    %1429 = vmatpush1.msra.mxu0 %v1358
    %1430 = vmatprep.subr.mxu0 %v1357
    %1431 = vmatpush1.msra.mxu0 %v1356
    %1432 = vmatprep.subr.mxu0 0.0
    %1433 = vmatpush2.msra.mxu0 0.0
    %1434 = vmatprep.subr.mxu0 0.0
    %1435 = vmatpush2.msra.mxu0 0.0
    %1436 = vmatprep.subr.mxu0 0.0
    %1437 = vmatpush2.msra.mxu0 0.0
    %1438 = vmatprep.subr.mxu0 0.0
    %1439 = vmatpush2.msra.mxu0 0.0
    %1440 = vmatprep.subr.mxu0 0.0
    %1441 = vmatpush2.msra.mxu0 0.0
    %1442 = vmatprep.subr.mxu0 0.0
    %1443 = vmatpush2.msra.mxu0 0.0
    %1444 = vmatprep.subr.mxu0 0.0
    %1445 = vmatpush2.msra.mxu0 0.0
    %1446 = vmatprep.subr.mxu0 0.0
    %1447 = vmatpush2.msra.mxu0 0.0
    %1448 = vmatprep.subr.mxu0 0.0
    %1449 = vmatpush2.msra.mxu0 0.0
    %1450 = vmatprep.subr.mxu0 0.0
    %1451 = vmatpush2.msra.mxu0 0.0
    %1452 = vmatprep.subr.mxu0 0.0
    %1453 = vmatpush2.msra.mxu0 0.0
    %1454 = vmatprep.subr.mxu0 0.0
    %1455 = vmatpush2.msra.mxu0 0.0
    %1456 = vmatprep.subr.mxu0 0.0
    %1457 = vmatpush2.msra.mxu0 0.0
    %1458 = vmatprep.subr.mxu0 0.0
    %1459 = vmatpush2.msra.mxu0 0.0
    %1460 = vmatprep.subr.mxu0 0.0
    %1461 = vmatpush2.msra.mxu0 0.0
    %1462 = vmatprep.subr.mxu0 0.0
    %1463 = vmatpush2.msra.mxu0 0.0
    %1464 = vmatprep.mubr.f32.mxu0 0.0
    %1465 = vmatmul.mubr.f32.gmra.mxu0 %v1338
    %v1466 = vpop.f32.mrf.mxu0
    %v1467 = vadd.f32 %v1393, %v1466
    %v1468 = vpop.f32.mrf.mxu0
    %v1469 = vadd.f32 %v1397, %v1468
    %1470 = vdwg.mxu0
    %1471 = vst [vmem:[#allocation3 + $0x50] sm:$0xff] %v1467
    %1472 = vst [vmem:[#allocation3 + $0x58] sm:$0xff] %v1469
    %v1473 = vld [vmem:[#allocation2 + $0x30] sm:$0xff]
    %v1474 = vmax.f32 %v1473, 0.0
    %s1475 = scalar_lea.vmem [#allocation6], 768
    %v1476 = vld [vmem:[%s1475] sm:$0xff]
    %v1477 = vld [vmem:[%s1475 + $0x8] sm:$0xff]
    %v1478 = vld [vmem:[%s1475 + $0x10] sm:$0xff]
    %v1479 = vld [vmem:[%s1475 + $0x18] sm:$0xff]
    %v1480 = vld [vmem:[%s1475 + $0x20] sm:$0xff]
    %v1481 = vld [vmem:[%s1475 + $0x28] sm:$0xff]
    %v1482 = vld [vmem:[%s1475 + $0x30] sm:$0xff]
    %v1483 = vld [vmem:[%s1475 + $0x38] sm:$0xff]
    %v1484 = vld [vmem:[%s1475 + $0x40] sm:$0xff]
    %v1485 = vld [vmem:[%s1475 + $0x48] sm:$0xff]
    %v1486 = vld [vmem:[%s1475 + $0x50] sm:$0xff]
    %v1487 = vld [vmem:[%s1475 + $0x58] sm:$0xff]
    %v1488 = vld [vmem:[%s1475 + $0x60] sm:$0xff]
    %v1489 = vld [vmem:[%s1475 + $0x68] sm:$0xff]
    %v1490 = vld [vmem:[%s1475 + $0x70] sm:$0xff]
    %v1491 = vld [vmem:[%s1475 + $0x78] sm:$0xff]
    %v1492 = vunpack.c.l.bf16 %v1476
    %v1493 = vunpack.c.h.bf16 %v1476
    %v1494 = vunpack.c.l.bf16 %v1477
    %v1495 = vunpack.c.h.bf16 %v1477
    %v1496 = vunpack.c.l.bf16 %v1478
    %v1497 = vunpack.c.h.bf16 %v1478
    %v1498 = vunpack.c.l.bf16 %v1479
    %v1499 = vunpack.c.h.bf16 %v1479
    %v1500 = vunpack.c.l.bf16 %v1480
    %v1501 = vunpack.c.h.bf16 %v1480
    %v1502 = vunpack.c.l.bf16 %v1481
    %v1503 = vunpack.c.h.bf16 %v1481
    %v1504 = vunpack.c.l.bf16 %v1482
    %v1505 = vunpack.c.h.bf16 %v1482
    %v1506 = vunpack.c.l.bf16 %v1483
    %v1507 = vunpack.c.h.bf16 %v1483
    %v1508 = vunpack.c.l.bf16 %v1484
    %v1509 = vunpack.c.h.bf16 %v1484
    %v1510 = vunpack.c.l.bf16 %v1485
    %v1511 = vunpack.c.h.bf16 %v1485
    %v1512 = vunpack.c.l.bf16 %v1486
    %v1513 = vunpack.c.h.bf16 %v1486
    %v1514 = vunpack.c.l.bf16 %v1487
    %v1515 = vunpack.c.h.bf16 %v1487
    %v1516 = vunpack.c.l.bf16 %v1488
    %v1517 = vunpack.c.h.bf16 %v1488
    %v1518 = vunpack.c.l.bf16 %v1489
    %v1519 = vunpack.c.h.bf16 %v1489
    %v1520 = vunpack.c.l.bf16 %v1490
    %v1521 = vunpack.c.h.bf16 %v1490
    %v1522 = vunpack.c.l.bf16 %v1491
    %v1523 = vunpack.c.h.bf16 %v1491
    %v1524 = vld [vmem:[%s4 + $0xc] sm:$0x3]
    %v1526 = vlaneseq
    %v1527 = vshrl.u32 %v1526, 7
    %v1528 = vsub.s32 0, %v1527
    %v1529 = vrot.slane %v1524, %v1528
    %v1530 = vlaneseq
    %v1531 = vshrl.u32 %v1530, 7
    %v1532 = vsub.s32 1, %v1531
    %v1533 = vrot.slane %v1524, %v1532
    %1536 = vmatprep.subr.mxu0 %v1523
    %1537 = vmatpush1.msra.mxu0 %v1522
    %1538 = vmatprep.subr.mxu0 %v1521
    %1539 = vmatpush1.msra.mxu0 %v1520
    %1540 = vmatprep.subr.mxu0 %v1519
    %1541 = vmatpush1.msra.mxu0 %v1518
    %1542 = vmatprep.subr.mxu0 %v1517
    %1543 = vmatpush1.msra.mxu0 %v1516
    %1544 = vmatprep.subr.mxu0 %v1515
    %1545 = vmatpush1.msra.mxu0 %v1514
    %1546 = vmatprep.subr.mxu0 %v1513
    %1547 = vmatpush1.msra.mxu0 %v1512
    %1548 = vmatprep.subr.mxu0 %v1511
    %1549 = vmatpush1.msra.mxu0 %v1510
    %1550 = vmatprep.subr.mxu0 %v1509
    %1551 = vmatpush1.msra.mxu0 %v1508
    %1552 = vmatprep.subr.mxu0 %v1507
    %1553 = vmatpush1.msra.mxu0 %v1506
    %1554 = vmatprep.subr.mxu0 %v1505
    %1555 = vmatpush1.msra.mxu0 %v1504
    %1556 = vmatprep.subr.mxu0 %v1503
    %1557 = vmatpush1.msra.mxu0 %v1502
    %1558 = vmatprep.subr.mxu0 %v1501
    %1559 = vmatpush1.msra.mxu0 %v1500
    %1560 = vmatprep.subr.mxu0 %v1499
    %1561 = vmatpush1.msra.mxu0 %v1498
    %1562 = vmatprep.subr.mxu0 %v1497
    %1563 = vmatpush1.msra.mxu0 %v1496
    %1564 = vmatprep.subr.mxu0 %v1495
    %1565 = vmatpush1.msra.mxu0 %v1494
    %1566 = vmatprep.subr.mxu0 %v1493
    %1567 = vmatpush1.msra.mxu0 %v1492
    %1568 = vmatprep.subr.mxu0 0.0
    %1569 = vmatpush2.msra.mxu0 0.0
    %1570 = vmatprep.subr.mxu0 0.0
    %1571 = vmatpush2.msra.mxu0 0.0
    %1572 = vmatprep.subr.mxu0 0.0
    %1573 = vmatpush2.msra.mxu0 0.0
    %1574 = vmatprep.subr.mxu0 0.0
    %1575 = vmatpush2.msra.mxu0 0.0
    %1576 = vmatprep.subr.mxu0 0.0
    %1577 = vmatpush2.msra.mxu0 0.0
    %1578 = vmatprep.subr.mxu0 0.0
    %1579 = vmatpush2.msra.mxu0 0.0
    %1580 = vmatprep.subr.mxu0 0.0
    %1581 = vmatpush2.msra.mxu0 0.0
    %1582 = vmatprep.subr.mxu0 0.0
    %1583 = vmatpush2.msra.mxu0 0.0
    %1584 = vmatprep.subr.mxu0 0.0
    %1585 = vmatpush2.msra.mxu0 0.0
    %1586 = vmatprep.subr.mxu0 0.0
    %1587 = vmatpush2.msra.mxu0 0.0
    %1588 = vmatprep.subr.mxu0 0.0
    %1589 = vmatpush2.msra.mxu0 0.0
    %1590 = vmatprep.subr.mxu0 0.0
    %1591 = vmatpush2.msra.mxu0 0.0
    %1592 = vmatprep.subr.mxu0 0.0
    %1593 = vmatpush2.msra.mxu0 0.0
    %1594 = vmatprep.subr.mxu0 0.0
    %1595 = vmatpush2.msra.mxu0 0.0
    %1596 = vmatprep.subr.mxu0 0.0
    %1597 = vmatpush2.msra.mxu0 0.0
    %1598 = vmatprep.subr.mxu0 0.0
    %1599 = vmatpush2.msra.mxu0 0.0
    %1600 = vmatprep.mubr.f32.mxu0 0.0
    %1601 = vmatmul.mubr.f32.gmra.mxu0 %v1474
    %v1602 = vpop.f32.mrf.mxu0
    %v1603 = vadd.f32 %v1529, %v1602
    %v1604 = vpop.f32.mrf.mxu0
    %v1605 = vadd.f32 %v1533, %v1604
    %1606 = vdwg.mxu0
    %1607 = vst [vmem:[#allocation3 + $0x60] sm:$0xff] %v1603
    %1608 = vst [vmem:[#allocation3 + $0x68] sm:$0xff] %v1605
    %v1609 = vld [vmem:[#allocation3] sm:$0xff]
    %v1610 = vld [vmem:[#allocation3 + $0x8] sm:$0xff]
    %v1611 = vld [vmem:[#allocation3 + $0x10] sm:$0xff]
    %v1612 = vld [vmem:[#allocation3 + $0x18] sm:$0xff]
    %v1613 = vld [vmem:[#allocation3 + $0x20] sm:$0xff]
    %v1614 = vld [vmem:[#allocation3 + $0x28] sm:$0xff]
    %v1615 = vld [vmem:[#allocation3 + $0x30] sm:$0xff]
    %v1616 = vld [vmem:[#allocation3 + $0x38] sm:$0xff]
    %v1617 = vld [vmem:[#allocation3 + $0x40] sm:$0xff]
    %v1618 = vld [vmem:[#allocation3 + $0x48] sm:$0xff]
    %v1619 = vld [vmem:[#allocation3 + $0x50] sm:$0xff]
    %v1620 = vld [vmem:[#allocation3 + $0x58] sm:$0xff]
    %v1621 = vld [vmem:[#allocation3 + $0x60] sm:$0xff]
    %v1622 = vld [vmem:[#allocation3 + $0x68] sm:$0xff]
    %v1623 = vmax.f32 %v1609, 0.0
    %v1624 = vmax.f32 %v1610, 0.0
    %v1625 = vmax.f32 %v1611, 0.0
    %v1626 = vmax.f32 %v1612, 0.0
    %v1627 = vmax.f32 %v1613, 0.0
    %v1628 = vmax.f32 %v1614, 0.0
    %v1629 = vmax.f32 %v1615, 0.0
    %v1630 = vmax.f32 %v1616, 0.0
    %v1631 = vmax.f32 %v1617, 0.0
    %v1632 = vmax.f32 %v1618, 0.0
    %v1633 = vmax.f32 %v1619, 0.0
    %v1634 = vmax.f32 %v1620, 0.0
    %v1635 = vmax.f32 %v1621, 0.0
    %v1636 = vmax.f32 %v1622, 0.0
    %v1637 = vld [vmem:[#allocation8] sm:$0xf]
    %v1638 = vld [vmem:[#allocation8 + $0x4] sm:$0xf]
    %v1639 = vld [vmem:[#allocation8 + $0x8] sm:$0xf]
    %v1640 = vld [vmem:[#allocation8 + $0xc] sm:$0xf]
    %v1641 = vld [vmem:[#allocation8 + $0x10] sm:$0xf]
    %v1642 = vld [vmem:[#allocation8 + $0x14] sm:$0xf]
    %v1643 = vld [vmem:[#allocation8 + $0x18] sm:$0xf]
    %v1644 = vld [vmem:[#allocation8 + $0x1c] sm:$0xf]
    %v1645 = vld [vmem:[#allocation8 + $0x20] sm:$0xf]
    %v1646 = vld [vmem:[#allocation8 + $0x24] sm:$0xf]
    %v1647 = vld [vmem:[#allocation8 + $0x28] sm:$0xf]
    %v1648 = vld [vmem:[#allocation8 + $0x2c] sm:$0xf]
    %v1649 = vld [vmem:[#allocation8 + $0x30] sm:$0xf]
    %v1650 = vld [vmem:[#allocation8 + $0x34] sm:$0xf]
    %v1651 = vld [vmem:[#allocation8 + $0x38] sm:$0xf]
    %v1652 = vld [vmem:[#allocation8 + $0x3c] sm:$0xf]
    %v1653 = vld [vmem:[#allocation8 + $0x40] sm:$0xf]
    %v1654 = vld [vmem:[#allocation8 + $0x44] sm:$0xf]
    %v1655 = vld [vmem:[#allocation8 + $0x48] sm:$0xf]
    %v1656 = vld [vmem:[#allocation8 + $0x4c] sm:$0xf]
    %v1657 = vld [vmem:[#allocation8 + $0x50] sm:$0xf]
    %v1658 = vld [vmem:[#allocation8 + $0x54] sm:$0xf]
    %v1659 = vld [vmem:[#allocation8 + $0x58] sm:$0xf]
    %v1660 = vld [vmem:[#allocation8 + $0x5c] sm:$0xf]
    %v1661 = vld [vmem:[#allocation8 + $0x60] sm:$0xf]
    %v1662 = vld [vmem:[#allocation8 + $0x64] sm:$0xf]
    %v1663 = vld [vmem:[#allocation8 + $0x68] sm:$0xf]
    %v1664 = vld [vmem:[#allocation8 + $0x6c] sm:$0xf]
    %v1665 = vld [vmem:[#allocation8 + $0x70] sm:$0xf]
    %v1666 = vld [vmem:[#allocation8 + $0x74] sm:$0xf]
    %v1667 = vld [vmem:[#allocation8 + $0x78] sm:$0xf]
    %v1668 = vld [vmem:[#allocation8 + $0x7c] sm:$0xf]
    %v1669 = vld [vmem:[#allocation8 + $0x80] sm:$0xf]
    %v1670 = vld [vmem:[#allocation8 + $0x84] sm:$0xf]
    %v1671 = vld [vmem:[#allocation8 + $0x88] sm:$0xf]
    %v1672 = vld [vmem:[#allocation8 + $0x8c] sm:$0xf]
    %v1673 = vld [vmem:[#allocation8 + $0x90] sm:$0xf]
    %v1674 = vld [vmem:[#allocation8 + $0x94] sm:$0xf]
    %v1675 = vld [vmem:[#allocation8 + $0x98] sm:$0xf]
    %v1676 = vld [vmem:[#allocation8 + $0x9c] sm:$0xf]
    %v1677 = vld [vmem:[#allocation8 + $0xa0] sm:$0xf]
    %v1678 = vld [vmem:[#allocation8 + $0xa4] sm:$0xf]
    %v1679 = vld [vmem:[#allocation8 + $0xa8] sm:$0xf]
    %v1680 = vld [vmem:[#allocation8 + $0xac] sm:$0xf]
    %v1681 = vld [vmem:[#allocation8 + $0xb0] sm:$0xf]
    %v1682 = vld [vmem:[#allocation8 + $0xb4] sm:$0xf]
    %v1683 = vld [vmem:[#allocation8 + $0xb8] sm:$0xf]
    %v1684 = vld [vmem:[#allocation8 + $0xbc] sm:$0xf]
    %v1685 = vld [vmem:[#allocation8 + $0xc0] sm:$0xf]
    %v1686 = vld [vmem:[#allocation8 + $0xc4] sm:$0xf]
    %v1687 = vld [vmem:[#allocation8 + $0xc8] sm:$0xf]
    %v1688 = vld [vmem:[#allocation8 + $0xcc] sm:$0xf]
    %v1689 = vld [vmem:[#allocation8 + $0xd0] sm:$0xf]
    %v1690 = vld [vmem:[#allocation8 + $0xd4] sm:$0xf]
    %v1691 = vld [vmem:[#allocation8 + $0xd8] sm:$0xf]
    %v1692 = vld [vmem:[#allocation8 + $0xdc] sm:$0xf]
    %v1693 = vld [vmem:[#allocation8 + $0xe0] sm:$0xf]
    %v1694 = vld [vmem:[#allocation8 + $0xe4] sm:$0xf]
    %v1695 = vld [vmem:[#allocation8 + $0xe8] sm:$0xf]
    %v1696 = vld [vmem:[#allocation8 + $0xec] sm:$0xf]
    %v1697 = vld [vmem:[#allocation8 + $0xf0] sm:$0xf]
    %v1698 = vld [vmem:[#allocation8 + $0xf4] sm:$0xf]
    %v1699 = vld [vmem:[#allocation8 + $0xf8] sm:$0xf]
    %v1700 = vld [vmem:[#allocation8 + $0xfc] sm:$0xf]
    %v1701 = vld [vmem:[#allocation8 + $0x100] sm:$0xf]
    %v1702 = vld [vmem:[#allocation8 + $0x104] sm:$0xf]
    %v1703 = vld [vmem:[#allocation8 + $0x108] sm:$0xf]
    %v1704 = vld [vmem:[#allocation8 + $0x10c] sm:$0xf]
    %v1705 = vld [vmem:[#allocation8 + $0x110] sm:$0xf]
    %v1706 = vld [vmem:[#allocation8 + $0x114] sm:$0xf]
    %v1707 = vld [vmem:[#allocation8 + $0x118] sm:$0xf]
    %v1708 = vld [vmem:[#allocation8 + $0x11c] sm:$0xf]
    %v1709 = vld [vmem:[#allocation8 + $0x120] sm:$0xf]
    %v1710 = vld [vmem:[#allocation8 + $0x124] sm:$0xf]
    %v1711 = vld [vmem:[#allocation8 + $0x128] sm:$0xf]
    %v1712 = vld [vmem:[#allocation8 + $0x12c] sm:$0xf]
    %v1713 = vld [vmem:[#allocation8 + $0x130] sm:$0xf]
    %v1714 = vld [vmem:[#allocation8 + $0x134] sm:$0xf]
    %v1715 = vld [vmem:[#allocation8 + $0x138] sm:$0xf]
    %v1716 = vld [vmem:[#allocation8 + $0x13c] sm:$0xf]
    %v1717 = vld [vmem:[#allocation8 + $0x140] sm:$0xf]
    %v1718 = vld [vmem:[#allocation8 + $0x144] sm:$0xf]
    %v1719 = vld [vmem:[#allocation8 + $0x148] sm:$0xf]
    %v1720 = vld [vmem:[#allocation8 + $0x14c] sm:$0xf]
    %v1721 = vld [vmem:[#allocation8 + $0x150] sm:$0xf]
    %v1722 = vld [vmem:[#allocation8 + $0x154] sm:$0xf]
    %v1723 = vld [vmem:[#allocation8 + $0x158] sm:$0xf]
    %v1724 = vld [vmem:[#allocation8 + $0x15c] sm:$0xf]
    %v1725 = vld [vmem:[#allocation8 + $0x160] sm:$0xf]
    %v1726 = vld [vmem:[#allocation8 + $0x164] sm:$0xf]
    %v1727 = vld [vmem:[#allocation8 + $0x168] sm:$0xf]
    %v1728 = vld [vmem:[#allocation8 + $0x16c] sm:$0xf]
    %v1729 = vld [vmem:[#allocation8 + $0x170] sm:$0xf]
    %v1730 = vld [vmem:[#allocation8 + $0x174] sm:$0xf]
    %v1731 = vld [vmem:[#allocation8 + $0x178] sm:$0xf]
    %v1732 = vld [vmem:[#allocation8 + $0x17c] sm:$0xf]
    %v1733 = vld [vmem:[#allocation8 + $0x180] sm:$0xf]
    %v1734 = vld [vmem:[#allocation8 + $0x184] sm:$0xf]
    %v1735 = vld [vmem:[#allocation8 + $0x188] sm:$0xf]
    %v1736 = vld [vmem:[#allocation8 + $0x18c] sm:$0xf]
    %v1737 = vld [vmem:[#allocation8 + $0x190] sm:$0xf]
    %v1738 = vld [vmem:[#allocation8 + $0x194] sm:$0xf]
    %v1739 = vld [vmem:[#allocation8 + $0x198] sm:$0xf]
    %v1740 = vld [vmem:[#allocation8 + $0x19c] sm:$0xf]
    %v1741 = vld [vmem:[#allocation8 + $0x1a0] sm:$0xf]
    %v1742 = vld [vmem:[#allocation8 + $0x1a4] sm:$0xf]
    %v1743 = vld [vmem:[#allocation8 + $0x1a8] sm:$0xf]
    %v1744 = vld [vmem:[#allocation8 + $0x1ac] sm:$0xf]
    %v1745 = vld [vmem:[#allocation8 + $0x1b0] sm:$0xf]
    %v1746 = vld [vmem:[#allocation8 + $0x1b4] sm:$0xf]
    %v1747 = vld [vmem:[#allocation8 + $0x1b8] sm:$0xf]
    %v1748 = vld [vmem:[#allocation8 + $0x1bc] sm:$0xf]
    %v1749 = vld [vmem:[#allocation8 + $0x1c0] sm:$0xf]
    %v1750 = vld [vmem:[#allocation8 + $0x1c4] sm:$0xf]
    %v1751 = vld [vmem:[#allocation8 + $0x1c8] sm:$0xf]
    %v1752 = vld [vmem:[#allocation8 + $0x1cc] sm:$0xf]
    %v1753 = vld [vmem:[#allocation8 + $0x1d0] sm:$0xf]
    %v1754 = vld [vmem:[#allocation8 + $0x1d4] sm:$0xf]
    %v1755 = vld [vmem:[#allocation8 + $0x1d8] sm:$0xf]
    %v1756 = vld [vmem:[#allocation8 + $0x1dc] sm:$0xf]
    %v1757 = vld [vmem:[#allocation8 + $0x1e0] sm:$0xf]
    %v1758 = vld [vmem:[#allocation8 + $0x1e4] sm:$0xf]
    %v1759 = vld [vmem:[#allocation8 + $0x1e8] sm:$0xf]
    %v1760 = vld [vmem:[#allocation8 + $0x1ec] sm:$0xf]
    %v1761 = vld [vmem:[#allocation8 + $0x1f0] sm:$0xf]
    %v1762 = vld [vmem:[#allocation8 + $0x1f4] sm:$0xf]
    %v1763 = vld [vmem:[#allocation8 + $0x1f8] sm:$0xf]
    %v1764 = vld [vmem:[#allocation8 + $0x1fc] sm:$0xf]
    %v1765 = vld [vmem:[#allocation8 + $0x200] sm:$0xf]
    %v1766 = vld [vmem:[#allocation8 + $0x204] sm:$0xf]
    %v1767 = vld [vmem:[#allocation8 + $0x208] sm:$0xf]
    %v1768 = vld [vmem:[#allocation8 + $0x20c] sm:$0xf]
    %v1769 = vld [vmem:[#allocation8 + $0x210] sm:$0xf]
    %v1770 = vld [vmem:[#allocation8 + $0x214] sm:$0xf]
    %v1771 = vld [vmem:[#allocation8 + $0x218] sm:$0xf]
    %v1772 = vld [vmem:[#allocation8 + $0x21c] sm:$0xf]
    %v1773 = vld [vmem:[#allocation8 + $0x220] sm:$0xf]
    %v1774 = vld [vmem:[#allocation8 + $0x224] sm:$0xf]
    %v1775 = vld [vmem:[#allocation8 + $0x228] sm:$0xf]
    %v1776 = vld [vmem:[#allocation8 + $0x22c] sm:$0xf]
    %v1777 = vld [vmem:[#allocation8 + $0x230] sm:$0xf]
    %v1778 = vld [vmem:[#allocation8 + $0x234] sm:$0xf]
    %v1779 = vld [vmem:[#allocation8 + $0x238] sm:$0xf]
    %v1780 = vld [vmem:[#allocation8 + $0x23c] sm:$0xf]
    %v1781 = vld [vmem:[#allocation8 + $0x240] sm:$0xf]
    %v1782 = vld [vmem:[#allocation8 + $0x244] sm:$0xf]
    %v1783 = vld [vmem:[#allocation8 + $0x248] sm:$0xf]
    %v1784 = vld [vmem:[#allocation8 + $0x24c] sm:$0xf]
    %v1785 = vld [vmem:[#allocation8 + $0x250] sm:$0xf]
    %v1786 = vld [vmem:[#allocation8 + $0x254] sm:$0xf]
    %v1787 = vld [vmem:[#allocation8 + $0x258] sm:$0xf]
    %v1788 = vld [vmem:[#allocation8 + $0x25c] sm:$0xf]
    %v1789 = vld [vmem:[#allocation8 + $0x260] sm:$0xf]
    %v1790 = vld [vmem:[#allocation8 + $0x264] sm:$0xf]
    %v1791 = vld [vmem:[#allocation8 + $0x268] sm:$0xf]
    %v1792 = vld [vmem:[#allocation8 + $0x26c] sm:$0xf]
    %v1793 = vld [vmem:[#allocation8 + $0x270] sm:$0xf]
    %v1794 = vld [vmem:[#allocation8 + $0x274] sm:$0xf]
    %v1795 = vld [vmem:[#allocation8 + $0x278] sm:$0xf]
    %v1796 = vld [vmem:[#allocation8 + $0x27c] sm:$0xf]
    %v1797 = vld [vmem:[#allocation8 + $0x280] sm:$0xf]
    %v1798 = vld [vmem:[#allocation8 + $0x284] sm:$0xf]
    %v1799 = vld [vmem:[#allocation8 + $0x288] sm:$0xf]
    %v1800 = vld [vmem:[#allocation8 + $0x28c] sm:$0xf]
    %v1801 = vld [vmem:[#allocation8 + $0x290] sm:$0xf]
    %v1802 = vld [vmem:[#allocation8 + $0x294] sm:$0xf]
    %v1803 = vld [vmem:[#allocation8 + $0x298] sm:$0xf]
    %v1804 = vld [vmem:[#allocation8 + $0x29c] sm:$0xf]
    %v1805 = vld [vmem:[#allocation8 + $0x2a0] sm:$0xf]
    %v1806 = vld [vmem:[#allocation8 + $0x2a4] sm:$0xf]
    %v1807 = vld [vmem:[#allocation8 + $0x2a8] sm:$0xf]
    %v1808 = vld [vmem:[#allocation8 + $0x2ac] sm:$0xf]
    %v1809 = vld [vmem:[#allocation8 + $0x2b0] sm:$0xf]
    %v1810 = vld [vmem:[#allocation8 + $0x2b4] sm:$0xf]
    %v1811 = vld [vmem:[#allocation8 + $0x2b8] sm:$0xf]
    %v1812 = vld [vmem:[#allocation8 + $0x2bc] sm:$0xf]
    %v1813 = vld [vmem:[#allocation8 + $0x2c0] sm:$0xf]
    %v1814 = vld [vmem:[#allocation8 + $0x2c4] sm:$0xf]
    %v1815 = vld [vmem:[#allocation8 + $0x2c8] sm:$0xf]
    %v1816 = vld [vmem:[#allocation8 + $0x2cc] sm:$0xf]
    %v1817 = vld [vmem:[#allocation8 + $0x2d0] sm:$0xf]
    %v1818 = vld [vmem:[#allocation8 + $0x2d4] sm:$0xf]
    %v1819 = vld [vmem:[#allocation8 + $0x2d8] sm:$0xf]
    %v1820 = vld [vmem:[#allocation8 + $0x2dc] sm:$0xf]
    %v1821 = vld [vmem:[#allocation8 + $0x2e0] sm:$0xf]
    %v1822 = vld [vmem:[#allocation8 + $0x2e4] sm:$0xf]
    %v1823 = vld [vmem:[#allocation8 + $0x2e8] sm:$0xf]
    %v1824 = vld [vmem:[#allocation8 + $0x2ec] sm:$0xf]
    %v1825 = vld [vmem:[#allocation8 + $0x2f0] sm:$0xf]
    %v1826 = vld [vmem:[#allocation8 + $0x2f4] sm:$0xf]
    %v1827 = vld [vmem:[#allocation8 + $0x2f8] sm:$0xf]
    %v1828 = vld [vmem:[#allocation8 + $0x2fc] sm:$0xf]
    %v1829 = vld [vmem:[#allocation8 + $0x300] sm:$0xf]
    %v1830 = vld [vmem:[#allocation8 + $0x304] sm:$0xf]
    %v1831 = vld [vmem:[#allocation8 + $0x308] sm:$0xf]
    %v1832 = vld [vmem:[#allocation8 + $0x30c] sm:$0xf]
    %v1833 = vld [vmem:[#allocation8 + $0x310] sm:$0xf]
    %v1834 = vld [vmem:[#allocation8 + $0x314] sm:$0xf]
    %v1835 = vld [vmem:[#allocation8 + $0x318] sm:$0xf]
    %v1836 = vld [vmem:[#allocation8 + $0x31c] sm:$0xf]
    %v1837 = vld [vmem:[#allocation8 + $0x320] sm:$0xf]
    %v1838 = vld [vmem:[#allocation8 + $0x324] sm:$0xf]
    %v1839 = vld [vmem:[#allocation8 + $0x328] sm:$0xf]
    %v1840 = vld [vmem:[#allocation8 + $0x32c] sm:$0xf]
    %v1841 = vld [vmem:[#allocation8 + $0x330] sm:$0xf]
    %v1842 = vld [vmem:[#allocation8 + $0x334] sm:$0xf]
    %v1843 = vld [vmem:[#allocation8 + $0x338] sm:$0xf]
    %v1844 = vld [vmem:[#allocation8 + $0x33c] sm:$0xf]
    %v1845 = vld [vmem:[#allocation8 + $0x340] sm:$0xf]
    %v1846 = vld [vmem:[#allocation8 + $0x344] sm:$0xf]
    %v1847 = vld [vmem:[#allocation8 + $0x348] sm:$0xf]
    %v1848 = vld [vmem:[#allocation8 + $0x34c] sm:$0xf]
    %v1849 = vld [vmem:[#allocation8 + $0x350] sm:$0xf]
    %v1850 = vld [vmem:[#allocation8 + $0x354] sm:$0xf]
    %v1851 = vld [vmem:[#allocation8 + $0x358] sm:$0xf]
    %v1852 = vld [vmem:[#allocation8 + $0x35c] sm:$0xf]
    %v1853 = vld [vmem:[#allocation8 + $0x360] sm:$0xf]
    %v1854 = vld [vmem:[#allocation8 + $0x364] sm:$0xf]
    %v1855 = vld [vmem:[#allocation8 + $0x368] sm:$0xf]
    %v1856 = vld [vmem:[#allocation8 + $0x36c] sm:$0xf]
    %v1857 = vld [vmem:[#allocation8 + $0x370] sm:$0xf]
    %v1858 = vld [vmem:[#allocation8 + $0x374] sm:$0xf]
    %v1859 = vld [vmem:[#allocation8 + $0x378] sm:$0xf]
    %v1860 = vld [vmem:[#allocation8 + $0x37c] sm:$0xf]
    %v1861 = vunpack.c.l.bf16 %v1637
    %v1862 = vunpack.c.l.bf16 %v1638
    %v1863 = vunpack.c.l.bf16 %v1639
    %v1864 = vunpack.c.l.bf16 %v1640
    %v1865 = vunpack.c.l.bf16 %v1641
    %v1866 = vunpack.c.l.bf16 %v1642
    %v1867 = vunpack.c.l.bf16 %v1643
    %v1868 = vunpack.c.l.bf16 %v1644
    %v1869 = vunpack.c.l.bf16 %v1645
    %v1870 = vunpack.c.l.bf16 %v1646
    %v1871 = vunpack.c.l.bf16 %v1647
    %v1872 = vunpack.c.l.bf16 %v1648
    %v1873 = vunpack.c.l.bf16 %v1649
    %v1874 = vunpack.c.l.bf16 %v1650
    %v1875 = vunpack.c.l.bf16 %v1651
    %v1876 = vunpack.c.l.bf16 %v1652
    %v1877 = vunpack.c.l.bf16 %v1653
    %v1878 = vunpack.c.l.bf16 %v1654
    %v1879 = vunpack.c.l.bf16 %v1655
    %v1880 = vunpack.c.l.bf16 %v1656
    %v1881 = vunpack.c.l.bf16 %v1657
    %v1882 = vunpack.c.l.bf16 %v1658
    %v1883 = vunpack.c.l.bf16 %v1659
    %v1884 = vunpack.c.l.bf16 %v1660
    %v1885 = vunpack.c.l.bf16 %v1661
    %v1886 = vunpack.c.l.bf16 %v1662
    %v1887 = vunpack.c.l.bf16 %v1663
    %v1888 = vunpack.c.l.bf16 %v1664
    %v1889 = vunpack.c.l.bf16 %v1665
    %v1890 = vunpack.c.l.bf16 %v1666
    %v1891 = vunpack.c.l.bf16 %v1667
    %v1892 = vunpack.c.l.bf16 %v1668
    %v1893 = vunpack.c.l.bf16 %v1669
    %v1894 = vunpack.c.l.bf16 %v1670
    %v1895 = vunpack.c.l.bf16 %v1671
    %v1896 = vunpack.c.l.bf16 %v1672
    %v1897 = vunpack.c.l.bf16 %v1673
    %v1898 = vunpack.c.l.bf16 %v1674
    %v1899 = vunpack.c.l.bf16 %v1675
    %v1900 = vunpack.c.l.bf16 %v1676
    %v1901 = vunpack.c.l.bf16 %v1677
    %v1902 = vunpack.c.l.bf16 %v1678
    %v1903 = vunpack.c.l.bf16 %v1679
    %v1904 = vunpack.c.l.bf16 %v1680
    %v1905 = vunpack.c.l.bf16 %v1681
    %v1906 = vunpack.c.l.bf16 %v1682
    %v1907 = vunpack.c.l.bf16 %v1683
    %v1908 = vunpack.c.l.bf16 %v1684
    %v1909 = vunpack.c.l.bf16 %v1685
    %v1910 = vunpack.c.l.bf16 %v1686
    %v1911 = vunpack.c.l.bf16 %v1687
    %v1912 = vunpack.c.l.bf16 %v1688
    %v1913 = vunpack.c.l.bf16 %v1689
    %v1914 = vunpack.c.l.bf16 %v1690
    %v1915 = vunpack.c.l.bf16 %v1691
    %v1916 = vunpack.c.l.bf16 %v1692
    %v1917 = vunpack.c.l.bf16 %v1693
    %v1918 = vunpack.c.l.bf16 %v1694
    %v1919 = vunpack.c.l.bf16 %v1695
    %v1920 = vunpack.c.l.bf16 %v1696
    %v1921 = vunpack.c.l.bf16 %v1697
    %v1922 = vunpack.c.l.bf16 %v1698
    %v1923 = vunpack.c.l.bf16 %v1699
    %v1924 = vunpack.c.l.bf16 %v1700
    %v1925 = vunpack.c.l.bf16 %v1701
    %v1926 = vunpack.c.l.bf16 %v1702
    %v1927 = vunpack.c.l.bf16 %v1703
    %v1928 = vunpack.c.l.bf16 %v1704
    %v1929 = vunpack.c.l.bf16 %v1705
    %v1930 = vunpack.c.l.bf16 %v1706
    %v1931 = vunpack.c.l.bf16 %v1707
    %v1932 = vunpack.c.l.bf16 %v1708
    %v1933 = vunpack.c.l.bf16 %v1709
    %v1934 = vunpack.c.l.bf16 %v1710
    %v1935 = vunpack.c.l.bf16 %v1711
    %v1936 = vunpack.c.l.bf16 %v1712
    %v1937 = vunpack.c.l.bf16 %v1713
    %v1938 = vunpack.c.l.bf16 %v1714
    %v1939 = vunpack.c.l.bf16 %v1715
    %v1940 = vunpack.c.l.bf16 %v1716
    %v1941 = vunpack.c.l.bf16 %v1717
    %v1942 = vunpack.c.l.bf16 %v1718
    %v1943 = vunpack.c.l.bf16 %v1719
    %v1944 = vunpack.c.l.bf16 %v1720
    %v1945 = vunpack.c.l.bf16 %v1721
    %v1946 = vunpack.c.l.bf16 %v1722
    %v1947 = vunpack.c.l.bf16 %v1723
    %v1948 = vunpack.c.l.bf16 %v1724
    %v1949 = vunpack.c.l.bf16 %v1725
    %v1950 = vunpack.c.l.bf16 %v1726
    %v1951 = vunpack.c.l.bf16 %v1727
    %v1952 = vunpack.c.l.bf16 %v1728
    %v1953 = vunpack.c.l.bf16 %v1729
    %v1954 = vunpack.c.l.bf16 %v1730
    %v1955 = vunpack.c.l.bf16 %v1731
    %v1956 = vunpack.c.l.bf16 %v1732
    %v1957 = vunpack.c.l.bf16 %v1733
    %v1958 = vunpack.c.l.bf16 %v1734
    %v1959 = vunpack.c.l.bf16 %v1735
    %v1960 = vunpack.c.l.bf16 %v1736
    %v1961 = vunpack.c.l.bf16 %v1737
    %v1962 = vunpack.c.l.bf16 %v1738
    %v1963 = vunpack.c.l.bf16 %v1739
    %v1964 = vunpack.c.l.bf16 %v1740
    %v1965 = vunpack.c.l.bf16 %v1741
    %v1966 = vunpack.c.l.bf16 %v1742
    %v1967 = vunpack.c.l.bf16 %v1743
    %v1968 = vunpack.c.l.bf16 %v1744
    %v1969 = vunpack.c.l.bf16 %v1745
    %v1970 = vunpack.c.l.bf16 %v1746
    %v1971 = vunpack.c.l.bf16 %v1747
    %v1972 = vunpack.c.l.bf16 %v1748
    %v1973 = vunpack.c.l.bf16 %v1749
    %v1974 = vunpack.c.l.bf16 %v1750
    %v1975 = vunpack.c.l.bf16 %v1751
    %v1976 = vunpack.c.l.bf16 %v1752
    %v1977 = vunpack.c.l.bf16 %v1753
    %v1978 = vunpack.c.l.bf16 %v1754
    %v1979 = vunpack.c.l.bf16 %v1755
    %v1980 = vunpack.c.l.bf16 %v1756
    %v1981 = vunpack.c.l.bf16 %v1757
    %v1982 = vunpack.c.l.bf16 %v1758
    %v1983 = vunpack.c.l.bf16 %v1759
    %v1984 = vunpack.c.l.bf16 %v1760
    %v1985 = vunpack.c.l.bf16 %v1761
    %v1986 = vunpack.c.l.bf16 %v1762
    %v1987 = vunpack.c.l.bf16 %v1763
    %v1988 = vunpack.c.l.bf16 %v1764
    %v1989 = vunpack.c.l.bf16 %v1765
    %v1990 = vunpack.c.l.bf16 %v1766
    %v1991 = vunpack.c.l.bf16 %v1767
    %v1992 = vunpack.c.l.bf16 %v1768
    %v1993 = vunpack.c.l.bf16 %v1769
    %v1994 = vunpack.c.l.bf16 %v1770
    %v1995 = vunpack.c.l.bf16 %v1771
    %v1996 = vunpack.c.l.bf16 %v1772
    %v1997 = vunpack.c.l.bf16 %v1773
    %v1998 = vunpack.c.l.bf16 %v1774
    %v1999 = vunpack.c.l.bf16 %v1775
    %v2000 = vunpack.c.l.bf16 %v1776
    %v2001 = vunpack.c.l.bf16 %v1777
    %v2002 = vunpack.c.l.bf16 %v1778
    %v2003 = vunpack.c.l.bf16 %v1779
    %v2004 = vunpack.c.l.bf16 %v1780
    %v2005 = vunpack.c.l.bf16 %v1781
    %v2006 = vunpack.c.l.bf16 %v1782
    %v2007 = vunpack.c.l.bf16 %v1783
    %v2008 = vunpack.c.l.bf16 %v1784
    %v2009 = vunpack.c.l.bf16 %v1785
    %v2010 = vunpack.c.l.bf16 %v1786
    %v2011 = vunpack.c.l.bf16 %v1787
    %v2012 = vunpack.c.l.bf16 %v1788
    %v2013 = vunpack.c.l.bf16 %v1789
    %v2014 = vunpack.c.l.bf16 %v1790
    %v2015 = vunpack.c.l.bf16 %v1791
    %v2016 = vunpack.c.l.bf16 %v1792
    %v2017 = vunpack.c.l.bf16 %v1793
    %v2018 = vunpack.c.l.bf16 %v1794
    %v2019 = vunpack.c.l.bf16 %v1795
    %v2020 = vunpack.c.l.bf16 %v1796
    %v2021 = vunpack.c.l.bf16 %v1797
    %v2022 = vunpack.c.l.bf16 %v1798
    %v2023 = vunpack.c.l.bf16 %v1799
    %v2024 = vunpack.c.l.bf16 %v1800
    %v2025 = vunpack.c.l.bf16 %v1801
    %v2026 = vunpack.c.l.bf16 %v1802
    %v2027 = vunpack.c.l.bf16 %v1803
    %v2028 = vunpack.c.l.bf16 %v1804
    %v2029 = vunpack.c.l.bf16 %v1805
    %v2030 = vunpack.c.l.bf16 %v1806
    %v2031 = vunpack.c.l.bf16 %v1807
    %v2032 = vunpack.c.l.bf16 %v1808
    %v2033 = vunpack.c.l.bf16 %v1809
    %v2034 = vunpack.c.l.bf16 %v1810
    %v2035 = vunpack.c.l.bf16 %v1811
    %v2036 = vunpack.c.l.bf16 %v1812
    %v2037 = vunpack.c.l.bf16 %v1813
    %v2038 = vunpack.c.l.bf16 %v1814
    %v2039 = vunpack.c.l.bf16 %v1815
    %v2040 = vunpack.c.l.bf16 %v1816
    %v2041 = vunpack.c.l.bf16 %v1817
    %v2042 = vunpack.c.l.bf16 %v1818
    %v2043 = vunpack.c.l.bf16 %v1819
    %v2044 = vunpack.c.l.bf16 %v1820
    %v2045 = vunpack.c.l.bf16 %v1821
    %v2046 = vunpack.c.l.bf16 %v1822
    %v2047 = vunpack.c.l.bf16 %v1823
    %v2048 = vunpack.c.l.bf16 %v1824
    %v2049 = vunpack.c.l.bf16 %v1825
    %v2050 = vunpack.c.l.bf16 %v1826
    %v2051 = vunpack.c.l.bf16 %v1827
    %v2052 = vunpack.c.l.bf16 %v1828
    %v2053 = vunpack.c.l.bf16 %v1829
    %v2054 = vunpack.c.l.bf16 %v1830
    %v2055 = vunpack.c.l.bf16 %v1831
    %v2056 = vunpack.c.l.bf16 %v1832
    %v2057 = vunpack.c.l.bf16 %v1833
    %v2058 = vunpack.c.l.bf16 %v1834
    %v2059 = vunpack.c.l.bf16 %v1835
    %v2060 = vunpack.c.l.bf16 %v1836
    %v2061 = vunpack.c.l.bf16 %v1837
    %v2062 = vunpack.c.l.bf16 %v1838
    %v2063 = vunpack.c.l.bf16 %v1839
    %v2064 = vunpack.c.l.bf16 %v1840
    %v2065 = vunpack.c.l.bf16 %v1841
    %v2066 = vunpack.c.l.bf16 %v1842
    %v2067 = vunpack.c.l.bf16 %v1843
    %v2068 = vunpack.c.l.bf16 %v1844
    %v2069 = vunpack.c.l.bf16 %v1845
    %v2070 = vunpack.c.l.bf16 %v1846
    %v2071 = vunpack.c.l.bf16 %v1847
    %v2072 = vunpack.c.l.bf16 %v1848
    %v2073 = vunpack.c.l.bf16 %v1849
    %v2074 = vunpack.c.l.bf16 %v1850
    %v2075 = vunpack.c.l.bf16 %v1851
    %v2076 = vunpack.c.l.bf16 %v1852
    %v2077 = vunpack.c.l.bf16 %v1853
    %v2078 = vunpack.c.l.bf16 %v1854
    %v2079 = vunpack.c.l.bf16 %v1855
    %v2080 = vunpack.c.l.bf16 %v1856
    %v2081 = vunpack.c.l.bf16 %v1857
    %v2082 = vunpack.c.l.bf16 %v1858
    %v2083 = vunpack.c.l.bf16 %v1859
    %v2084 = vunpack.c.l.bf16 %v1860
    %v2085 = vld [vmem:[%s6] sm:$0x1]
    %v2087 = vlaneseq
    %v2088 = vshrl.u32 %v2087, 7
    %v2089 = vsub.s32 0, %v2088
    %v2090 = vrot.slane %v2085, %v2089
    %2092 = vmatprep.subr.mxu0 0.0
    %2093 = vmatpush1.msra.mxu0 %v1876
    %2094 = vmatprep.subr.mxu0 0.0
    %2095 = vmatpush1.msra.mxu0 %v1875
    %2096 = vmatprep.subr.mxu0 0.0
    %2097 = vmatpush1.msra.mxu0 %v1874
    %2098 = vmatprep.subr.mxu0 0.0
    %2099 = vmatpush1.msra.mxu0 %v1873
    %2100 = vmatprep.subr.mxu0 0.0
    %2101 = vmatpush1.msra.mxu0 %v1872
    %2102 = vmatprep.subr.mxu0 0.0
    %2103 = vmatpush1.msra.mxu0 %v1871
    %2104 = vmatprep.subr.mxu0 0.0
    %2105 = vmatpush1.msra.mxu0 %v1870
    %2106 = vmatprep.subr.mxu0 0.0
    %2107 = vmatpush1.msra.mxu0 %v1869
    %2108 = vmatprep.subr.mxu0 0.0
    %2109 = vmatpush1.msra.mxu0 %v1868
    %2110 = vmatprep.subr.mxu0 0.0
    %2111 = vmatpush1.msra.mxu0 %v1867
    %2112 = vmatprep.subr.mxu0 0.0
    %2113 = vmatpush1.msra.mxu0 %v1866
    %2114 = vmatprep.subr.mxu0 0.0
    %2115 = vmatpush1.msra.mxu0 %v1865
    %2116 = vmatprep.subr.mxu0 0.0
    %2117 = vmatpush1.msra.mxu0 %v1864
    %2118 = vmatprep.subr.mxu0 0.0
    %2119 = vmatpush1.msra.mxu0 %v1863
    %2120 = vmatprep.subr.mxu0 0.0
    %2121 = vmatpush1.msra.mxu0 %v1862
    %2122 = vmatprep.subr.mxu0 0.0
    %2123 = vmatpush1.msra.mxu0 %v1861
    %2124 = vmatprep.subr.mxu0 0.0
    %2125 = vmatpush2.msra.mxu0 %v1892
    %2126 = vmatprep.subr.mxu0 0.0
    %2127 = vmatpush2.msra.mxu0 %v1891
    %2128 = vmatprep.subr.mxu0 0.0
    %2129 = vmatpush2.msra.mxu0 %v1890
    %2130 = vmatprep.subr.mxu0 0.0
    %2131 = vmatpush2.msra.mxu0 %v1889
    %2132 = vmatprep.subr.mxu0 0.0
    %2133 = vmatpush2.msra.mxu0 %v1888
    %2134 = vmatprep.subr.mxu0 0.0
    %2135 = vmatpush2.msra.mxu0 %v1887
    %2136 = vmatprep.subr.mxu0 0.0
    %2137 = vmatpush2.msra.mxu0 %v1886
    %2138 = vmatprep.subr.mxu0 0.0
    %2139 = vmatpush2.msra.mxu0 %v1885
    %2140 = vmatprep.subr.mxu0 0.0
    %2141 = vmatpush2.msra.mxu0 %v1884
    %2142 = vmatprep.subr.mxu0 0.0
    %2143 = vmatpush2.msra.mxu0 %v1883
    %2144 = vmatprep.subr.mxu0 0.0
    %2145 = vmatpush2.msra.mxu0 %v1882
    %2146 = vmatprep.subr.mxu0 0.0
    %2147 = vmatpush2.msra.mxu0 %v1881
    %2148 = vmatprep.subr.mxu0 0.0
    %2149 = vmatpush2.msra.mxu0 %v1880
    %2150 = vmatprep.subr.mxu0 0.0
    %2151 = vmatpush2.msra.mxu0 %v1879
    %2152 = vmatprep.subr.mxu0 0.0
    %2153 = vmatpush2.msra.mxu0 %v1878
    %2154 = vmatprep.subr.mxu0 0.0
    %2155 = vmatpush2.msra.mxu0 %v1877
    %2156 = vmatprep.mubr.f32.mxu0 %v1624
    %2157 = vmatmul.mubr.f32.gmra.mxu0 %v1623
    %v2158 = vpop.f32.mrf.mxu0
    %v2159 = vadd.f32 %v2090, %v2158
    %v2160 = vpop.f32.mrf.mxu0
    %2161 = vdwg.mxu0
    %2162 = vmatprep.subr.mxu0 0.0
    %2163 = vmatpush1.msra.mxu0 %v1908
    %2164 = vmatprep.subr.mxu0 0.0
    %2165 = vmatpush1.msra.mxu0 %v1907
    %2166 = vmatprep.subr.mxu0 0.0
    %2167 = vmatpush1.msra.mxu0 %v1906
    %2168 = vmatprep.subr.mxu0 0.0
    %2169 = vmatpush1.msra.mxu0 %v1905
    %2170 = vmatprep.subr.mxu0 0.0
    %2171 = vmatpush1.msra.mxu0 %v1904
    %2172 = vmatprep.subr.mxu0 0.0
    %2173 = vmatpush1.msra.mxu0 %v1903
    %2174 = vmatprep.subr.mxu0 0.0
    %2175 = vmatpush1.msra.mxu0 %v1902
    %2176 = vmatprep.subr.mxu0 0.0
    %2177 = vmatpush1.msra.mxu0 %v1901
    %2178 = vmatprep.subr.mxu0 0.0
    %2179 = vmatpush1.msra.mxu0 %v1900
    %2180 = vmatprep.subr.mxu0 0.0
    %2181 = vmatpush1.msra.mxu0 %v1899
    %2182 = vmatprep.subr.mxu0 0.0
    %2183 = vmatpush1.msra.mxu0 %v1898
    %2184 = vmatprep.subr.mxu0 0.0
    %2185 = vmatpush1.msra.mxu0 %v1897
    %2186 = vmatprep.subr.mxu0 0.0
    %2187 = vmatpush1.msra.mxu0 %v1896
    %2188 = vmatprep.subr.mxu0 0.0
    %2189 = vmatpush1.msra.mxu0 %v1895
    %2190 = vmatprep.subr.mxu0 0.0
    %2191 = vmatpush1.msra.mxu0 %v1894
    %2192 = vmatprep.subr.mxu0 0.0
    %2193 = vmatpush1.msra.mxu0 %v1893
    %2194 = vmatprep.subr.mxu0 0.0
    %2195 = vmatpush2.msra.mxu0 %v1924
    %2196 = vmatprep.subr.mxu0 0.0
    %2197 = vmatpush2.msra.mxu0 %v1923
    %2198 = vmatprep.subr.mxu0 0.0
    %2199 = vmatpush2.msra.mxu0 %v1922
    %2200 = vmatprep.subr.mxu0 0.0
    %2201 = vmatpush2.msra.mxu0 %v1921
    %2202 = vmatprep.subr.mxu0 0.0
    %2203 = vmatpush2.msra.mxu0 %v1920
    %2204 = vmatprep.subr.mxu0 0.0
    %2205 = vmatpush2.msra.mxu0 %v1919
    %2206 = vmatprep.subr.mxu0 0.0
    %2207 = vmatpush2.msra.mxu0 %v1918
    %2208 = vmatprep.subr.mxu0 0.0
    %2209 = vmatpush2.msra.mxu0 %v1917
    %2210 = vmatprep.subr.mxu0 0.0
    %2211 = vmatpush2.msra.mxu0 %v1916
    %2212 = vmatprep.subr.mxu0 0.0
    %2213 = vmatpush2.msra.mxu0 %v1915
    %2214 = vmatprep.subr.mxu0 0.0
    %2215 = vmatpush2.msra.mxu0 %v1914
    %2216 = vmatprep.subr.mxu0 0.0
    %2217 = vmatpush2.msra.mxu0 %v1913
    %2218 = vmatprep.subr.mxu0 0.0
    %2219 = vmatpush2.msra.mxu0 %v1912
    %2220 = vmatprep.subr.mxu0 0.0
    %2221 = vmatpush2.msra.mxu0 %v1911
    %2222 = vmatprep.subr.mxu0 0.0
    %2223 = vmatpush2.msra.mxu0 %v1910
    %2224 = vmatprep.subr.mxu0 0.0
    %2225 = vmatpush2.msra.mxu0 %v1909
    %2226 = vmatprep.mubr.f32.mxu0 %v1626
    %2227 = vmatmul.mubr.f32.gmra.mxu0 %v1625
    %v2228 = vpop.f32.mrf.mxu0
    %v2229 = vadd.f32 %v2159, %v2228
    %v2230 = vpop.f32.mrf.mxu0
    %2231 = vdwg.mxu0
    %2232 = vmatprep.subr.mxu0 0.0
    %2233 = vmatpush1.msra.mxu0 %v1940
    %2234 = vmatprep.subr.mxu0 0.0
    %2235 = vmatpush1.msra.mxu0 %v1939
    %2236 = vmatprep.subr.mxu0 0.0
    %2237 = vmatpush1.msra.mxu0 %v1938
    %2238 = vmatprep.subr.mxu0 0.0
    %2239 = vmatpush1.msra.mxu0 %v1937
    %2240 = vmatprep.subr.mxu0 0.0
    %2241 = vmatpush1.msra.mxu0 %v1936
    %2242 = vmatprep.subr.mxu0 0.0
    %2243 = vmatpush1.msra.mxu0 %v1935
    %2244 = vmatprep.subr.mxu0 0.0
    %2245 = vmatpush1.msra.mxu0 %v1934
    %2246 = vmatprep.subr.mxu0 0.0
    %2247 = vmatpush1.msra.mxu0 %v1933
    %2248 = vmatprep.subr.mxu0 0.0
    %2249 = vmatpush1.msra.mxu0 %v1932
    %2250 = vmatprep.subr.mxu0 0.0
    %2251 = vmatpush1.msra.mxu0 %v1931
    %2252 = vmatprep.subr.mxu0 0.0
    %2253 = vmatpush1.msra.mxu0 %v1930
    %2254 = vmatprep.subr.mxu0 0.0
    %2255 = vmatpush1.msra.mxu0 %v1929
    %2256 = vmatprep.subr.mxu0 0.0
    %2257 = vmatpush1.msra.mxu0 %v1928
    %2258 = vmatprep.subr.mxu0 0.0
    %2259 = vmatpush1.msra.mxu0 %v1927
    %2260 = vmatprep.subr.mxu0 0.0
    %2261 = vmatpush1.msra.mxu0 %v1926
    %2262 = vmatprep.subr.mxu0 0.0
    %2263 = vmatpush1.msra.mxu0 %v1925
    %2264 = vmatprep.subr.mxu0 0.0
    %2265 = vmatpush2.msra.mxu0 %v1956
    %2266 = vmatprep.subr.mxu0 0.0
    %2267 = vmatpush2.msra.mxu0 %v1955
    %2268 = vmatprep.subr.mxu0 0.0
    %2269 = vmatpush2.msra.mxu0 %v1954
    %2270 = vmatprep.subr.mxu0 0.0
    %2271 = vmatpush2.msra.mxu0 %v1953
    %2272 = vmatprep.subr.mxu0 0.0
    %2273 = vmatpush2.msra.mxu0 %v1952
    %2274 = vmatprep.subr.mxu0 0.0
    %2275 = vmatpush2.msra.mxu0 %v1951
    %2276 = vmatprep.subr.mxu0 0.0
    %2277 = vmatpush2.msra.mxu0 %v1950
    %2278 = vmatprep.subr.mxu0 0.0
    %2279 = vmatpush2.msra.mxu0 %v1949
    %2280 = vmatprep.subr.mxu0 0.0
    %2281 = vmatpush2.msra.mxu0 %v1948
    %2282 = vmatprep.subr.mxu0 0.0
    %2283 = vmatpush2.msra.mxu0 %v1947
    %2284 = vmatprep.subr.mxu0 0.0
    %2285 = vmatpush2.msra.mxu0 %v1946
    %2286 = vmatprep.subr.mxu0 0.0
    %2287 = vmatpush2.msra.mxu0 %v1945
    %2288 = vmatprep.subr.mxu0 0.0
    %2289 = vmatpush2.msra.mxu0 %v1944
    %2290 = vmatprep.subr.mxu0 0.0
    %2291 = vmatpush2.msra.mxu0 %v1943
    %2292 = vmatprep.subr.mxu0 0.0
    %2293 = vmatpush2.msra.mxu0 %v1942
    %2294 = vmatprep.subr.mxu0 0.0
    %2295 = vmatpush2.msra.mxu0 %v1941
    %2296 = vmatprep.mubr.f32.mxu0 %v1628
    %2297 = vmatmul.mubr.f32.gmra.mxu0 %v1627
    %v2298 = vpop.f32.mrf.mxu0
    %v2299 = vadd.f32 %v2229, %v2298
    %v2300 = vpop.f32.mrf.mxu0
    %2301 = vdwg.mxu0
    %2302 = vmatprep.subr.mxu0 0.0
    %2303 = vmatpush1.msra.mxu0 %v1972
    %2304 = vmatprep.subr.mxu0 0.0
    %2305 = vmatpush1.msra.mxu0 %v1971
    %2306 = vmatprep.subr.mxu0 0.0
    %2307 = vmatpush1.msra.mxu0 %v1970
    %2308 = vmatprep.subr.mxu0 0.0
    %2309 = vmatpush1.msra.mxu0 %v1969
    %2310 = vmatprep.subr.mxu0 0.0
    %2311 = vmatpush1.msra.mxu0 %v1968
    %2312 = vmatprep.subr.mxu0 0.0
    %2313 = vmatpush1.msra.mxu0 %v1967
    %2314 = vmatprep.subr.mxu0 0.0
    %2315 = vmatpush1.msra.mxu0 %v1966
    %2316 = vmatprep.subr.mxu0 0.0
    %2317 = vmatpush1.msra.mxu0 %v1965
    %2318 = vmatprep.subr.mxu0 0.0
    %2319 = vmatpush1.msra.mxu0 %v1964
    %2320 = vmatprep.subr.mxu0 0.0
    %2321 = vmatpush1.msra.mxu0 %v1963
    %2322 = vmatprep.subr.mxu0 0.0
    %2323 = vmatpush1.msra.mxu0 %v1962
    %2324 = vmatprep.subr.mxu0 0.0
    %2325 = vmatpush1.msra.mxu0 %v1961
    %2326 = vmatprep.subr.mxu0 0.0
    %2327 = vmatpush1.msra.mxu0 %v1960
    %2328 = vmatprep.subr.mxu0 0.0
    %2329 = vmatpush1.msra.mxu0 %v1959
    %2330 = vmatprep.subr.mxu0 0.0
    %2331 = vmatpush1.msra.mxu0 %v1958
    %2332 = vmatprep.subr.mxu0 0.0
    %2333 = vmatpush1.msra.mxu0 %v1957
    %2334 = vmatprep.subr.mxu0 0.0
    %2335 = vmatpush2.msra.mxu0 %v1988
    %2336 = vmatprep.subr.mxu0 0.0
    %2337 = vmatpush2.msra.mxu0 %v1987
    %2338 = vmatprep.subr.mxu0 0.0
    %2339 = vmatpush2.msra.mxu0 %v1986
    %2340 = vmatprep.subr.mxu0 0.0
    %2341 = vmatpush2.msra.mxu0 %v1985
    %2342 = vmatprep.subr.mxu0 0.0
    %2343 = vmatpush2.msra.mxu0 %v1984
    %2344 = vmatprep.subr.mxu0 0.0
    %2345 = vmatpush2.msra.mxu0 %v1983
    %2346 = vmatprep.subr.mxu0 0.0
    %2347 = vmatpush2.msra.mxu0 %v1982
    %2348 = vmatprep.subr.mxu0 0.0
    %2349 = vmatpush2.msra.mxu0 %v1981
    %2350 = vmatprep.subr.mxu0 0.0
    %2351 = vmatpush2.msra.mxu0 %v1980
    %2352 = vmatprep.subr.mxu0 0.0
    %2353 = vmatpush2.msra.mxu0 %v1979
    %2354 = vmatprep.subr.mxu0 0.0
    %2355 = vmatpush2.msra.mxu0 %v1978
    %2356 = vmatprep.subr.mxu0 0.0
    %2357 = vmatpush2.msra.mxu0 %v1977
    %2358 = vmatprep.subr.mxu0 0.0
    %2359 = vmatpush2.msra.mxu0 %v1976
    %2360 = vmatprep.subr.mxu0 0.0
    %2361 = vmatpush2.msra.mxu0 %v1975
    %2362 = vmatprep.subr.mxu0 0.0
    %2363 = vmatpush2.msra.mxu0 %v1974
    %2364 = vmatprep.subr.mxu0 0.0
    %2365 = vmatpush2.msra.mxu0 %v1973
    %2366 = vmatprep.mubr.f32.mxu0 %v1630
    %2367 = vmatmul.mubr.f32.gmra.mxu0 %v1629
    %v2368 = vpop.f32.mrf.mxu0
    %v2369 = vadd.f32 %v2299, %v2368
    %v2370 = vpop.f32.mrf.mxu0
    %2371 = vdwg.mxu0
    %2372 = vmatprep.subr.mxu0 0.0
    %2373 = vmatpush1.msra.mxu0 %v2004
    %2374 = vmatprep.subr.mxu0 0.0
    %2375 = vmatpush1.msra.mxu0 %v2003
    %2376 = vmatprep.subr.mxu0 0.0
    %2377 = vmatpush1.msra.mxu0 %v2002
    %2378 = vmatprep.subr.mxu0 0.0
    %2379 = vmatpush1.msra.mxu0 %v2001
    %2380 = vmatprep.subr.mxu0 0.0
    %2381 = vmatpush1.msra.mxu0 %v2000
    %2382 = vmatprep.subr.mxu0 0.0
    %2383 = vmatpush1.msra.mxu0 %v1999
    %2384 = vmatprep.subr.mxu0 0.0
    %2385 = vmatpush1.msra.mxu0 %v1998
    %2386 = vmatprep.subr.mxu0 0.0
    %2387 = vmatpush1.msra.mxu0 %v1997
    %2388 = vmatprep.subr.mxu0 0.0
    %2389 = vmatpush1.msra.mxu0 %v1996
    %2390 = vmatprep.subr.mxu0 0.0
    %2391 = vmatpush1.msra.mxu0 %v1995
    %2392 = vmatprep.subr.mxu0 0.0
    %2393 = vmatpush1.msra.mxu0 %v1994
    %2394 = vmatprep.subr.mxu0 0.0
    %2395 = vmatpush1.msra.mxu0 %v1993
    %2396 = vmatprep.subr.mxu0 0.0
    %2397 = vmatpush1.msra.mxu0 %v1992
    %2398 = vmatprep.subr.mxu0 0.0
    %2399 = vmatpush1.msra.mxu0 %v1991
    %2400 = vmatprep.subr.mxu0 0.0
    %2401 = vmatpush1.msra.mxu0 %v1990
    %2402 = vmatprep.subr.mxu0 0.0
    %2403 = vmatpush1.msra.mxu0 %v1989
    %2404 = vmatprep.subr.mxu0 0.0
    %2405 = vmatpush2.msra.mxu0 %v2020
    %2406 = vmatprep.subr.mxu0 0.0
    %2407 = vmatpush2.msra.mxu0 %v2019
    %2408 = vmatprep.subr.mxu0 0.0
    %2409 = vmatpush2.msra.mxu0 %v2018
    %2410 = vmatprep.subr.mxu0 0.0
    %2411 = vmatpush2.msra.mxu0 %v2017
    %2412 = vmatprep.subr.mxu0 0.0
    %2413 = vmatpush2.msra.mxu0 %v2016
    %2414 = vmatprep.subr.mxu0 0.0
    %2415 = vmatpush2.msra.mxu0 %v2015
    %2416 = vmatprep.subr.mxu0 0.0
    %2417 = vmatpush2.msra.mxu0 %v2014
    %2418 = vmatprep.subr.mxu0 0.0
    %2419 = vmatpush2.msra.mxu0 %v2013
    %2420 = vmatprep.subr.mxu0 0.0
    %2421 = vmatpush2.msra.mxu0 %v2012
    %2422 = vmatprep.subr.mxu0 0.0
    %2423 = vmatpush2.msra.mxu0 %v2011
    %2424 = vmatprep.subr.mxu0 0.0
    %2425 = vmatpush2.msra.mxu0 %v2010
    %2426 = vmatprep.subr.mxu0 0.0
    %2427 = vmatpush2.msra.mxu0 %v2009
    %2428 = vmatprep.subr.mxu0 0.0
    %2429 = vmatpush2.msra.mxu0 %v2008
    %2430 = vmatprep.subr.mxu0 0.0
    %2431 = vmatpush2.msra.mxu0 %v2007
    %2432 = vmatprep.subr.mxu0 0.0
    %2433 = vmatpush2.msra.mxu0 %v2006
    %2434 = vmatprep.subr.mxu0 0.0
    %2435 = vmatpush2.msra.mxu0 %v2005
    %2436 = vmatprep.mubr.f32.mxu0 %v1632
    %2437 = vmatmul.mubr.f32.gmra.mxu0 %v1631
    %v2438 = vpop.f32.mrf.mxu0
    %v2439 = vadd.f32 %v2369, %v2438
    %v2440 = vpop.f32.mrf.mxu0
    %2441 = vdwg.mxu0
    %2442 = vmatprep.subr.mxu0 0.0
    %2443 = vmatpush1.msra.mxu0 %v2036
    %2444 = vmatprep.subr.mxu0 0.0
    %2445 = vmatpush1.msra.mxu0 %v2035
    %2446 = vmatprep.subr.mxu0 0.0
    %2447 = vmatpush1.msra.mxu0 %v2034
    %2448 = vmatprep.subr.mxu0 0.0
    %2449 = vmatpush1.msra.mxu0 %v2033
    %2450 = vmatprep.subr.mxu0 0.0
    %2451 = vmatpush1.msra.mxu0 %v2032
    %2452 = vmatprep.subr.mxu0 0.0
    %2453 = vmatpush1.msra.mxu0 %v2031
    %2454 = vmatprep.subr.mxu0 0.0
    %2455 = vmatpush1.msra.mxu0 %v2030
    %2456 = vmatprep.subr.mxu0 0.0
    %2457 = vmatpush1.msra.mxu0 %v2029
    %2458 = vmatprep.subr.mxu0 0.0
    %2459 = vmatpush1.msra.mxu0 %v2028
    %2460 = vmatprep.subr.mxu0 0.0
    %2461 = vmatpush1.msra.mxu0 %v2027
    %2462 = vmatprep.subr.mxu0 0.0
    %2463 = vmatpush1.msra.mxu0 %v2026
    %2464 = vmatprep.subr.mxu0 0.0
    %2465 = vmatpush1.msra.mxu0 %v2025
    %2466 = vmatprep.subr.mxu0 0.0
    %2467 = vmatpush1.msra.mxu0 %v2024
    %2468 = vmatprep.subr.mxu0 0.0
    %2469 = vmatpush1.msra.mxu0 %v2023
    %2470 = vmatprep.subr.mxu0 0.0
    %2471 = vmatpush1.msra.mxu0 %v2022
    %2472 = vmatprep.subr.mxu0 0.0
    %2473 = vmatpush1.msra.mxu0 %v2021
    %2474 = vmatprep.subr.mxu0 0.0
    %2475 = vmatpush2.msra.mxu0 %v2052
    %2476 = vmatprep.subr.mxu0 0.0
    %2477 = vmatpush2.msra.mxu0 %v2051
    %2478 = vmatprep.subr.mxu0 0.0
    %2479 = vmatpush2.msra.mxu0 %v2050
    %2480 = vmatprep.subr.mxu0 0.0
    %2481 = vmatpush2.msra.mxu0 %v2049
    %2482 = vmatprep.subr.mxu0 0.0
    %2483 = vmatpush2.msra.mxu0 %v2048
    %2484 = vmatprep.subr.mxu0 0.0
    %2485 = vmatpush2.msra.mxu0 %v2047
    %2486 = vmatprep.subr.mxu0 0.0
    %2487 = vmatpush2.msra.mxu0 %v2046
    %2488 = vmatprep.subr.mxu0 0.0
    %2489 = vmatpush2.msra.mxu0 %v2045
    %2490 = vmatprep.subr.mxu0 0.0
    %2491 = vmatpush2.msra.mxu0 %v2044
    %2492 = vmatprep.subr.mxu0 0.0
    %2493 = vmatpush2.msra.mxu0 %v2043
    %2494 = vmatprep.subr.mxu0 0.0
    %2495 = vmatpush2.msra.mxu0 %v2042
    %2496 = vmatprep.subr.mxu0 0.0
    %2497 = vmatpush2.msra.mxu0 %v2041
    %2498 = vmatprep.subr.mxu0 0.0
    %2499 = vmatpush2.msra.mxu0 %v2040
    %2500 = vmatprep.subr.mxu0 0.0
    %2501 = vmatpush2.msra.mxu0 %v2039
    %2502 = vmatprep.subr.mxu0 0.0
    %2503 = vmatpush2.msra.mxu0 %v2038
    %2504 = vmatprep.subr.mxu0 0.0
    %2505 = vmatpush2.msra.mxu0 %v2037
    %2506 = vmatprep.mubr.f32.mxu0 %v1634
    %2507 = vmatmul.mubr.f32.gmra.mxu0 %v1633
    %v2508 = vpop.f32.mrf.mxu0
    %v2509 = vadd.f32 %v2439, %v2508
    %v2510 = vpop.f32.mrf.mxu0
    %2511 = vdwg.mxu0
    %2512 = vmatprep.subr.mxu0 0.0
    %2513 = vmatpush1.msra.mxu0 %v2068
    %2514 = vmatprep.subr.mxu0 0.0
    %2515 = vmatpush1.msra.mxu0 %v2067
    %2516 = vmatprep.subr.mxu0 0.0
    %2517 = vmatpush1.msra.mxu0 %v2066
    %2518 = vmatprep.subr.mxu0 0.0
    %2519 = vmatpush1.msra.mxu0 %v2065
    %2520 = vmatprep.subr.mxu0 0.0
    %2521 = vmatpush1.msra.mxu0 %v2064
    %2522 = vmatprep.subr.mxu0 0.0
    %2523 = vmatpush1.msra.mxu0 %v2063
    %2524 = vmatprep.subr.mxu0 0.0
    %2525 = vmatpush1.msra.mxu0 %v2062
    %2526 = vmatprep.subr.mxu0 0.0
    %2527 = vmatpush1.msra.mxu0 %v2061
    %2528 = vmatprep.subr.mxu0 0.0
    %2529 = vmatpush1.msra.mxu0 %v2060
    %2530 = vmatprep.subr.mxu0 0.0
    %2531 = vmatpush1.msra.mxu0 %v2059
    %2532 = vmatprep.subr.mxu0 0.0
    %2533 = vmatpush1.msra.mxu0 %v2058
    %2534 = vmatprep.subr.mxu0 0.0
    %2535 = vmatpush1.msra.mxu0 %v2057
    %2536 = vmatprep.subr.mxu0 0.0
    %2537 = vmatpush1.msra.mxu0 %v2056
    %2538 = vmatprep.subr.mxu0 0.0
    %2539 = vmatpush1.msra.mxu0 %v2055
    %2540 = vmatprep.subr.mxu0 0.0
    %2541 = vmatpush1.msra.mxu0 %v2054
    %2542 = vmatprep.subr.mxu0 0.0
    %2543 = vmatpush1.msra.mxu0 %v2053
    %2544 = vmatprep.subr.mxu0 0.0
    %2545 = vmatpush2.msra.mxu0 %v2084
    %2546 = vmatprep.subr.mxu0 0.0
    %2547 = vmatpush2.msra.mxu0 %v2083
    %2548 = vmatprep.subr.mxu0 0.0
    %2549 = vmatpush2.msra.mxu0 %v2082
    %2550 = vmatprep.subr.mxu0 0.0
    %2551 = vmatpush2.msra.mxu0 %v2081
    %2552 = vmatprep.subr.mxu0 0.0
    %2553 = vmatpush2.msra.mxu0 %v2080
    %2554 = vmatprep.subr.mxu0 0.0
    %2555 = vmatpush2.msra.mxu0 %v2079
    %2556 = vmatprep.subr.mxu0 0.0
    %2557 = vmatpush2.msra.mxu0 %v2078
    %2558 = vmatprep.subr.mxu0 0.0
    %2559 = vmatpush2.msra.mxu0 %v2077
    %2560 = vmatprep.subr.mxu0 0.0
    %2561 = vmatpush2.msra.mxu0 %v2076
    %2562 = vmatprep.subr.mxu0 0.0
    %2563 = vmatpush2.msra.mxu0 %v2075
    %2564 = vmatprep.subr.mxu0 0.0
    %2565 = vmatpush2.msra.mxu0 %v2074
    %2566 = vmatprep.subr.mxu0 0.0
    %2567 = vmatpush2.msra.mxu0 %v2073
    %2568 = vmatprep.subr.mxu0 0.0
    %2569 = vmatpush2.msra.mxu0 %v2072
    %2570 = vmatprep.subr.mxu0 0.0
    %2571 = vmatpush2.msra.mxu0 %v2071
    %2572 = vmatprep.subr.mxu0 0.0
    %2573 = vmatpush2.msra.mxu0 %v2070
    %2574 = vmatprep.subr.mxu0 0.0
    %2575 = vmatpush2.msra.mxu0 %v2069
    %2576 = vmatprep.mubr.f32.mxu0 %v1636
    %2577 = vmatmul.mubr.f32.gmra.mxu0 %v1635
    %v2578 = vpop.f32.mrf.mxu0
    %v2579 = vadd.f32 %v2509, %v2578
    %v2580 = vpop.f32.mrf.mxu0
    %2581 = vdwg.mxu0
    %v2582 = vxor.u32 %v2579, 2147483648
    %v2583 = vmul.f32 %v2582, 1.442695
    %v2584 = vpow.pop %v2583
    %v2585 = vadd.f32 %v2584, 1.0
    %v2586 = vrcp.pop %v2585
    %v2587 = vmul.f32 1.0, %v2586
    %2588 = vst [vmem:[%s17] sm:$0xff] %v2587
    %v2589 = vld [vmem:[#allocation2] sm:$0xff]
    %v2590 = vld [vmem:[#allocation2 + $0x8] sm:$0xff]
    %v2591 = vld [vmem:[#allocation2 + $0x10] sm:$0xff]
    %v2592 = vld [vmem:[#allocation2 + $0x18] sm:$0xff]
    %v2593 = vld [vmem:[#allocation2 + $0x20] sm:$0xff]
    %v2594 = vld [vmem:[#allocation2 + $0x28] sm:$0xff]
    %v2595 = vld [vmem:[#allocation2 + $0x30] sm:$0xff]
    %v2596 = vld [vmem:[#allocation9] sm:$0xff]
    %v2597 = vld [vmem:[#allocation9 + $0x8] sm:$0xff]
    %v2598 = vld [vmem:[#allocation9 + $0x10] sm:$0xff]
    %v2599 = vld [vmem:[#allocation9 + $0x18] sm:$0xff]
    %v2600 = vld [vmem:[#allocation9 + $0x20] sm:$0xff]
    %v2601 = vld [vmem:[#allocation9 + $0x28] sm:$0xff]
    %v2602 = vld [vmem:[#allocation9 + $0x30] sm:$0xff]
    %v2603 = vld [vmem:[#allocation9 + $0x38] sm:$0xff]
    %v2604 = vld [vmem:[#allocation9 + $0x40] sm:$0xff]
    %v2605 = vld [vmem:[#allocation9 + $0x48] sm:$0xff]
    %v2606 = vld [vmem:[#allocation9 + $0x50] sm:$0xff]
    %v2607 = vld [vmem:[#allocation9 + $0x58] sm:$0xff]
    %v2608 = vld [vmem:[#allocation9 + $0x60] sm:$0xff]
    %v2609 = vld [vmem:[#allocation9 + $0x68] sm:$0xff]
    %v2610 = vld [vmem:[#allocation9 + $0x70] sm:$0xff]
    %v2611 = vld [vmem:[#allocation9 + $0x78] sm:$0xff]
    %v2612 = vld [vmem:[#allocation9 + $0x80] sm:$0xff]
    %v2613 = vld [vmem:[#allocation9 + $0x88] sm:$0xff]
    %v2614 = vld [vmem:[#allocation9 + $0x90] sm:$0xff]
    %v2615 = vld [vmem:[#allocation9 + $0x98] sm:$0xff]
    %v2616 = vld [vmem:[#allocation9 + $0xa0] sm:$0xff]
    %v2617 = vld [vmem:[#allocation9 + $0xa8] sm:$0xff]
    %v2618 = vld [vmem:[#allocation9 + $0xb0] sm:$0xff]
    %v2619 = vld [vmem:[#allocation9 + $0xb8] sm:$0xff]
    %v2620 = vld [vmem:[#allocation9 + $0xc0] sm:$0xff]
    %v2621 = vld [vmem:[#allocation9 + $0xc8] sm:$0xff]
    %v2622 = vld [vmem:[#allocation9 + $0xd0] sm:$0xff]
    %v2623 = vld [vmem:[#allocation9 + $0xd8] sm:$0xff]
    %v2624 = vld [vmem:[#allocation9 + $0xe0] sm:$0xff]
    %v2625 = vld [vmem:[#allocation9 + $0xe8] sm:$0xff]
    %v2626 = vld [vmem:[#allocation9 + $0xf0] sm:$0xff]
    %v2627 = vld [vmem:[#allocation9 + $0xf8] sm:$0xff]
    %v2628 = vld [vmem:[#allocation9 + $0x100] sm:$0xff]
    %v2629 = vld [vmem:[#allocation9 + $0x108] sm:$0xff]
    %v2630 = vld [vmem:[#allocation9 + $0x110] sm:$0xff]
    %v2631 = vld [vmem:[#allocation9 + $0x118] sm:$0xff]
    %v2632 = vld [vmem:[#allocation9 + $0x120] sm:$0xff]
    %v2633 = vld [vmem:[#allocation9 + $0x128] sm:$0xff]
    %v2634 = vld [vmem:[#allocation9 + $0x130] sm:$0xff]
    %v2635 = vld [vmem:[#allocation9 + $0x138] sm:$0xff]
    %v2636 = vld [vmem:[#allocation9 + $0x140] sm:$0xff]
    %v2637 = vld [vmem:[#allocation9 + $0x148] sm:$0xff]
    %v2638 = vld [vmem:[#allocation9 + $0x150] sm:$0xff]
    %v2639 = vld [vmem:[#allocation9 + $0x158] sm:$0xff]
    %v2640 = vld [vmem:[#allocation9 + $0x160] sm:$0xff]
    %v2641 = vld [vmem:[#allocation9 + $0x168] sm:$0xff]
    %v2642 = vld [vmem:[#allocation9 + $0x170] sm:$0xff]
    %v2643 = vld [vmem:[#allocation9 + $0x178] sm:$0xff]
    %v2644 = vld [vmem:[#allocation9 + $0x180] sm:$0xff]
    %v2645 = vld [vmem:[#allocation9 + $0x188] sm:$0xff]
    %v2646 = vld [vmem:[#allocation9 + $0x190] sm:$0xff]
    %v2647 = vld [vmem:[#allocation9 + $0x198] sm:$0xff]
    %v2648 = vld [vmem:[#allocation9 + $0x1a0] sm:$0xff]
    %v2649 = vld [vmem:[#allocation9 + $0x1a8] sm:$0xff]
    %v2650 = vld [vmem:[#allocation9 + $0x1b0] sm:$0xff]
    %v2651 = vld [vmem:[#allocation9 + $0x1b8] sm:$0xff]
    %v2652 = vld [vmem:[#allocation9 + $0x1c0] sm:$0xff]
    %v2653 = vld [vmem:[#allocation9 + $0x1c8] sm:$0xff]
    %v2654 = vld [vmem:[#allocation9 + $0x1d0] sm:$0xff]
    %v2655 = vld [vmem:[#allocation9 + $0x1d8] sm:$0xff]
    %v2656 = vld [vmem:[#allocation9 + $0x1e0] sm:$0xff]
    %v2657 = vld [vmem:[#allocation9 + $0x1e8] sm:$0xff]
    %v2658 = vld [vmem:[#allocation9 + $0x1f0] sm:$0xff]
    %v2659 = vld [vmem:[#allocation9 + $0x1f8] sm:$0xff]
    %v2660 = vld [vmem:[#allocation9 + $0x200] sm:$0xff]
    %v2661 = vld [vmem:[#allocation9 + $0x208] sm:$0xff]
    %v2662 = vld [vmem:[#allocation9 + $0x210] sm:$0xff]
    %v2663 = vld [vmem:[#allocation9 + $0x218] sm:$0xff]
    %v2664 = vld [vmem:[#allocation9 + $0x220] sm:$0xff]
    %v2665 = vld [vmem:[#allocation9 + $0x228] sm:$0xff]
    %v2666 = vld [vmem:[#allocation9 + $0x230] sm:$0xff]
    %v2667 = vld [vmem:[#allocation9 + $0x238] sm:$0xff]
    %v2668 = vld [vmem:[#allocation9 + $0x240] sm:$0xff]
    %v2669 = vld [vmem:[#allocation9 + $0x248] sm:$0xff]
    %v2670 = vld [vmem:[#allocation9 + $0x250] sm:$0xff]
    %v2671 = vld [vmem:[#allocation9 + $0x258] sm:$0xff]
    %v2672 = vld [vmem:[#allocation9 + $0x260] sm:$0xff]
    %v2673 = vld [vmem:[#allocation9 + $0x268] sm:$0xff]
    %v2674 = vld [vmem:[#allocation9 + $0x270] sm:$0xff]
    %v2675 = vld [vmem:[#allocation9 + $0x278] sm:$0xff]
    %v2676 = vld [vmem:[#allocation9 + $0x280] sm:$0xff]
    %v2677 = vld [vmem:[#allocation9 + $0x288] sm:$0xff]
    %v2678 = vld [vmem:[#allocation9 + $0x290] sm:$0xff]
    %v2679 = vld [vmem:[#allocation9 + $0x298] sm:$0xff]
    %v2680 = vld [vmem:[#allocation9 + $0x2a0] sm:$0xff]
    %v2681 = vld [vmem:[#allocation9 + $0x2a8] sm:$0xff]
    %v2682 = vld [vmem:[#allocation9 + $0x2b0] sm:$0xff]
    %v2683 = vld [vmem:[#allocation9 + $0x2b8] sm:$0xff]
    %v2684 = vld [vmem:[#allocation9 + $0x2c0] sm:$0xff]
    %v2685 = vld [vmem:[#allocation9 + $0x2c8] sm:$0xff]
    %v2686 = vld [vmem:[#allocation9 + $0x2d0] sm:$0xff]
    %v2687 = vld [vmem:[#allocation9 + $0x2d8] sm:$0xff]
    %v2688 = vld [vmem:[#allocation9 + $0x2e0] sm:$0xff]
    %v2689 = vld [vmem:[#allocation9 + $0x2e8] sm:$0xff]
    %v2690 = vld [vmem:[#allocation9 + $0x2f0] sm:$0xff]
    %v2691 = vld [vmem:[#allocation9 + $0x2f8] sm:$0xff]
    %v2692 = vld [vmem:[#allocation9 + $0x300] sm:$0xff]
    %v2693 = vld [vmem:[#allocation9 + $0x308] sm:$0xff]
    %v2694 = vld [vmem:[#allocation9 + $0x310] sm:$0xff]
    %v2695 = vld [vmem:[#allocation9 + $0x318] sm:$0xff]
    %v2696 = vld [vmem:[#allocation9 + $0x320] sm:$0xff]
    %v2697 = vld [vmem:[#allocation9 + $0x328] sm:$0xff]
    %v2698 = vld [vmem:[#allocation9 + $0x330] sm:$0xff]
    %v2699 = vld [vmem:[#allocation9 + $0x338] sm:$0xff]
    %v2700 = vld [vmem:[#allocation9 + $0x340] sm:$0xff]
    %v2701 = vld [vmem:[#allocation9 + $0x348] sm:$0xff]
    %v2702 = vld [vmem:[#allocation9 + $0x350] sm:$0xff]
    %v2703 = vld [vmem:[#allocation9 + $0x358] sm:$0xff]
    %v2704 = vld [vmem:[#allocation9 + $0x360] sm:$0xff]
    %v2705 = vld [vmem:[#allocation9 + $0x368] sm:$0xff]
    %v2706 = vld [vmem:[#allocation9 + $0x370] sm:$0xff]
    %v2707 = vld [vmem:[#allocation9 + $0x378] sm:$0xff]
    %v2708 = vunpack.c.l.bf16 %v2596
    %v2709 = vunpack.c.h.bf16 %v2596
    %v2710 = vunpack.c.l.bf16 %v2597
    %v2711 = vunpack.c.h.bf16 %v2597
    %v2712 = vunpack.c.l.bf16 %v2598
    %v2713 = vunpack.c.h.bf16 %v2598
    %v2714 = vunpack.c.l.bf16 %v2599
    %v2715 = vunpack.c.h.bf16 %v2599
    %v2716 = vunpack.c.l.bf16 %v2600
    %v2717 = vunpack.c.h.bf16 %v2600
    %v2718 = vunpack.c.l.bf16 %v2601
    %v2719 = vunpack.c.h.bf16 %v2601
    %v2720 = vunpack.c.l.bf16 %v2602
    %v2721 = vunpack.c.h.bf16 %v2602
    %v2722 = vunpack.c.l.bf16 %v2603
    %v2723 = vunpack.c.h.bf16 %v2603
    %v2724 = vunpack.c.l.bf16 %v2604
    %v2725 = vunpack.c.h.bf16 %v2604
    %v2726 = vunpack.c.l.bf16 %v2605
    %v2727 = vunpack.c.h.bf16 %v2605
    %v2728 = vunpack.c.l.bf16 %v2606
    %v2729 = vunpack.c.h.bf16 %v2606
    %v2730 = vunpack.c.l.bf16 %v2607
    %v2731 = vunpack.c.h.bf16 %v2607
    %v2732 = vunpack.c.l.bf16 %v2608
    %v2733 = vunpack.c.h.bf16 %v2608
    %v2734 = vunpack.c.l.bf16 %v2609
    %v2735 = vunpack.c.h.bf16 %v2609
    %v2736 = vunpack.c.l.bf16 %v2610
    %v2737 = vunpack.c.h.bf16 %v2610
    %v2738 = vunpack.c.l.bf16 %v2611
    %v2739 = vunpack.c.h.bf16 %v2611
    %v2740 = vunpack.c.l.bf16 %v2612
    %v2741 = vunpack.c.h.bf16 %v2612
    %v2742 = vunpack.c.l.bf16 %v2613
    %v2743 = vunpack.c.h.bf16 %v2613
    %v2744 = vunpack.c.l.bf16 %v2614
    %v2745 = vunpack.c.h.bf16 %v2614
    %v2746 = vunpack.c.l.bf16 %v2615
    %v2747 = vunpack.c.h.bf16 %v2615
    %v2748 = vunpack.c.l.bf16 %v2616
    %v2749 = vunpack.c.h.bf16 %v2616
    %v2750 = vunpack.c.l.bf16 %v2617
    %v2751 = vunpack.c.h.bf16 %v2617
    %v2752 = vunpack.c.l.bf16 %v2618
    %v2753 = vunpack.c.h.bf16 %v2618
    %v2754 = vunpack.c.l.bf16 %v2619
    %v2755 = vunpack.c.h.bf16 %v2619
    %v2756 = vunpack.c.l.bf16 %v2620
    %v2757 = vunpack.c.h.bf16 %v2620
    %v2758 = vunpack.c.l.bf16 %v2621
    %v2759 = vunpack.c.h.bf16 %v2621
    %v2760 = vunpack.c.l.bf16 %v2622
    %v2761 = vunpack.c.h.bf16 %v2622
    %v2762 = vunpack.c.l.bf16 %v2623
    %v2763 = vunpack.c.h.bf16 %v2623
    %v2764 = vunpack.c.l.bf16 %v2624
    %v2765 = vunpack.c.h.bf16 %v2624
    %v2766 = vunpack.c.l.bf16 %v2625
    %v2767 = vunpack.c.h.bf16 %v2625
    %v2768 = vunpack.c.l.bf16 %v2626
    %v2769 = vunpack.c.h.bf16 %v2626
    %v2770 = vunpack.c.l.bf16 %v2627
    %v2771 = vunpack.c.h.bf16 %v2627
    %v2772 = vunpack.c.l.bf16 %v2628
    %v2773 = vunpack.c.h.bf16 %v2628
    %v2774 = vunpack.c.l.bf16 %v2629
    %v2775 = vunpack.c.h.bf16 %v2629
    %v2776 = vunpack.c.l.bf16 %v2630
    %v2777 = vunpack.c.h.bf16 %v2630
    %v2778 = vunpack.c.l.bf16 %v2631
    %v2779 = vunpack.c.h.bf16 %v2631
    %v2780 = vunpack.c.l.bf16 %v2632
    %v2781 = vunpack.c.h.bf16 %v2632
    %v2782 = vunpack.c.l.bf16 %v2633
    %v2783 = vunpack.c.h.bf16 %v2633
    %v2784 = vunpack.c.l.bf16 %v2634
    %v2785 = vunpack.c.h.bf16 %v2634
    %v2786 = vunpack.c.l.bf16 %v2635
    %v2787 = vunpack.c.h.bf16 %v2635
    %v2788 = vunpack.c.l.bf16 %v2636
    %v2789 = vunpack.c.h.bf16 %v2636
    %v2790 = vunpack.c.l.bf16 %v2637
    %v2791 = vunpack.c.h.bf16 %v2637
    %v2792 = vunpack.c.l.bf16 %v2638
    %v2793 = vunpack.c.h.bf16 %v2638
    %v2794 = vunpack.c.l.bf16 %v2639
    %v2795 = vunpack.c.h.bf16 %v2639
    %v2796 = vunpack.c.l.bf16 %v2640
    %v2797 = vunpack.c.h.bf16 %v2640
    %v2798 = vunpack.c.l.bf16 %v2641
    %v2799 = vunpack.c.h.bf16 %v2641
    %v2800 = vunpack.c.l.bf16 %v2642
    %v2801 = vunpack.c.h.bf16 %v2642
    %v2802 = vunpack.c.l.bf16 %v2643
    %v2803 = vunpack.c.h.bf16 %v2643
    %v2804 = vunpack.c.l.bf16 %v2644
    %v2805 = vunpack.c.h.bf16 %v2644
    %v2806 = vunpack.c.l.bf16 %v2645
    %v2807 = vunpack.c.h.bf16 %v2645
    %v2808 = vunpack.c.l.bf16 %v2646
    %v2809 = vunpack.c.h.bf16 %v2646
    %v2810 = vunpack.c.l.bf16 %v2647
    %v2811 = vunpack.c.h.bf16 %v2647
    %v2812 = vunpack.c.l.bf16 %v2648
    %v2813 = vunpack.c.h.bf16 %v2648
    %v2814 = vunpack.c.l.bf16 %v2649
    %v2815 = vunpack.c.h.bf16 %v2649
    %v2816 = vunpack.c.l.bf16 %v2650
    %v2817 = vunpack.c.h.bf16 %v2650
    %v2818 = vunpack.c.l.bf16 %v2651
    %v2819 = vunpack.c.h.bf16 %v2651
    %v2820 = vunpack.c.l.bf16 %v2652
    %v2821 = vunpack.c.h.bf16 %v2652
    %v2822 = vunpack.c.l.bf16 %v2653
    %v2823 = vunpack.c.h.bf16 %v2653
    %v2824 = vunpack.c.l.bf16 %v2654
    %v2825 = vunpack.c.h.bf16 %v2654
    %v2826 = vunpack.c.l.bf16 %v2655
    %v2827 = vunpack.c.h.bf16 %v2655
    %v2828 = vunpack.c.l.bf16 %v2656
    %v2829 = vunpack.c.h.bf16 %v2656
    %v2830 = vunpack.c.l.bf16 %v2657
    %v2831 = vunpack.c.h.bf16 %v2657
    %v2832 = vunpack.c.l.bf16 %v2658
    %v2833 = vunpack.c.h.bf16 %v2658
    %v2834 = vunpack.c.l.bf16 %v2659
    %v2835 = vunpack.c.h.bf16 %v2659
    %v2836 = vunpack.c.l.bf16 %v2660
    %v2837 = vunpack.c.h.bf16 %v2660
    %v2838 = vunpack.c.l.bf16 %v2661
    %v2839 = vunpack.c.h.bf16 %v2661
    %v2840 = vunpack.c.l.bf16 %v2662
    %v2841 = vunpack.c.h.bf16 %v2662
    %v2842 = vunpack.c.l.bf16 %v2663
    %v2843 = vunpack.c.h.bf16 %v2663
    %v2844 = vunpack.c.l.bf16 %v2664
    %v2845 = vunpack.c.h.bf16 %v2664
    %v2846 = vunpack.c.l.bf16 %v2665
    %v2847 = vunpack.c.h.bf16 %v2665
    %v2848 = vunpack.c.l.bf16 %v2666
    %v2849 = vunpack.c.h.bf16 %v2666
    %v2850 = vunpack.c.l.bf16 %v2667
    %v2851 = vunpack.c.h.bf16 %v2667
    %v2852 = vunpack.c.l.bf16 %v2668
    %v2853 = vunpack.c.h.bf16 %v2668
    %v2854 = vunpack.c.l.bf16 %v2669
    %v2855 = vunpack.c.h.bf16 %v2669
    %v2856 = vunpack.c.l.bf16 %v2670
    %v2857 = vunpack.c.h.bf16 %v2670
    %v2858 = vunpack.c.l.bf16 %v2671
    %v2859 = vunpack.c.h.bf16 %v2671
    %v2860 = vunpack.c.l.bf16 %v2672
    %v2861 = vunpack.c.h.bf16 %v2672
    %v2862 = vunpack.c.l.bf16 %v2673
    %v2863 = vunpack.c.h.bf16 %v2673
    %v2864 = vunpack.c.l.bf16 %v2674
    %v2865 = vunpack.c.h.bf16 %v2674
    %v2866 = vunpack.c.l.bf16 %v2675
    %v2867 = vunpack.c.h.bf16 %v2675
    %v2868 = vunpack.c.l.bf16 %v2676
    %v2869 = vunpack.c.h.bf16 %v2676
    %v2870 = vunpack.c.l.bf16 %v2677
    %v2871 = vunpack.c.h.bf16 %v2677
    %v2872 = vunpack.c.l.bf16 %v2678
    %v2873 = vunpack.c.h.bf16 %v2678
    %v2874 = vunpack.c.l.bf16 %v2679
    %v2875 = vunpack.c.h.bf16 %v2679
    %v2876 = vunpack.c.l.bf16 %v2680
    %v2877 = vunpack.c.h.bf16 %v2680
    %v2878 = vunpack.c.l.bf16 %v2681
    %v2879 = vunpack.c.h.bf16 %v2681
    %v2880 = vunpack.c.l.bf16 %v2682
    %v2881 = vunpack.c.h.bf16 %v2682
    %v2882 = vunpack.c.l.bf16 %v2683
    %v2883 = vunpack.c.h.bf16 %v2683
    %v2884 = vunpack.c.l.bf16 %v2684
    %v2885 = vunpack.c.h.bf16 %v2684
    %v2886 = vunpack.c.l.bf16 %v2685
    %v2887 = vunpack.c.h.bf16 %v2685
    %v2888 = vunpack.c.l.bf16 %v2686
    %v2889 = vunpack.c.h.bf16 %v2686
    %v2890 = vunpack.c.l.bf16 %v2687
    %v2891 = vunpack.c.h.bf16 %v2687
    %v2892 = vunpack.c.l.bf16 %v2688
    %v2893 = vunpack.c.h.bf16 %v2688
    %v2894 = vunpack.c.l.bf16 %v2689
    %v2895 = vunpack.c.h.bf16 %v2689
    %v2896 = vunpack.c.l.bf16 %v2690
    %v2897 = vunpack.c.h.bf16 %v2690
    %v2898 = vunpack.c.l.bf16 %v2691
    %v2899 = vunpack.c.h.bf16 %v2691
    %v2900 = vunpack.c.l.bf16 %v2692
    %v2901 = vunpack.c.h.bf16 %v2692
    %v2902 = vunpack.c.l.bf16 %v2693
    %v2903 = vunpack.c.h.bf16 %v2693
    %v2904 = vunpack.c.l.bf16 %v2694
    %v2905 = vunpack.c.h.bf16 %v2694
    %v2906 = vunpack.c.l.bf16 %v2695
    %v2907 = vunpack.c.h.bf16 %v2695
    %v2908 = vunpack.c.l.bf16 %v2696
    %v2909 = vunpack.c.h.bf16 %v2696
    %v2910 = vunpack.c.l.bf16 %v2697
    %v2911 = vunpack.c.h.bf16 %v2697
    %v2912 = vunpack.c.l.bf16 %v2698
    %v2913 = vunpack.c.h.bf16 %v2698
    %v2914 = vunpack.c.l.bf16 %v2699
    %v2915 = vunpack.c.h.bf16 %v2699
    %v2916 = vunpack.c.l.bf16 %v2700
    %v2917 = vunpack.c.h.bf16 %v2700
    %v2918 = vunpack.c.l.bf16 %v2701
    %v2919 = vunpack.c.h.bf16 %v2701
    %v2920 = vunpack.c.l.bf16 %v2702
    %v2921 = vunpack.c.h.bf16 %v2702
    %v2922 = vunpack.c.l.bf16 %v2703
    %v2923 = vunpack.c.h.bf16 %v2703
    %v2924 = vunpack.c.l.bf16 %v2704
    %v2925 = vunpack.c.h.bf16 %v2704
    %v2926 = vunpack.c.l.bf16 %v2705
    %v2927 = vunpack.c.h.bf16 %v2705
    %v2928 = vunpack.c.l.bf16 %v2706
    %v2929 = vunpack.c.h.bf16 %v2706
    %v2930 = vunpack.c.l.bf16 %v2707
    %v2931 = vunpack.c.h.bf16 %v2707
    %v2932 = vld [vmem:[%s8] sm:$0x3]
    %v2934 = vlaneseq
    %v2935 = vshrl.u32 %v2934, 7
    %v2936 = vsub.s32 0, %v2935
    %v2937 = vrot.slane %v2932, %v2936
    %v2938 = vlaneseq
    %v2939 = vshrl.u32 %v2938, 7
    %v2940 = vsub.s32 1, %v2939
    %v2941 = vrot.slane %v2932, %v2940
    %2944 = vmatprep.subr.mxu0 %v2739
    %2945 = vmatpush1.msra.mxu0 %v2738
    %2946 = vmatprep.subr.mxu0 %v2737
    %2947 = vmatpush1.msra.mxu0 %v2736
    %2948 = vmatprep.subr.mxu0 %v2735
    %2949 = vmatpush1.msra.mxu0 %v2734
    %2950 = vmatprep.subr.mxu0 %v2733
    %2951 = vmatpush1.msra.mxu0 %v2732
    %2952 = vmatprep.subr.mxu0 %v2731
    %2953 = vmatpush1.msra.mxu0 %v2730
    %2954 = vmatprep.subr.mxu0 %v2729
    %2955 = vmatpush1.msra.mxu0 %v2728
    %2956 = vmatprep.subr.mxu0 %v2727
    %2957 = vmatpush1.msra.mxu0 %v2726
    %2958 = vmatprep.subr.mxu0 %v2725
    %2959 = vmatpush1.msra.mxu0 %v2724
    %2960 = vmatprep.subr.mxu0 %v2723
    %2961 = vmatpush1.msra.mxu0 %v2722
    %2962 = vmatprep.subr.mxu0 %v2721
    %2963 = vmatpush1.msra.mxu0 %v2720
    %2964 = vmatprep.subr.mxu0 %v2719
    %2965 = vmatpush1.msra.mxu0 %v2718
    %2966 = vmatprep.subr.mxu0 %v2717
    %2967 = vmatpush1.msra.mxu0 %v2716
    %2968 = vmatprep.subr.mxu0 %v2715
    %2969 = vmatpush1.msra.mxu0 %v2714
    %2970 = vmatprep.subr.mxu0 %v2713
    %2971 = vmatpush1.msra.mxu0 %v2712
    %2972 = vmatprep.subr.mxu0 %v2711
    %2973 = vmatpush1.msra.mxu0 %v2710
    %2974 = vmatprep.subr.mxu0 %v2709
    %2975 = vmatpush1.msra.mxu0 %v2708
    %2976 = vmatprep.subr.mxu0 %v2771
    %2977 = vmatpush2.msra.mxu0 %v2770
    %2978 = vmatprep.subr.mxu0 %v2769
    %2979 = vmatpush2.msra.mxu0 %v2768
    %2980 = vmatprep.subr.mxu0 %v2767
    %2981 = vmatpush2.msra.mxu0 %v2766
    %2982 = vmatprep.subr.mxu0 %v2765
    %2983 = vmatpush2.msra.mxu0 %v2764
    %2984 = vmatprep.subr.mxu0 %v2763
    %2985 = vmatpush2.msra.mxu0 %v2762
    %2986 = vmatprep.subr.mxu0 %v2761
    %2987 = vmatpush2.msra.mxu0 %v2760
    %2988 = vmatprep.subr.mxu0 %v2759
    %2989 = vmatpush2.msra.mxu0 %v2758
    %2990 = vmatprep.subr.mxu0 %v2757
    %2991 = vmatpush2.msra.mxu0 %v2756
    %2992 = vmatprep.subr.mxu0 %v2755
    %2993 = vmatpush2.msra.mxu0 %v2754
    %2994 = vmatprep.subr.mxu0 %v2753
    %2995 = vmatpush2.msra.mxu0 %v2752
    %2996 = vmatprep.subr.mxu0 %v2751
    %2997 = vmatpush2.msra.mxu0 %v2750
    %2998 = vmatprep.subr.mxu0 %v2749
    %2999 = vmatpush2.msra.mxu0 %v2748
    %3000 = vmatprep.subr.mxu0 %v2747
    %3001 = vmatpush2.msra.mxu0 %v2746
    %3002 = vmatprep.subr.mxu0 %v2745
    %3003 = vmatpush2.msra.mxu0 %v2744
    %3004 = vmatprep.subr.mxu0 %v2743
    %3005 = vmatpush2.msra.mxu0 %v2742
    %3006 = vmatprep.subr.mxu0 %v2741
    %3007 = vmatpush2.msra.mxu0 %v2740
    %3008 = vmatprep.mubr.f32.mxu0 %v2590
    %3009 = vmatmul.mubr.f32.gmra.mxu0 %v2589
    %v3010 = vpop.f32.mrf.mxu0
    %v3011 = vadd.f32 %v2937, %v3010
    %v3012 = vpop.f32.mrf.mxu0
    %v3013 = vadd.f32 %v2941, %v3012
    %3014 = vdwg.mxu0
    %3015 = vmatprep.subr.mxu0 %v2803
    %3016 = vmatpush1.msra.mxu0 %v2802
    %3017 = vmatprep.subr.mxu0 %v2801
    %3018 = vmatpush1.msra.mxu0 %v2800
    %3019 = vmatprep.subr.mxu0 %v2799
    %3020 = vmatpush1.msra.mxu0 %v2798
    %3021 = vmatprep.subr.mxu0 %v2797
    %3022 = vmatpush1.msra.mxu0 %v2796
    %3023 = vmatprep.subr.mxu0 %v2795
    %3024 = vmatpush1.msra.mxu0 %v2794
    %3025 = vmatprep.subr.mxu0 %v2793
    %3026 = vmatpush1.msra.mxu0 %v2792
    %3027 = vmatprep.subr.mxu0 %v2791
    %3028 = vmatpush1.msra.mxu0 %v2790
    %3029 = vmatprep.subr.mxu0 %v2789
    %3030 = vmatpush1.msra.mxu0 %v2788
    %3031 = vmatprep.subr.mxu0 %v2787
    %3032 = vmatpush1.msra.mxu0 %v2786
    %3033 = vmatprep.subr.mxu0 %v2785
    %3034 = vmatpush1.msra.mxu0 %v2784
    %3035 = vmatprep.subr.mxu0 %v2783
    %3036 = vmatpush1.msra.mxu0 %v2782
    %3037 = vmatprep.subr.mxu0 %v2781
    %3038 = vmatpush1.msra.mxu0 %v2780
    %3039 = vmatprep.subr.mxu0 %v2779
    %3040 = vmatpush1.msra.mxu0 %v2778
    %3041 = vmatprep.subr.mxu0 %v2777
    %3042 = vmatpush1.msra.mxu0 %v2776
    %3043 = vmatprep.subr.mxu0 %v2775
    %3044 = vmatpush1.msra.mxu0 %v2774
    %3045 = vmatprep.subr.mxu0 %v2773
    %3046 = vmatpush1.msra.mxu0 %v2772
    %3047 = vmatprep.subr.mxu0 %v2835
    %3048 = vmatpush2.msra.mxu0 %v2834
    %3049 = vmatprep.subr.mxu0 %v2833
    %3050 = vmatpush2.msra.mxu0 %v2832
    %3051 = vmatprep.subr.mxu0 %v2831
    %3052 = vmatpush2.msra.mxu0 %v2830
    %3053 = vmatprep.subr.mxu0 %v2829
    %3054 = vmatpush2.msra.mxu0 %v2828
    %3055 = vmatprep.subr.mxu0 %v2827
    %3056 = vmatpush2.msra.mxu0 %v2826
    %3057 = vmatprep.subr.mxu0 %v2825
    %3058 = vmatpush2.msra.mxu0 %v2824
    %3059 = vmatprep.subr.mxu0 %v2823
    %3060 = vmatpush2.msra.mxu0 %v2822
    %3061 = vmatprep.subr.mxu0 %v2821
    %3062 = vmatpush2.msra.mxu0 %v2820
    %3063 = vmatprep.subr.mxu0 %v2819
    %3064 = vmatpush2.msra.mxu0 %v2818
    %3065 = vmatprep.subr.mxu0 %v2817
    %3066 = vmatpush2.msra.mxu0 %v2816
    %3067 = vmatprep.subr.mxu0 %v2815
    %3068 = vmatpush2.msra.mxu0 %v2814
    %3069 = vmatprep.subr.mxu0 %v2813
    %3070 = vmatpush2.msra.mxu0 %v2812
    %3071 = vmatprep.subr.mxu0 %v2811
    %3072 = vmatpush2.msra.mxu0 %v2810
    %3073 = vmatprep.subr.mxu0 %v2809
    %3074 = vmatpush2.msra.mxu0 %v2808
    %3075 = vmatprep.subr.mxu0 %v2807
    %3076 = vmatpush2.msra.mxu0 %v2806
    %3077 = vmatprep.subr.mxu0 %v2805
    %3078 = vmatpush2.msra.mxu0 %v2804
    %3079 = vmatprep.mubr.f32.mxu0 %v2592
    %3080 = vmatmul.mubr.f32.gmra.mxu0 %v2591
    %v3081 = vpop.f32.mrf.mxu0
    %v3082 = vadd.f32 %v3011, %v3081
    %v3083 = vpop.f32.mrf.mxu0
    %v3084 = vadd.f32 %v3013, %v3083
    %3085 = vdwg.mxu0
    %3086 = vmatprep.subr.mxu0 %v2867
    %3087 = vmatpush1.msra.mxu0 %v2866
    %3088 = vmatprep.subr.mxu0 %v2865
    %3089 = vmatpush1.msra.mxu0 %v2864
    %3090 = vmatprep.subr.mxu0 %v2863
    %3091 = vmatpush1.msra.mxu0 %v2862
    %3092 = vmatprep.subr.mxu0 %v2861
    %3093 = vmatpush1.msra.mxu0 %v2860
    %3094 = vmatprep.subr.mxu0 %v2859
    %3095 = vmatpush1.msra.mxu0 %v2858
    %3096 = vmatprep.subr.mxu0 %v2857
    %3097 = vmatpush1.msra.mxu0 %v2856
    %3098 = vmatprep.subr.mxu0 %v2855
    %3099 = vmatpush1.msra.mxu0 %v2854
    %3100 = vmatprep.subr.mxu0 %v2853
    %3101 = vmatpush1.msra.mxu0 %v2852
    %3102 = vmatprep.subr.mxu0 %v2851
    %3103 = vmatpush1.msra.mxu0 %v2850
    %3104 = vmatprep.subr.mxu0 %v2849
    %3105 = vmatpush1.msra.mxu0 %v2848
    %3106 = vmatprep.subr.mxu0 %v2847
    %3107 = vmatpush1.msra.mxu0 %v2846
    %3108 = vmatprep.subr.mxu0 %v2845
    %3109 = vmatpush1.msra.mxu0 %v2844
    %3110 = vmatprep.subr.mxu0 %v2843
    %3111 = vmatpush1.msra.mxu0 %v2842
    %3112 = vmatprep.subr.mxu0 %v2841
    %3113 = vmatpush1.msra.mxu0 %v2840
    %3114 = vmatprep.subr.mxu0 %v2839
    %3115 = vmatpush1.msra.mxu0 %v2838
    %3116 = vmatprep.subr.mxu0 %v2837
    %3117 = vmatpush1.msra.mxu0 %v2836
    %3118 = vmatprep.subr.mxu0 %v2899
    %3119 = vmatpush2.msra.mxu0 %v2898
    %3120 = vmatprep.subr.mxu0 %v2897
    %3121 = vmatpush2.msra.mxu0 %v2896
    %3122 = vmatprep.subr.mxu0 %v2895
    %3123 = vmatpush2.msra.mxu0 %v2894
    %3124 = vmatprep.subr.mxu0 %v2893
    %3125 = vmatpush2.msra.mxu0 %v2892
    %3126 = vmatprep.subr.mxu0 %v2891
    %3127 = vmatpush2.msra.mxu0 %v2890
    %3128 = vmatprep.subr.mxu0 %v2889
    %3129 = vmatpush2.msra.mxu0 %v2888
    %3130 = vmatprep.subr.mxu0 %v2887
    %3131 = vmatpush2.msra.mxu0 %v2886
    %3132 = vmatprep.subr.mxu0 %v2885
    %3133 = vmatpush2.msra.mxu0 %v2884
    %3134 = vmatprep.subr.mxu0 %v2883
    %3135 = vmatpush2.msra.mxu0 %v2882
    %3136 = vmatprep.subr.mxu0 %v2881
    %3137 = vmatpush2.msra.mxu0 %v2880
    %3138 = vmatprep.subr.mxu0 %v2879
    %3139 = vmatpush2.msra.mxu0 %v2878
    %3140 = vmatprep.subr.mxu0 %v2877
    %3141 = vmatpush2.msra.mxu0 %v2876
    %3142 = vmatprep.subr.mxu0 %v2875
    %3143 = vmatpush2.msra.mxu0 %v2874
    %3144 = vmatprep.subr.mxu0 %v2873
    %3145 = vmatpush2.msra.mxu0 %v2872
    %3146 = vmatprep.subr.mxu0 %v2871
    %3147 = vmatpush2.msra.mxu0 %v2870
    %3148 = vmatprep.subr.mxu0 %v2869
    %3149 = vmatpush2.msra.mxu0 %v2868
    %3150 = vmatprep.mubr.f32.mxu0 %v2594
    %3151 = vmatmul.mubr.f32.gmra.mxu0 %v2593
    %v3152 = vpop.f32.mrf.mxu0
    %v3153 = vadd.f32 %v3082, %v3152
    %v3154 = vpop.f32.mrf.mxu0
    %v3155 = vadd.f32 %v3084, %v3154
    %3156 = vdwg.mxu0
    %3157 = vmatprep.subr.mxu0 %v2931
    %3158 = vmatpush1.msra.mxu0 %v2930
    %3159 = vmatprep.subr.mxu0 %v2929
    %3160 = vmatpush1.msra.mxu0 %v2928
    %3161 = vmatprep.subr.mxu0 %v2927
    %3162 = vmatpush1.msra.mxu0 %v2926
    %3163 = vmatprep.subr.mxu0 %v2925
    %3164 = vmatpush1.msra.mxu0 %v2924
    %3165 = vmatprep.subr.mxu0 %v2923
    %3166 = vmatpush1.msra.mxu0 %v2922
    %3167 = vmatprep.subr.mxu0 %v2921
    %3168 = vmatpush1.msra.mxu0 %v2920
    %3169 = vmatprep.subr.mxu0 %v2919
    %3170 = vmatpush1.msra.mxu0 %v2918
    %3171 = vmatprep.subr.mxu0 %v2917
    %3172 = vmatpush1.msra.mxu0 %v2916
    %3173 = vmatprep.subr.mxu0 %v2915
    %3174 = vmatpush1.msra.mxu0 %v2914
    %3175 = vmatprep.subr.mxu0 %v2913
    %3176 = vmatpush1.msra.mxu0 %v2912
    %3177 = vmatprep.subr.mxu0 %v2911
    %3178 = vmatpush1.msra.mxu0 %v2910
    %3179 = vmatprep.subr.mxu0 %v2909
    %3180 = vmatpush1.msra.mxu0 %v2908
    %3181 = vmatprep.subr.mxu0 %v2907
    %3182 = vmatpush1.msra.mxu0 %v2906
    %3183 = vmatprep.subr.mxu0 %v2905
    %3184 = vmatpush1.msra.mxu0 %v2904
    %3185 = vmatprep.subr.mxu0 %v2903
    %3186 = vmatpush1.msra.mxu0 %v2902
    %3187 = vmatprep.subr.mxu0 %v2901
    %3188 = vmatpush1.msra.mxu0 %v2900
    %3189 = vmatprep.subr.mxu0 0.0
    %3190 = vmatpush2.msra.mxu0 0.0
    %3191 = vmatprep.subr.mxu0 0.0
    %3192 = vmatpush2.msra.mxu0 0.0
    %3193 = vmatprep.subr.mxu0 0.0
    %3194 = vmatpush2.msra.mxu0 0.0
    %3195 = vmatprep.subr.mxu0 0.0
    %3196 = vmatpush2.msra.mxu0 0.0
    %3197 = vmatprep.subr.mxu0 0.0
    %3198 = vmatpush2.msra.mxu0 0.0
    %3199 = vmatprep.subr.mxu0 0.0
    %3200 = vmatpush2.msra.mxu0 0.0
    %3201 = vmatprep.subr.mxu0 0.0
    %3202 = vmatpush2.msra.mxu0 0.0
    %3203 = vmatprep.subr.mxu0 0.0
    %3204 = vmatpush2.msra.mxu0 0.0
    %3205 = vmatprep.subr.mxu0 0.0
    %3206 = vmatpush2.msra.mxu0 0.0
    %3207 = vmatprep.subr.mxu0 0.0
    %3208 = vmatpush2.msra.mxu0 0.0
    %3209 = vmatprep.subr.mxu0 0.0
    %3210 = vmatpush2.msra.mxu0 0.0
    %3211 = vmatprep.subr.mxu0 0.0
    %3212 = vmatpush2.msra.mxu0 0.0
    %3213 = vmatprep.subr.mxu0 0.0
    %3214 = vmatpush2.msra.mxu0 0.0
    %3215 = vmatprep.subr.mxu0 0.0
    %3216 = vmatpush2.msra.mxu0 0.0
    %3217 = vmatprep.subr.mxu0 0.0
    %3218 = vmatpush2.msra.mxu0 0.0
    %3219 = vmatprep.subr.mxu0 0.0
    %3220 = vmatpush2.msra.mxu0 0.0
    %3221 = vmatprep.mubr.f32.mxu0 0.0
    %3222 = vmatmul.mubr.f32.gmra.mxu0 %v2595
    %v3223 = vpop.f32.mrf.mxu0
    %v3224 = vadd.f32 %v3153, %v3223
    %v3225 = vpop.f32.mrf.mxu0
    %v3226 = vadd.f32 %v3155, %v3225
    %3227 = vdwg.mxu0
    %v3228 = vmax.f32 %v3224, 0.0
    %v3229 = vmax.f32 %v3226, 0.0
    %v3230 = vld [vmem:[#allocation11] sm:$0xf]
    %v3231 = vld [vmem:[#allocation11 + $0x4] sm:$0xf]
    %v3232 = vld [vmem:[#allocation11 + $0x8] sm:$0xf]
    %v3233 = vld [vmem:[#allocation11 + $0xc] sm:$0xf]
    %v3234 = vld [vmem:[#allocation11 + $0x10] sm:$0xf]
    %v3235 = vld [vmem:[#allocation11 + $0x14] sm:$0xf]
    %v3236 = vld [vmem:[#allocation11 + $0x18] sm:$0xf]
    %v3237 = vld [vmem:[#allocation11 + $0x1c] sm:$0xf]
    %v3238 = vld [vmem:[#allocation11 + $0x20] sm:$0xf]
    %v3239 = vld [vmem:[#allocation11 + $0x24] sm:$0xf]
    %v3240 = vld [vmem:[#allocation11 + $0x28] sm:$0xf]
    %v3241 = vld [vmem:[#allocation11 + $0x2c] sm:$0xf]
    %v3242 = vld [vmem:[#allocation11 + $0x30] sm:$0xf]
    %v3243 = vld [vmem:[#allocation11 + $0x34] sm:$0xf]
    %v3244 = vld [vmem:[#allocation11 + $0x38] sm:$0xf]
    %v3245 = vld [vmem:[#allocation11 + $0x3c] sm:$0xf]
    %v3246 = vld [vmem:[#allocation11 + $0x40] sm:$0xf]
    %v3247 = vld [vmem:[#allocation11 + $0x44] sm:$0xf]
    %v3248 = vld [vmem:[#allocation11 + $0x48] sm:$0xf]
    %v3249 = vld [vmem:[#allocation11 + $0x4c] sm:$0xf]
    %v3250 = vld [vmem:[#allocation11 + $0x50] sm:$0xf]
    %v3251 = vld [vmem:[#allocation11 + $0x54] sm:$0xf]
    %v3252 = vld [vmem:[#allocation11 + $0x58] sm:$0xf]
    %v3253 = vld [vmem:[#allocation11 + $0x5c] sm:$0xf]
    %v3254 = vld [vmem:[#allocation11 + $0x60] sm:$0xf]
    %v3255 = vld [vmem:[#allocation11 + $0x64] sm:$0xf]
    %v3256 = vld [vmem:[#allocation11 + $0x68] sm:$0xf]
    %v3257 = vld [vmem:[#allocation11 + $0x6c] sm:$0xf]
    %v3258 = vld [vmem:[#allocation11 + $0x70] sm:$0xf]
    %v3259 = vld [vmem:[#allocation11 + $0x74] sm:$0xf]
    %v3260 = vld [vmem:[#allocation11 + $0x78] sm:$0xf]
    %v3261 = vld [vmem:[#allocation11 + $0x7c] sm:$0xf]
    %v3262 = vunpack.c.l.bf16 %v3230
    %v3263 = vunpack.c.l.bf16 %v3231
    %v3264 = vunpack.c.l.bf16 %v3232
    %v3265 = vunpack.c.l.bf16 %v3233
    %v3266 = vunpack.c.l.bf16 %v3234
    %v3267 = vunpack.c.l.bf16 %v3235
    %v3268 = vunpack.c.l.bf16 %v3236
    %v3269 = vunpack.c.l.bf16 %v3237
    %v3270 = vunpack.c.l.bf16 %v3238
    %v3271 = vunpack.c.l.bf16 %v3239
    %v3272 = vunpack.c.l.bf16 %v3240
    %v3273 = vunpack.c.l.bf16 %v3241
    %v3274 = vunpack.c.l.bf16 %v3242
    %v3275 = vunpack.c.l.bf16 %v3243
    %v3276 = vunpack.c.l.bf16 %v3244
    %v3277 = vunpack.c.l.bf16 %v3245
    %v3278 = vunpack.c.l.bf16 %v3246
    %v3279 = vunpack.c.l.bf16 %v3247
    %v3280 = vunpack.c.l.bf16 %v3248
    %v3281 = vunpack.c.l.bf16 %v3249
    %v3282 = vunpack.c.l.bf16 %v3250
    %v3283 = vunpack.c.l.bf16 %v3251
    %v3284 = vunpack.c.l.bf16 %v3252
    %v3285 = vunpack.c.l.bf16 %v3253
    %v3286 = vunpack.c.l.bf16 %v3254
    %v3287 = vunpack.c.l.bf16 %v3255
    %v3288 = vunpack.c.l.bf16 %v3256
    %v3289 = vunpack.c.l.bf16 %v3257
    %v3290 = vunpack.c.l.bf16 %v3258
    %v3291 = vunpack.c.l.bf16 %v3259
    %v3292 = vunpack.c.l.bf16 %v3260
    %v3293 = vunpack.c.l.bf16 %v3261
    %v3294 = vld [vmem:[%s10] sm:$0x1]
    %v3296 = vlaneseq
    %v3297 = vshrl.u32 %v3296, 7
    %v3298 = vsub.s32 0, %v3297
    %v3299 = vrot.slane %v3294, %v3298
    %3301 = vmatprep.subr.mxu0 0.0
    %3302 = vmatpush1.msra.mxu0 %v3277
    %3303 = vmatprep.subr.mxu0 0.0
    %3304 = vmatpush1.msra.mxu0 %v3276
    %3305 = vmatprep.subr.mxu0 0.0
    %3306 = vmatpush1.msra.mxu0 %v3275
    %3307 = vmatprep.subr.mxu0 0.0
    %3308 = vmatpush1.msra.mxu0 %v3274
    %3309 = vmatprep.subr.mxu0 0.0
    %3310 = vmatpush1.msra.mxu0 %v3273
    %3311 = vmatprep.subr.mxu0 0.0
    %3312 = vmatpush1.msra.mxu0 %v3272
    %3313 = vmatprep.subr.mxu0 0.0
    %3314 = vmatpush1.msra.mxu0 %v3271
    %3315 = vmatprep.subr.mxu0 0.0
    %3316 = vmatpush1.msra.mxu0 %v3270
    %3317 = vmatprep.subr.mxu0 0.0
    %3318 = vmatpush1.msra.mxu0 %v3269
    %3319 = vmatprep.subr.mxu0 0.0
    %3320 = vmatpush1.msra.mxu0 %v3268
    %3321 = vmatprep.subr.mxu0 0.0
    %3322 = vmatpush1.msra.mxu0 %v3267
    %3323 = vmatprep.subr.mxu0 0.0
    %3324 = vmatpush1.msra.mxu0 %v3266
    %3325 = vmatprep.subr.mxu0 0.0
    %3326 = vmatpush1.msra.mxu0 %v3265
    %3327 = vmatprep.subr.mxu0 0.0
    %3328 = vmatpush1.msra.mxu0 %v3264
    %3329 = vmatprep.subr.mxu0 0.0
    %3330 = vmatpush1.msra.mxu0 %v3263
    %3331 = vmatprep.subr.mxu0 0.0
    %3332 = vmatpush1.msra.mxu0 %v3262
    %3333 = vmatprep.subr.mxu0 0.0
    %3334 = vmatpush2.msra.mxu0 %v3293
    %3335 = vmatprep.subr.mxu0 0.0
    %3336 = vmatpush2.msra.mxu0 %v3292
    %3337 = vmatprep.subr.mxu0 0.0
    %3338 = vmatpush2.msra.mxu0 %v3291
    %3339 = vmatprep.subr.mxu0 0.0
    %3340 = vmatpush2.msra.mxu0 %v3290
    %3341 = vmatprep.subr.mxu0 0.0
    %3342 = vmatpush2.msra.mxu0 %v3289
    %3343 = vmatprep.subr.mxu0 0.0
    %3344 = vmatpush2.msra.mxu0 %v3288
    %3345 = vmatprep.subr.mxu0 0.0
    %3346 = vmatpush2.msra.mxu0 %v3287
    %3347 = vmatprep.subr.mxu0 0.0
    %3348 = vmatpush2.msra.mxu0 %v3286
    %3349 = vmatprep.subr.mxu0 0.0
    %3350 = vmatpush2.msra.mxu0 %v3285
    %3351 = vmatprep.subr.mxu0 0.0
    %3352 = vmatpush2.msra.mxu0 %v3284
    %3353 = vmatprep.subr.mxu0 0.0
    %3354 = vmatpush2.msra.mxu0 %v3283
    %3355 = vmatprep.subr.mxu0 0.0
    %3356 = vmatpush2.msra.mxu0 %v3282
    %3357 = vmatprep.subr.mxu0 0.0
    %3358 = vmatpush2.msra.mxu0 %v3281
    %3359 = vmatprep.subr.mxu0 0.0
    %3360 = vmatpush2.msra.mxu0 %v3280
    %3361 = vmatprep.subr.mxu0 0.0
    %3362 = vmatpush2.msra.mxu0 %v3279
    %3363 = vmatprep.subr.mxu0 0.0
    %3364 = vmatpush2.msra.mxu0 %v3278
    %3365 = vmatprep.mubr.f32.mxu0 %v3229
    %3366 = vmatmul.mubr.f32.gmra.mxu0 %v3228
    %v3367 = vpop.f32.mrf.mxu0
    %v3368 = vadd.f32 %v3299, %v3367
    %v3369 = vpop.f32.mrf.mxu0
    %3370 = vdwg.mxu0
    %v3371 = vmax.f32 %v3368, 0.0
    %v3372 = vld [vmem:[%s11] sm:$0xf]
    %v3373 = vld [vmem:[%s11 + $0x4] sm:$0xf]
    %v3374 = vld [vmem:[%s11 + $0x8] sm:$0xf]
    %v3375 = vld [vmem:[%s11 + $0xc] sm:$0xf]
    %v3376 = vld [vmem:[%s11 + $0x10] sm:$0xf]
    %v3377 = vld [vmem:[%s11 + $0x14] sm:$0xf]
    %v3378 = vld [vmem:[%s11 + $0x18] sm:$0xf]
    %v3379 = vld [vmem:[%s11 + $0x1c] sm:$0xf]
    %v3380 = vld [vmem:[%s11 + $0x20] sm:$0xf]
    %v3381 = vld [vmem:[%s11 + $0x24] sm:$0xf]
    %v3382 = vld [vmem:[%s11 + $0x28] sm:$0xf]
    %v3383 = vld [vmem:[%s11 + $0x2c] sm:$0xf]
    %v3384 = vld [vmem:[%s11 + $0x30] sm:$0xf]
    %v3385 = vld [vmem:[%s11 + $0x34] sm:$0xf]
    %v3386 = vld [vmem:[%s11 + $0x38] sm:$0xf]
    %v3387 = vld [vmem:[%s11 + $0x3c] sm:$0xf]
    %v3388 = vunpack.c.l.bf16 %v3372
    %v3389 = vunpack.c.l.bf16 %v3373
    %v3390 = vunpack.c.l.bf16 %v3374
    %v3391 = vunpack.c.l.bf16 %v3375
    %v3392 = vunpack.c.l.bf16 %v3376
    %v3393 = vunpack.c.l.bf16 %v3377
    %v3394 = vunpack.c.l.bf16 %v3378
    %v3395 = vunpack.c.l.bf16 %v3379
    %v3396 = vunpack.c.l.bf16 %v3380
    %v3397 = vunpack.c.l.bf16 %v3381
    %v3398 = vunpack.c.l.bf16 %v3382
    %v3399 = vunpack.c.l.bf16 %v3383
    %v3400 = vunpack.c.l.bf16 %v3384
    %v3401 = vunpack.c.l.bf16 %v3385
    %v3402 = vunpack.c.l.bf16 %v3386
    %v3403 = vunpack.c.l.bf16 %v3387
    %v3404 = vld [vmem:[%s12] sm:$0x1]
    %v3406 = vlaneseq
    %v3407 = vshrl.u32 %v3406, 7
    %v3408 = vsub.s32 0, %v3407
    %v3409 = vrot.slane %v3404, %v3408
    %3411 = vmatprep.subr.mxu0 0.0
    %3412 = vmatpush1.msra.mxu0 %v3403
    %3413 = vmatprep.subr.mxu0 0.0
    %3414 = vmatpush1.msra.mxu0 %v3402
    %3415 = vmatprep.subr.mxu0 0.0
    %3416 = vmatpush1.msra.mxu0 %v3401
    %3417 = vmatprep.subr.mxu0 0.0
    %3418 = vmatpush1.msra.mxu0 %v3400
    %3419 = vmatprep.subr.mxu0 0.0
    %3420 = vmatpush1.msra.mxu0 %v3399
    %3421 = vmatprep.subr.mxu0 0.0
    %3422 = vmatpush1.msra.mxu0 %v3398
    %3423 = vmatprep.subr.mxu0 0.0
    %3424 = vmatpush1.msra.mxu0 %v3397
    %3425 = vmatprep.subr.mxu0 0.0
    %3426 = vmatpush1.msra.mxu0 %v3396
    %3427 = vmatprep.subr.mxu0 0.0
    %3428 = vmatpush1.msra.mxu0 %v3395
    %3429 = vmatprep.subr.mxu0 0.0
    %3430 = vmatpush1.msra.mxu0 %v3394
    %3431 = vmatprep.subr.mxu0 0.0
    %3432 = vmatpush1.msra.mxu0 %v3393
    %3433 = vmatprep.subr.mxu0 0.0
    %3434 = vmatpush1.msra.mxu0 %v3392
    %3435 = vmatprep.subr.mxu0 0.0
    %3436 = vmatpush1.msra.mxu0 %v3391
    %3437 = vmatprep.subr.mxu0 0.0
    %3438 = vmatpush1.msra.mxu0 %v3390
    %3439 = vmatprep.subr.mxu0 0.0
    %3440 = vmatpush1.msra.mxu0 %v3389
    %3441 = vmatprep.subr.mxu0 0.0
    %3442 = vmatpush1.msra.mxu0 %v3388
    %3443 = vmatprep.subr.mxu0 0.0
    %3444 = vmatpush2.msra.mxu0 0.0
    %3445 = vmatprep.subr.mxu0 0.0
    %3446 = vmatpush2.msra.mxu0 0.0
    %3447 = vmatprep.subr.mxu0 0.0
    %3448 = vmatpush2.msra.mxu0 0.0
    %3449 = vmatprep.subr.mxu0 0.0
    %3450 = vmatpush2.msra.mxu0 0.0
    %3451 = vmatprep.subr.mxu0 0.0
    %3452 = vmatpush2.msra.mxu0 0.0
    %3453 = vmatprep.subr.mxu0 0.0
    %3454 = vmatpush2.msra.mxu0 0.0
    %3455 = vmatprep.subr.mxu0 0.0
    %3456 = vmatpush2.msra.mxu0 0.0
    %3457 = vmatprep.subr.mxu0 0.0
    %3458 = vmatpush2.msra.mxu0 0.0
    %3459 = vmatprep.subr.mxu0 0.0
    %3460 = vmatpush2.msra.mxu0 0.0
    %3461 = vmatprep.subr.mxu0 0.0
    %3462 = vmatpush2.msra.mxu0 0.0
    %3463 = vmatprep.subr.mxu0 0.0
    %3464 = vmatpush2.msra.mxu0 0.0
    %3465 = vmatprep.subr.mxu0 0.0
    %3466 = vmatpush2.msra.mxu0 0.0
    %3467 = vmatprep.subr.mxu0 0.0
    %3468 = vmatpush2.msra.mxu0 0.0
    %3469 = vmatprep.subr.mxu0 0.0
    %3470 = vmatpush2.msra.mxu0 0.0
    %3471 = vmatprep.subr.mxu0 0.0
    %3472 = vmatpush2.msra.mxu0 0.0
    %3473 = vmatprep.subr.mxu0 0.0
    %3474 = vmatpush2.msra.mxu0 0.0
    %3475 = vmatprep.mubr.f32.mxu0 0.0
    %3476 = vmatmul.mubr.f32.gmra.mxu0 %v3371
    %v3477 = vpop.f32.mrf.mxu0
    %v3478 = vadd.f32 %v3409, %v3477
    %v3479 = vpop.f32.mrf.mxu0
    %3480 = vdwg.mxu0
    %3481 = vst [vmem:[%s18] sm:$0xff] %v3478
    %v3482 = vld [vmem:[#allocation12] sm:$0xff]
    %v3483 = vld [vmem:[#allocation12 + $0x8] sm:$0xff]
    %v3484 = vld [vmem:[#allocation12 + $0x10] sm:$0xff]
    %v3485 = vld [vmem:[#allocation12 + $0x18] sm:$0xff]
    %v3486 = vld [vmem:[#allocation12 + $0x20] sm:$0xff]
    %v3487 = vld [vmem:[#allocation12 + $0x28] sm:$0xff]
    %v3488 = vld [vmem:[#allocation12 + $0x30] sm:$0xff]
    %v3489 = vld [vmem:[#allocation12 + $0x38] sm:$0xff]
    %v3490 = vld [vmem:[#allocation12 + $0x40] sm:$0xff]
    %v3491 = vld [vmem:[#allocation12 + $0x48] sm:$0xff]
    %v3492 = vld [vmem:[#allocation12 + $0x50] sm:$0xff]
    %v3493 = vld [vmem:[#allocation12 + $0x58] sm:$0xff]
    %v3494 = vld [vmem:[#allocation12 + $0x60] sm:$0xff]
    %v3495 = vld [vmem:[#allocation12 + $0x68] sm:$0xff]
    %v3496 = vld [vmem:[#allocation12 + $0x70] sm:$0xff]
    %v3497 = vld [vmem:[#allocation12 + $0x78] sm:$0xff]
    %v3498 = vld [vmem:[#allocation12 + $0x80] sm:$0xff]
    %v3499 = vld [vmem:[#allocation12 + $0x88] sm:$0xff]
    %v3500 = vld [vmem:[#allocation12 + $0x90] sm:$0xff]
    %v3501 = vld [vmem:[#allocation12 + $0x98] sm:$0xff]
    %v3502 = vld [vmem:[#allocation12 + $0xa0] sm:$0xff]
    %v3503 = vld [vmem:[#allocation12 + $0xa8] sm:$0xff]
    %v3504 = vld [vmem:[#allocation12 + $0xb0] sm:$0xff]
    %v3505 = vld [vmem:[#allocation12 + $0xb8] sm:$0xff]
    %v3506 = vld [vmem:[#allocation12 + $0xc0] sm:$0xff]
    %v3507 = vld [vmem:[#allocation12 + $0xc8] sm:$0xff]
    %v3508 = vld [vmem:[#allocation12 + $0xd0] sm:$0xff]
    %v3509 = vld [vmem:[#allocation12 + $0xd8] sm:$0xff]
    %v3510 = vld [vmem:[#allocation12 + $0xe0] sm:$0xff]
    %v3511 = vld [vmem:[#allocation12 + $0xe8] sm:$0xff]
    %v3512 = vld [vmem:[#allocation12 + $0xf0] sm:$0xff]
    %v3513 = vld [vmem:[#allocation12 + $0xf8] sm:$0xff]
    %v3514 = vld [vmem:[#allocation12 + $0x100] sm:$0xff]
    %v3515 = vld [vmem:[#allocation12 + $0x108] sm:$0xff]
    %v3516 = vld [vmem:[#allocation12 + $0x110] sm:$0xff]
    %v3517 = vld [vmem:[#allocation12 + $0x118] sm:$0xff]
    %v3518 = vld [vmem:[#allocation12 + $0x120] sm:$0xff]
    %v3519 = vld [vmem:[#allocation12 + $0x128] sm:$0xff]
    %v3520 = vld [vmem:[#allocation12 + $0x130] sm:$0xff]
    %v3521 = vld [vmem:[#allocation12 + $0x138] sm:$0xff]
    %v3522 = vld [vmem:[#allocation12 + $0x140] sm:$0xff]
    %v3523 = vld [vmem:[#allocation12 + $0x148] sm:$0xff]
    %v3524 = vld [vmem:[#allocation12 + $0x150] sm:$0xff]
    %v3525 = vld [vmem:[#allocation12 + $0x158] sm:$0xff]
    %v3526 = vld [vmem:[#allocation12 + $0x160] sm:$0xff]
    %v3527 = vld [vmem:[#allocation12 + $0x168] sm:$0xff]
    %v3528 = vld [vmem:[#allocation12 + $0x170] sm:$0xff]
    %v3529 = vld [vmem:[#allocation12 + $0x178] sm:$0xff]
    %v3530 = vld [vmem:[#allocation12 + $0x180] sm:$0xff]
    %v3531 = vld [vmem:[#allocation12 + $0x188] sm:$0xff]
    %v3532 = vld [vmem:[#allocation12 + $0x190] sm:$0xff]
    %v3533 = vld [vmem:[#allocation12 + $0x198] sm:$0xff]
    %v3534 = vld [vmem:[#allocation12 + $0x1a0] sm:$0xff]
    %v3535 = vld [vmem:[#allocation12 + $0x1a8] sm:$0xff]
    %v3536 = vld [vmem:[#allocation12 + $0x1b0] sm:$0xff]
    %v3537 = vld [vmem:[#allocation12 + $0x1b8] sm:$0xff]
    %v3538 = vld [vmem:[#allocation12 + $0x1c0] sm:$0xff]
    %v3539 = vld [vmem:[#allocation12 + $0x1c8] sm:$0xff]
    %v3540 = vld [vmem:[#allocation12 + $0x1d0] sm:$0xff]
    %v3541 = vld [vmem:[#allocation12 + $0x1d8] sm:$0xff]
    %v3542 = vld [vmem:[#allocation12 + $0x1e0] sm:$0xff]
    %v3543 = vld [vmem:[#allocation12 + $0x1e8] sm:$0xff]
    %v3544 = vld [vmem:[#allocation12 + $0x1f0] sm:$0xff]
    %v3545 = vld [vmem:[#allocation12 + $0x1f8] sm:$0xff]
    %v3546 = vld [vmem:[#allocation12 + $0x200] sm:$0xff]
    %v3547 = vld [vmem:[#allocation12 + $0x208] sm:$0xff]
    %v3548 = vld [vmem:[#allocation12 + $0x210] sm:$0xff]
    %v3549 = vld [vmem:[#allocation12 + $0x218] sm:$0xff]
    %v3550 = vld [vmem:[#allocation12 + $0x220] sm:$0xff]
    %v3551 = vld [vmem:[#allocation12 + $0x228] sm:$0xff]
    %v3552 = vld [vmem:[#allocation12 + $0x230] sm:$0xff]
    %v3553 = vld [vmem:[#allocation12 + $0x238] sm:$0xff]
    %v3554 = vld [vmem:[#allocation12 + $0x240] sm:$0xff]
    %v3555 = vld [vmem:[#allocation12 + $0x248] sm:$0xff]
    %v3556 = vld [vmem:[#allocation12 + $0x250] sm:$0xff]
    %v3557 = vld [vmem:[#allocation12 + $0x258] sm:$0xff]
    %v3558 = vld [vmem:[#allocation12 + $0x260] sm:$0xff]
    %v3559 = vld [vmem:[#allocation12 + $0x268] sm:$0xff]
    %v3560 = vld [vmem:[#allocation12 + $0x270] sm:$0xff]
    %v3561 = vld [vmem:[#allocation12 + $0x278] sm:$0xff]
    %v3562 = vld [vmem:[#allocation12 + $0x280] sm:$0xff]
    %v3563 = vld [vmem:[#allocation12 + $0x288] sm:$0xff]
    %v3564 = vld [vmem:[#allocation12 + $0x290] sm:$0xff]
    %v3565 = vld [vmem:[#allocation12 + $0x298] sm:$0xff]
    %v3566 = vld [vmem:[#allocation12 + $0x2a0] sm:$0xff]
    %v3567 = vld [vmem:[#allocation12 + $0x2a8] sm:$0xff]
    %v3568 = vld [vmem:[#allocation12 + $0x2b0] sm:$0xff]
    %v3569 = vld [vmem:[#allocation12 + $0x2b8] sm:$0xff]
    %v3570 = vld [vmem:[#allocation12 + $0x2c0] sm:$0xff]
    %v3571 = vld [vmem:[#allocation12 + $0x2c8] sm:$0xff]
    %v3572 = vld [vmem:[#allocation12 + $0x2d0] sm:$0xff]
    %v3573 = vld [vmem:[#allocation12 + $0x2d8] sm:$0xff]
    %v3574 = vld [vmem:[#allocation12 + $0x2e0] sm:$0xff]
    %v3575 = vld [vmem:[#allocation12 + $0x2e8] sm:$0xff]
    %v3576 = vld [vmem:[#allocation12 + $0x2f0] sm:$0xff]
    %v3577 = vld [vmem:[#allocation12 + $0x2f8] sm:$0xff]
    %v3578 = vld [vmem:[#allocation12 + $0x300] sm:$0xff]
    %v3579 = vld [vmem:[#allocation12 + $0x308] sm:$0xff]
    %v3580 = vld [vmem:[#allocation12 + $0x310] sm:$0xff]
    %v3581 = vld [vmem:[#allocation12 + $0x318] sm:$0xff]
    %v3582 = vld [vmem:[#allocation12 + $0x320] sm:$0xff]
    %v3583 = vld [vmem:[#allocation12 + $0x328] sm:$0xff]
    %v3584 = vld [vmem:[#allocation12 + $0x330] sm:$0xff]
    %v3585 = vld [vmem:[#allocation12 + $0x338] sm:$0xff]
    %v3586 = vld [vmem:[#allocation12 + $0x340] sm:$0xff]
    %v3587 = vld [vmem:[#allocation12 + $0x348] sm:$0xff]
    %v3588 = vld [vmem:[#allocation12 + $0x350] sm:$0xff]
    %v3589 = vld [vmem:[#allocation12 + $0x358] sm:$0xff]
    %v3590 = vld [vmem:[#allocation12 + $0x360] sm:$0xff]
    %v3591 = vld [vmem:[#allocation12 + $0x368] sm:$0xff]
    %v3592 = vld [vmem:[#allocation12 + $0x370] sm:$0xff]
    %v3593 = vld [vmem:[#allocation12 + $0x378] sm:$0xff]
    %v3594 = vunpack.c.l.bf16 %v3482
    %v3595 = vunpack.c.h.bf16 %v3482
    %v3596 = vunpack.c.l.bf16 %v3483
    %v3597 = vunpack.c.h.bf16 %v3483
    %v3598 = vunpack.c.l.bf16 %v3484
    %v3599 = vunpack.c.h.bf16 %v3484
    %v3600 = vunpack.c.l.bf16 %v3485
    %v3601 = vunpack.c.h.bf16 %v3485
    %v3602 = vunpack.c.l.bf16 %v3486
    %v3603 = vunpack.c.h.bf16 %v3486
    %v3604 = vunpack.c.l.bf16 %v3487
    %v3605 = vunpack.c.h.bf16 %v3487
    %v3606 = vunpack.c.l.bf16 %v3488
    %v3607 = vunpack.c.h.bf16 %v3488
    %v3608 = vunpack.c.l.bf16 %v3489
    %v3609 = vunpack.c.h.bf16 %v3489
    %v3610 = vunpack.c.l.bf16 %v3490
    %v3611 = vunpack.c.h.bf16 %v3490
    %v3612 = vunpack.c.l.bf16 %v3491
    %v3613 = vunpack.c.h.bf16 %v3491
    %v3614 = vunpack.c.l.bf16 %v3492
    %v3615 = vunpack.c.h.bf16 %v3492
    %v3616 = vunpack.c.l.bf16 %v3493
    %v3617 = vunpack.c.h.bf16 %v3493
    %v3618 = vunpack.c.l.bf16 %v3494
    %v3619 = vunpack.c.h.bf16 %v3494
    %v3620 = vunpack.c.l.bf16 %v3495
    %v3621 = vunpack.c.h.bf16 %v3495
    %v3622 = vunpack.c.l.bf16 %v3496
    %v3623 = vunpack.c.h.bf16 %v3496
    %v3624 = vunpack.c.l.bf16 %v3497
    %v3625 = vunpack.c.h.bf16 %v3497
    %v3626 = vunpack.c.l.bf16 %v3498
    %v3627 = vunpack.c.h.bf16 %v3498
    %v3628 = vunpack.c.l.bf16 %v3499
    %v3629 = vunpack.c.h.bf16 %v3499
    %v3630 = vunpack.c.l.bf16 %v3500
    %v3631 = vunpack.c.h.bf16 %v3500
    %v3632 = vunpack.c.l.bf16 %v3501
    %v3633 = vunpack.c.h.bf16 %v3501
    %v3634 = vunpack.c.l.bf16 %v3502
    %v3635 = vunpack.c.h.bf16 %v3502
    %v3636 = vunpack.c.l.bf16 %v3503
    %v3637 = vunpack.c.h.bf16 %v3503
    %v3638 = vunpack.c.l.bf16 %v3504
    %v3639 = vunpack.c.h.bf16 %v3504
    %v3640 = vunpack.c.l.bf16 %v3505
    %v3641 = vunpack.c.h.bf16 %v3505
    %v3642 = vunpack.c.l.bf16 %v3506
    %v3643 = vunpack.c.h.bf16 %v3506
    %v3644 = vunpack.c.l.bf16 %v3507
    %v3645 = vunpack.c.h.bf16 %v3507
    %v3646 = vunpack.c.l.bf16 %v3508
    %v3647 = vunpack.c.h.bf16 %v3508
    %v3648 = vunpack.c.l.bf16 %v3509
    %v3649 = vunpack.c.h.bf16 %v3509
    %v3650 = vunpack.c.l.bf16 %v3510
    %v3651 = vunpack.c.h.bf16 %v3510
    %v3652 = vunpack.c.l.bf16 %v3511
    %v3653 = vunpack.c.h.bf16 %v3511
    %v3654 = vunpack.c.l.bf16 %v3512
    %v3655 = vunpack.c.h.bf16 %v3512
    %v3656 = vunpack.c.l.bf16 %v3513
    %v3657 = vunpack.c.h.bf16 %v3513
    %v3658 = vunpack.c.l.bf16 %v3514
    %v3659 = vunpack.c.h.bf16 %v3514
    %v3660 = vunpack.c.l.bf16 %v3515
    %v3661 = vunpack.c.h.bf16 %v3515
    %v3662 = vunpack.c.l.bf16 %v3516
    %v3663 = vunpack.c.h.bf16 %v3516
    %v3664 = vunpack.c.l.bf16 %v3517
    %v3665 = vunpack.c.h.bf16 %v3517
    %v3666 = vunpack.c.l.bf16 %v3518
    %v3667 = vunpack.c.h.bf16 %v3518
    %v3668 = vunpack.c.l.bf16 %v3519
    %v3669 = vunpack.c.h.bf16 %v3519
    %v3670 = vunpack.c.l.bf16 %v3520
    %v3671 = vunpack.c.h.bf16 %v3520
    %v3672 = vunpack.c.l.bf16 %v3521
    %v3673 = vunpack.c.h.bf16 %v3521
    %v3674 = vunpack.c.l.bf16 %v3522
    %v3675 = vunpack.c.h.bf16 %v3522
    %v3676 = vunpack.c.l.bf16 %v3523
    %v3677 = vunpack.c.h.bf16 %v3523
    %v3678 = vunpack.c.l.bf16 %v3524
    %v3679 = vunpack.c.h.bf16 %v3524
    %v3680 = vunpack.c.l.bf16 %v3525
    %v3681 = vunpack.c.h.bf16 %v3525
    %v3682 = vunpack.c.l.bf16 %v3526
    %v3683 = vunpack.c.h.bf16 %v3526
    %v3684 = vunpack.c.l.bf16 %v3527
    %v3685 = vunpack.c.h.bf16 %v3527
    %v3686 = vunpack.c.l.bf16 %v3528
    %v3687 = vunpack.c.h.bf16 %v3528
    %v3688 = vunpack.c.l.bf16 %v3529
    %v3689 = vunpack.c.h.bf16 %v3529
    %v3690 = vunpack.c.l.bf16 %v3530
    %v3691 = vunpack.c.h.bf16 %v3530
    %v3692 = vunpack.c.l.bf16 %v3531
    %v3693 = vunpack.c.h.bf16 %v3531
    %v3694 = vunpack.c.l.bf16 %v3532
    %v3695 = vunpack.c.h.bf16 %v3532
    %v3696 = vunpack.c.l.bf16 %v3533
    %v3697 = vunpack.c.h.bf16 %v3533
    %v3698 = vunpack.c.l.bf16 %v3534
    %v3699 = vunpack.c.h.bf16 %v3534
    %v3700 = vunpack.c.l.bf16 %v3535
    %v3701 = vunpack.c.h.bf16 %v3535
    %v3702 = vunpack.c.l.bf16 %v3536
    %v3703 = vunpack.c.h.bf16 %v3536
    %v3704 = vunpack.c.l.bf16 %v3537
    %v3705 = vunpack.c.h.bf16 %v3537
    %v3706 = vunpack.c.l.bf16 %v3538
    %v3707 = vunpack.c.h.bf16 %v3538
    %v3708 = vunpack.c.l.bf16 %v3539
    %v3709 = vunpack.c.h.bf16 %v3539
    %v3710 = vunpack.c.l.bf16 %v3540
    %v3711 = vunpack.c.h.bf16 %v3540
    %v3712 = vunpack.c.l.bf16 %v3541
    %v3713 = vunpack.c.h.bf16 %v3541
    %v3714 = vunpack.c.l.bf16 %v3542
    %v3715 = vunpack.c.h.bf16 %v3542
    %v3716 = vunpack.c.l.bf16 %v3543
    %v3717 = vunpack.c.h.bf16 %v3543
    %v3718 = vunpack.c.l.bf16 %v3544
    %v3719 = vunpack.c.h.bf16 %v3544
    %v3720 = vunpack.c.l.bf16 %v3545
    %v3721 = vunpack.c.h.bf16 %v3545
    %v3722 = vunpack.c.l.bf16 %v3546
    %v3723 = vunpack.c.h.bf16 %v3546
    %v3724 = vunpack.c.l.bf16 %v3547
    %v3725 = vunpack.c.h.bf16 %v3547
    %v3726 = vunpack.c.l.bf16 %v3548
    %v3727 = vunpack.c.h.bf16 %v3548
    %v3728 = vunpack.c.l.bf16 %v3549
    %v3729 = vunpack.c.h.bf16 %v3549
    %v3730 = vunpack.c.l.bf16 %v3550
    %v3731 = vunpack.c.h.bf16 %v3550
    %v3732 = vunpack.c.l.bf16 %v3551
    %v3733 = vunpack.c.h.bf16 %v3551
    %v3734 = vunpack.c.l.bf16 %v3552
    %v3735 = vunpack.c.h.bf16 %v3552
    %v3736 = vunpack.c.l.bf16 %v3553
    %v3737 = vunpack.c.h.bf16 %v3553
    %v3738 = vunpack.c.l.bf16 %v3554
    %v3739 = vunpack.c.h.bf16 %v3554
    %v3740 = vunpack.c.l.bf16 %v3555
    %v3741 = vunpack.c.h.bf16 %v3555
    %v3742 = vunpack.c.l.bf16 %v3556
    %v3743 = vunpack.c.h.bf16 %v3556
    %v3744 = vunpack.c.l.bf16 %v3557
    %v3745 = vunpack.c.h.bf16 %v3557
    %v3746 = vunpack.c.l.bf16 %v3558
    %v3747 = vunpack.c.h.bf16 %v3558
    %v3748 = vunpack.c.l.bf16 %v3559
    %v3749 = vunpack.c.h.bf16 %v3559
    %v3750 = vunpack.c.l.bf16 %v3560
    %v3751 = vunpack.c.h.bf16 %v3560
    %v3752 = vunpack.c.l.bf16 %v3561
    %v3753 = vunpack.c.h.bf16 %v3561
    %v3754 = vunpack.c.l.bf16 %v3562
    %v3755 = vunpack.c.h.bf16 %v3562
    %v3756 = vunpack.c.l.bf16 %v3563
    %v3757 = vunpack.c.h.bf16 %v3563
    %v3758 = vunpack.c.l.bf16 %v3564
    %v3759 = vunpack.c.h.bf16 %v3564
    %v3760 = vunpack.c.l.bf16 %v3565
    %v3761 = vunpack.c.h.bf16 %v3565
    %v3762 = vunpack.c.l.bf16 %v3566
    %v3763 = vunpack.c.h.bf16 %v3566
    %v3764 = vunpack.c.l.bf16 %v3567
    %v3765 = vunpack.c.h.bf16 %v3567
    %v3766 = vunpack.c.l.bf16 %v3568
    %v3767 = vunpack.c.h.bf16 %v3568
    %v3768 = vunpack.c.l.bf16 %v3569
    %v3769 = vunpack.c.h.bf16 %v3569
    %v3770 = vunpack.c.l.bf16 %v3570
    %v3771 = vunpack.c.h.bf16 %v3570
    %v3772 = vunpack.c.l.bf16 %v3571
    %v3773 = vunpack.c.h.bf16 %v3571
    %v3774 = vunpack.c.l.bf16 %v3572
    %v3775 = vunpack.c.h.bf16 %v3572
    %v3776 = vunpack.c.l.bf16 %v3573
    %v3777 = vunpack.c.h.bf16 %v3573
    %v3778 = vunpack.c.l.bf16 %v3574
    %v3779 = vunpack.c.h.bf16 %v3574
    %v3780 = vunpack.c.l.bf16 %v3575
    %v3781 = vunpack.c.h.bf16 %v3575
    %v3782 = vunpack.c.l.bf16 %v3576
    %v3783 = vunpack.c.h.bf16 %v3576
    %v3784 = vunpack.c.l.bf16 %v3577
    %v3785 = vunpack.c.h.bf16 %v3577
    %v3786 = vunpack.c.l.bf16 %v3578
    %v3787 = vunpack.c.h.bf16 %v3578
    %v3788 = vunpack.c.l.bf16 %v3579
    %v3789 = vunpack.c.h.bf16 %v3579
    %v3790 = vunpack.c.l.bf16 %v3580
    %v3791 = vunpack.c.h.bf16 %v3580
    %v3792 = vunpack.c.l.bf16 %v3581
    %v3793 = vunpack.c.h.bf16 %v3581
    %v3794 = vunpack.c.l.bf16 %v3582
    %v3795 = vunpack.c.h.bf16 %v3582
    %v3796 = vunpack.c.l.bf16 %v3583
    %v3797 = vunpack.c.h.bf16 %v3583
    %v3798 = vunpack.c.l.bf16 %v3584
    %v3799 = vunpack.c.h.bf16 %v3584
    %v3800 = vunpack.c.l.bf16 %v3585
    %v3801 = vunpack.c.h.bf16 %v3585
    %v3802 = vunpack.c.l.bf16 %v3586
    %v3803 = vunpack.c.h.bf16 %v3586
    %v3804 = vunpack.c.l.bf16 %v3587
    %v3805 = vunpack.c.h.bf16 %v3587
    %v3806 = vunpack.c.l.bf16 %v3588
    %v3807 = vunpack.c.h.bf16 %v3588
    %v3808 = vunpack.c.l.bf16 %v3589
    %v3809 = vunpack.c.h.bf16 %v3589
    %v3810 = vunpack.c.l.bf16 %v3590
    %v3811 = vunpack.c.h.bf16 %v3590
    %v3812 = vunpack.c.l.bf16 %v3591
    %v3813 = vunpack.c.h.bf16 %v3591
    %v3814 = vunpack.c.l.bf16 %v3592
    %v3815 = vunpack.c.h.bf16 %v3592
    %v3816 = vunpack.c.l.bf16 %v3593
    %v3817 = vunpack.c.h.bf16 %v3593
    %v3818 = vld [vmem:[%s14] sm:$0x3]
    %v3820 = vlaneseq
    %v3821 = vshrl.u32 %v3820, 7
    %v3822 = vsub.s32 0, %v3821
    %v3823 = vrot.slane %v3818, %v3822
    %v3824 = vlaneseq
    %v3825 = vshrl.u32 %v3824, 7
    %v3826 = vsub.s32 1, %v3825
    %v3827 = vrot.slane %v3818, %v3826
    %3830 = vmatprep.subr.mxu0 %v3625
    %3831 = vmatpush1.msra.mxu0 %v3624
    %3832 = vmatprep.subr.mxu0 %v3623
    %3833 = vmatpush1.msra.mxu0 %v3622
    %3834 = vmatprep.subr.mxu0 %v3621
    %3835 = vmatpush1.msra.mxu0 %v3620
    %3836 = vmatprep.subr.mxu0 %v3619
    %3837 = vmatpush1.msra.mxu0 %v3618
    %3838 = vmatprep.subr.mxu0 %v3617
    %3839 = vmatpush1.msra.mxu0 %v3616
    %3840 = vmatprep.subr.mxu0 %v3615
    %3841 = vmatpush1.msra.mxu0 %v3614
    %3842 = vmatprep.subr.mxu0 %v3613
    %3843 = vmatpush1.msra.mxu0 %v3612
    %3844 = vmatprep.subr.mxu0 %v3611
    %3845 = vmatpush1.msra.mxu0 %v3610
    %3846 = vmatprep.subr.mxu0 %v3609
    %3847 = vmatpush1.msra.mxu0 %v3608
    %3848 = vmatprep.subr.mxu0 %v3607
    %3849 = vmatpush1.msra.mxu0 %v3606
    %3850 = vmatprep.subr.mxu0 %v3605
    %3851 = vmatpush1.msra.mxu0 %v3604
    %3852 = vmatprep.subr.mxu0 %v3603
    %3853 = vmatpush1.msra.mxu0 %v3602
    %3854 = vmatprep.subr.mxu0 %v3601
    %3855 = vmatpush1.msra.mxu0 %v3600
    %3856 = vmatprep.subr.mxu0 %v3599
    %3857 = vmatpush1.msra.mxu0 %v3598
    %3858 = vmatprep.subr.mxu0 %v3597
    %3859 = vmatpush1.msra.mxu0 %v3596
    %3860 = vmatprep.subr.mxu0 %v3595
    %3861 = vmatpush1.msra.mxu0 %v3594
    %3862 = vmatprep.subr.mxu0 %v3657
    %3863 = vmatpush2.msra.mxu0 %v3656
    %3864 = vmatprep.subr.mxu0 %v3655
    %3865 = vmatpush2.msra.mxu0 %v3654
    %3866 = vmatprep.subr.mxu0 %v3653
    %3867 = vmatpush2.msra.mxu0 %v3652
    %3868 = vmatprep.subr.mxu0 %v3651
    %3869 = vmatpush2.msra.mxu0 %v3650
    %3870 = vmatprep.subr.mxu0 %v3649
    %3871 = vmatpush2.msra.mxu0 %v3648
    %3872 = vmatprep.subr.mxu0 %v3647
    %3873 = vmatpush2.msra.mxu0 %v3646
    %3874 = vmatprep.subr.mxu0 %v3645
    %3875 = vmatpush2.msra.mxu0 %v3644
    %3876 = vmatprep.subr.mxu0 %v3643
    %3877 = vmatpush2.msra.mxu0 %v3642
    %3878 = vmatprep.subr.mxu0 %v3641
    %3879 = vmatpush2.msra.mxu0 %v3640
    %3880 = vmatprep.subr.mxu0 %v3639
    %3881 = vmatpush2.msra.mxu0 %v3638
    %3882 = vmatprep.subr.mxu0 %v3637
    %3883 = vmatpush2.msra.mxu0 %v3636
    %3884 = vmatprep.subr.mxu0 %v3635
    %3885 = vmatpush2.msra.mxu0 %v3634
    %3886 = vmatprep.subr.mxu0 %v3633
    %3887 = vmatpush2.msra.mxu0 %v3632
    %3888 = vmatprep.subr.mxu0 %v3631
    %3889 = vmatpush2.msra.mxu0 %v3630
    %3890 = vmatprep.subr.mxu0 %v3629
    %3891 = vmatpush2.msra.mxu0 %v3628
    %3892 = vmatprep.subr.mxu0 %v3627
    %3893 = vmatpush2.msra.mxu0 %v3626
    %3894 = vmatprep.mubr.f32.mxu0 %v2590
    %3895 = vmatmul.mubr.f32.gmra.mxu0 %v2589
    %v3896 = vpop.f32.mrf.mxu0
    %v3897 = vadd.f32 %v3823, %v3896
    %v3898 = vpop.f32.mrf.mxu0
    %v3899 = vadd.f32 %v3827, %v3898
    %3900 = vdwg.mxu0
    %3901 = vmatprep.subr.mxu0 %v3689
    %3902 = vmatpush1.msra.mxu0 %v3688
    %3903 = vmatprep.subr.mxu0 %v3687
    %3904 = vmatpush1.msra.mxu0 %v3686
    %3905 = vmatprep.subr.mxu0 %v3685
    %3906 = vmatpush1.msra.mxu0 %v3684
    %3907 = vmatprep.subr.mxu0 %v3683
    %3908 = vmatpush1.msra.mxu0 %v3682
    %3909 = vmatprep.subr.mxu0 %v3681
    %3910 = vmatpush1.msra.mxu0 %v3680
    %3911 = vmatprep.subr.mxu0 %v3679
    %3912 = vmatpush1.msra.mxu0 %v3678
    %3913 = vmatprep.subr.mxu0 %v3677
    %3914 = vmatpush1.msra.mxu0 %v3676
    %3915 = vmatprep.subr.mxu0 %v3675
    %3916 = vmatpush1.msra.mxu0 %v3674
    %3917 = vmatprep.subr.mxu0 %v3673
    %3918 = vmatpush1.msra.mxu0 %v3672
    %3919 = vmatprep.subr.mxu0 %v3671
    %3920 = vmatpush1.msra.mxu0 %v3670
    %3921 = vmatprep.subr.mxu0 %v3669
    %3922 = vmatpush1.msra.mxu0 %v3668
    %3923 = vmatprep.subr.mxu0 %v3667
    %3924 = vmatpush1.msra.mxu0 %v3666
    %3925 = vmatprep.subr.mxu0 %v3665
    %3926 = vmatpush1.msra.mxu0 %v3664
    %3927 = vmatprep.subr.mxu0 %v3663
    %3928 = vmatpush1.msra.mxu0 %v3662
    %3929 = vmatprep.subr.mxu0 %v3661
    %3930 = vmatpush1.msra.mxu0 %v3660
    %3931 = vmatprep.subr.mxu0 %v3659
    %3932 = vmatpush1.msra.mxu0 %v3658
    %3933 = vmatprep.subr.mxu0 %v3721
    %3934 = vmatpush2.msra.mxu0 %v3720
    %3935 = vmatprep.subr.mxu0 %v3719
    %3936 = vmatpush2.msra.mxu0 %v3718
    %3937 = vmatprep.subr.mxu0 %v3717
    %3938 = vmatpush2.msra.mxu0 %v3716
    %3939 = vmatprep.subr.mxu0 %v3715
    %3940 = vmatpush2.msra.mxu0 %v3714
    %3941 = vmatprep.subr.mxu0 %v3713
    %3942 = vmatpush2.msra.mxu0 %v3712
    %3943 = vmatprep.subr.mxu0 %v3711
    %3944 = vmatpush2.msra.mxu0 %v3710
    %3945 = vmatprep.subr.mxu0 %v3709
    %3946 = vmatpush2.msra.mxu0 %v3708
    %3947 = vmatprep.subr.mxu0 %v3707
    %3948 = vmatpush2.msra.mxu0 %v3706
    %3949 = vmatprep.subr.mxu0 %v3705
    %3950 = vmatpush2.msra.mxu0 %v3704
    %3951 = vmatprep.subr.mxu0 %v3703
    %3952 = vmatpush2.msra.mxu0 %v3702
    %3953 = vmatprep.subr.mxu0 %v3701
    %3954 = vmatpush2.msra.mxu0 %v3700
    %3955 = vmatprep.subr.mxu0 %v3699
    %3956 = vmatpush2.msra.mxu0 %v3698
    %3957 = vmatprep.subr.mxu0 %v3697
    %3958 = vmatpush2.msra.mxu0 %v3696
    %3959 = vmatprep.subr.mxu0 %v3695
    %3960 = vmatpush2.msra.mxu0 %v3694
    %3961 = vmatprep.subr.mxu0 %v3693
    %3962 = vmatpush2.msra.mxu0 %v3692
    %3963 = vmatprep.subr.mxu0 %v3691
    %3964 = vmatpush2.msra.mxu0 %v3690
    %3965 = vmatprep.mubr.f32.mxu0 %v2592
    %3966 = vmatmul.mubr.f32.gmra.mxu0 %v2591
    %v3967 = vpop.f32.mrf.mxu0
    %v3968 = vadd.f32 %v3897, %v3967
    %v3969 = vpop.f32.mrf.mxu0
    %v3970 = vadd.f32 %v3899, %v3969
    %3971 = vdwg.mxu0
    %3972 = vmatprep.subr.mxu0 %v3753
    %3973 = vmatpush1.msra.mxu0 %v3752
    %3974 = vmatprep.subr.mxu0 %v3751
    %3975 = vmatpush1.msra.mxu0 %v3750
    %3976 = vmatprep.subr.mxu0 %v3749
    %3977 = vmatpush1.msra.mxu0 %v3748
    %3978 = vmatprep.subr.mxu0 %v3747
    %3979 = vmatpush1.msra.mxu0 %v3746
    %3980 = vmatprep.subr.mxu0 %v3745
    %3981 = vmatpush1.msra.mxu0 %v3744
    %3982 = vmatprep.subr.mxu0 %v3743
    %3983 = vmatpush1.msra.mxu0 %v3742
    %3984 = vmatprep.subr.mxu0 %v3741
    %3985 = vmatpush1.msra.mxu0 %v3740
    %3986 = vmatprep.subr.mxu0 %v3739
    %3987 = vmatpush1.msra.mxu0 %v3738
    %3988 = vmatprep.subr.mxu0 %v3737
    %3989 = vmatpush1.msra.mxu0 %v3736
    %3990 = vmatprep.subr.mxu0 %v3735
    %3991 = vmatpush1.msra.mxu0 %v3734
    %3992 = vmatprep.subr.mxu0 %v3733
    %3993 = vmatpush1.msra.mxu0 %v3732
    %3994 = vmatprep.subr.mxu0 %v3731
    %3995 = vmatpush1.msra.mxu0 %v3730
    %3996 = vmatprep.subr.mxu0 %v3729
    %3997 = vmatpush1.msra.mxu0 %v3728
    %3998 = vmatprep.subr.mxu0 %v3727
    %3999 = vmatpush1.msra.mxu0 %v3726
    %4000 = vmatprep.subr.mxu0 %v3725
    %4001 = vmatpush1.msra.mxu0 %v3724
    %4002 = vmatprep.subr.mxu0 %v3723
    %4003 = vmatpush1.msra.mxu0 %v3722
    %4004 = vmatprep.subr.mxu0 %v3785
    %4005 = vmatpush2.msra.mxu0 %v3784
    %4006 = vmatprep.subr.mxu0 %v3783
    %4007 = vmatpush2.msra.mxu0 %v3782
    %4008 = vmatprep.subr.mxu0 %v3781
    %4009 = vmatpush2.msra.mxu0 %v3780
    %4010 = vmatprep.subr.mxu0 %v3779
    %4011 = vmatpush2.msra.mxu0 %v3778
    %4012 = vmatprep.subr.mxu0 %v3777
    %4013 = vmatpush2.msra.mxu0 %v3776
    %4014 = vmatprep.subr.mxu0 %v3775
    %4015 = vmatpush2.msra.mxu0 %v3774
    %4016 = vmatprep.subr.mxu0 %v3773
    %4017 = vmatpush2.msra.mxu0 %v3772
    %4018 = vmatprep.subr.mxu0 %v3771
    %4019 = vmatpush2.msra.mxu0 %v3770
    %4020 = vmatprep.subr.mxu0 %v3769
    %4021 = vmatpush2.msra.mxu0 %v3768
    %4022 = vmatprep.subr.mxu0 %v3767
    %4023 = vmatpush2.msra.mxu0 %v3766
    %4024 = vmatprep.subr.mxu0 %v3765
    %4025 = vmatpush2.msra.mxu0 %v3764
    %4026 = vmatprep.subr.mxu0 %v3763
    %4027 = vmatpush2.msra.mxu0 %v3762
    %4028 = vmatprep.subr.mxu0 %v3761
    %4029 = vmatpush2.msra.mxu0 %v3760
    %4030 = vmatprep.subr.mxu0 %v3759
    %4031 = vmatpush2.msra.mxu0 %v3758
    %4032 = vmatprep.subr.mxu0 %v3757
    %4033 = vmatpush2.msra.mxu0 %v3756
    %4034 = vmatprep.subr.mxu0 %v3755
    %4035 = vmatpush2.msra.mxu0 %v3754
    %4036 = vmatprep.mubr.f32.mxu0 %v2594
    %4037 = vmatmul.mubr.f32.gmra.mxu0 %v2593
    %v4038 = vpop.f32.mrf.mxu0
    %v4039 = vadd.f32 %v3968, %v4038
    %v4040 = vpop.f32.mrf.mxu0
    %v4041 = vadd.f32 %v3970, %v4040
    %4042 = vdwg.mxu0
    %4043 = vmatprep.subr.mxu0 %v3817
    %4044 = vmatpush1.msra.mxu0 %v3816
    %4045 = vmatprep.subr.mxu0 %v3815
    %4046 = vmatpush1.msra.mxu0 %v3814
    %4047 = vmatprep.subr.mxu0 %v3813
    %4048 = vmatpush1.msra.mxu0 %v3812
    %4049 = vmatprep.subr.mxu0 %v3811
    %4050 = vmatpush1.msra.mxu0 %v3810
    %4051 = vmatprep.subr.mxu0 %v3809
    %4052 = vmatpush1.msra.mxu0 %v3808
    %4053 = vmatprep.subr.mxu0 %v3807
    %4054 = vmatpush1.msra.mxu0 %v3806
    %4055 = vmatprep.subr.mxu0 %v3805
    %4056 = vmatpush1.msra.mxu0 %v3804
    %4057 = vmatprep.subr.mxu0 %v3803
    %4058 = vmatpush1.msra.mxu0 %v3802
    %4059 = vmatprep.subr.mxu0 %v3801
    %4060 = vmatpush1.msra.mxu0 %v3800
    %4061 = vmatprep.subr.mxu0 %v3799
    %4062 = vmatpush1.msra.mxu0 %v3798
    %4063 = vmatprep.subr.mxu0 %v3797
    %4064 = vmatpush1.msra.mxu0 %v3796
    %4065 = vmatprep.subr.mxu0 %v3795
    %4066 = vmatpush1.msra.mxu0 %v3794
    %4067 = vmatprep.subr.mxu0 %v3793
    %4068 = vmatpush1.msra.mxu0 %v3792
    %4069 = vmatprep.subr.mxu0 %v3791
    %4070 = vmatpush1.msra.mxu0 %v3790
    %4071 = vmatprep.subr.mxu0 %v3789
    %4072 = vmatpush1.msra.mxu0 %v3788
    %4073 = vmatprep.subr.mxu0 %v3787
    %4074 = vmatpush1.msra.mxu0 %v3786
    %4075 = vmatprep.subr.mxu0 0.0
    %4076 = vmatpush2.msra.mxu0 0.0
    %4077 = vmatprep.subr.mxu0 0.0
    %4078 = vmatpush2.msra.mxu0 0.0
    %4079 = vmatprep.subr.mxu0 0.0
    %4080 = vmatpush2.msra.mxu0 0.0
    %4081 = vmatprep.subr.mxu0 0.0
    %4082 = vmatpush2.msra.mxu0 0.0
    %4083 = vmatprep.subr.mxu0 0.0
    %4084 = vmatpush2.msra.mxu0 0.0
    %4085 = vmatprep.subr.mxu0 0.0
    %4086 = vmatpush2.msra.mxu0 0.0
    %4087 = vmatprep.subr.mxu0 0.0
    %4088 = vmatpush2.msra.mxu0 0.0
    %4089 = vmatprep.subr.mxu0 0.0
    %4090 = vmatpush2.msra.mxu0 0.0
    %4091 = vmatprep.subr.mxu0 0.0
    %4092 = vmatpush2.msra.mxu0 0.0
    %4093 = vmatprep.subr.mxu0 0.0
    %4094 = vmatpush2.msra.mxu0 0.0
    %4095 = vmatprep.subr.mxu0 0.0
    %4096 = vmatpush2.msra.mxu0 0.0
    %4097 = vmatprep.subr.mxu0 0.0
    %4098 = vmatpush2.msra.mxu0 0.0
    %4099 = vmatprep.subr.mxu0 0.0
    %4100 = vmatpush2.msra.mxu0 0.0
    %4101 = vmatprep.subr.mxu0 0.0
    %4102 = vmatpush2.msra.mxu0 0.0
    %4103 = vmatprep.subr.mxu0 0.0
    %4104 = vmatpush2.msra.mxu0 0.0
    %4105 = vmatprep.subr.mxu0 0.0
    %4106 = vmatpush2.msra.mxu0 0.0
    %4107 = vmatprep.mubr.f32.mxu0 0.0
    %4108 = vmatmul.mubr.f32.gmra.mxu0 %v2595
    %v4109 = vpop.f32.mrf.mxu0
    %v4110 = vadd.f32 %v4039, %v4109
    %v4111 = vpop.f32.mrf.mxu0
    %v4112 = vadd.f32 %v4041, %v4111
    %4113 = vdwg.mxu0
    %v4114 = vmax.f32 %v4110, 0.0
    %v4115 = vmax.f32 %v4112, 0.0
    %v4116 = vld [vmem:[#allocation14] sm:$0xf]
    %v4117 = vld [vmem:[#allocation14 + $0x4] sm:$0xf]
    %v4118 = vld [vmem:[#allocation14 + $0x8] sm:$0xf]
    %v4119 = vld [vmem:[#allocation14 + $0xc] sm:$0xf]
    %v4120 = vld [vmem:[#allocation14 + $0x10] sm:$0xf]
    %v4121 = vld [vmem:[#allocation14 + $0x14] sm:$0xf]
    %v4122 = vld [vmem:[#allocation14 + $0x18] sm:$0xf]
    %v4123 = vld [vmem:[#allocation14 + $0x1c] sm:$0xf]
    %v4124 = vld [vmem:[#allocation14 + $0x20] sm:$0xf]
    %v4125 = vld [vmem:[#allocation14 + $0x24] sm:$0xf]
    %v4126 = vld [vmem:[#allocation14 + $0x28] sm:$0xf]
    %v4127 = vld [vmem:[#allocation14 + $0x2c] sm:$0xf]
    %v4128 = vld [vmem:[#allocation14 + $0x30] sm:$0xf]
    %v4129 = vld [vmem:[#allocation14 + $0x34] sm:$0xf]
    %v4130 = vld [vmem:[#allocation14 + $0x38] sm:$0xf]
    %v4131 = vld [vmem:[#allocation14 + $0x3c] sm:$0xf]
    %v4132 = vld [vmem:[#allocation14 + $0x40] sm:$0xf]
    %v4133 = vld [vmem:[#allocation14 + $0x44] sm:$0xf]
    %v4134 = vld [vmem:[#allocation14 + $0x48] sm:$0xf]
    %v4135 = vld [vmem:[#allocation14 + $0x4c] sm:$0xf]
    %v4136 = vld [vmem:[#allocation14 + $0x50] sm:$0xf]
    %v4137 = vld [vmem:[#allocation14 + $0x54] sm:$0xf]
    %v4138 = vld [vmem:[#allocation14 + $0x58] sm:$0xf]
    %v4139 = vld [vmem:[#allocation14 + $0x5c] sm:$0xf]
    %v4140 = vld [vmem:[#allocation14 + $0x60] sm:$0xf]
    %v4141 = vld [vmem:[#allocation14 + $0x64] sm:$0xf]
    %v4142 = vld [vmem:[#allocation14 + $0x68] sm:$0xf]
    %v4143 = vld [vmem:[#allocation14 + $0x6c] sm:$0xf]
    %v4144 = vld [vmem:[#allocation14 + $0x70] sm:$0xf]
    %v4145 = vld [vmem:[#allocation14 + $0x74] sm:$0xf]
    %v4146 = vld [vmem:[#allocation14 + $0x78] sm:$0xf]
    %v4147 = vld [vmem:[#allocation14 + $0x7c] sm:$0xf]
    %v4148 = vunpack.c.l.bf16 %v4116
    %v4149 = vunpack.c.l.bf16 %v4117
    %v4150 = vunpack.c.l.bf16 %v4118
    %v4151 = vunpack.c.l.bf16 %v4119
    %v4152 = vunpack.c.l.bf16 %v4120
    %v4153 = vunpack.c.l.bf16 %v4121
    %v4154 = vunpack.c.l.bf16 %v4122
    %v4155 = vunpack.c.l.bf16 %v4123
    %v4156 = vunpack.c.l.bf16 %v4124
    %v4157 = vunpack.c.l.bf16 %v4125
    %v4158 = vunpack.c.l.bf16 %v4126
    %v4159 = vunpack.c.l.bf16 %v4127
    %v4160 = vunpack.c.l.bf16 %v4128
    %v4161 = vunpack.c.l.bf16 %v4129
    %v4162 = vunpack.c.l.bf16 %v4130
    %v4163 = vunpack.c.l.bf16 %v4131
    %v4164 = vunpack.c.l.bf16 %v4132
    %v4165 = vunpack.c.l.bf16 %v4133
    %v4166 = vunpack.c.l.bf16 %v4134
    %v4167 = vunpack.c.l.bf16 %v4135
    %v4168 = vunpack.c.l.bf16 %v4136
    %v4169 = vunpack.c.l.bf16 %v4137
    %v4170 = vunpack.c.l.bf16 %v4138
    %v4171 = vunpack.c.l.bf16 %v4139
    %v4172 = vunpack.c.l.bf16 %v4140
    %v4173 = vunpack.c.l.bf16 %v4141
    %v4174 = vunpack.c.l.bf16 %v4142
    %v4175 = vunpack.c.l.bf16 %v4143
    %v4176 = vunpack.c.l.bf16 %v4144
    %v4177 = vunpack.c.l.bf16 %v4145
    %v4178 = vunpack.c.l.bf16 %v4146
    %v4179 = vunpack.c.l.bf16 %v4147
    %v4180 = vld [vmem:[%s16] sm:$0x1]
    %v4182 = vlaneseq
    %v4183 = vshrl.u32 %v4182, 7
    %v4184 = vsub.s32 0, %v4183
    %v4185 = vrot.slane %v4180, %v4184
    %4187 = vmatprep.subr.mxu0 0.0
    %4188 = vmatpush1.msra.mxu0 %v4163
    %4189 = vmatprep.subr.mxu0 0.0
    %4190 = vmatpush1.msra.mxu0 %v4162
    %4191 = vmatprep.subr.mxu0 0.0
    %4192 = vmatpush1.msra.mxu0 %v4161
    %4193 = vmatprep.subr.mxu0 0.0
    %4194 = vmatpush1.msra.mxu0 %v4160
    %4195 = vmatprep.subr.mxu0 0.0
    %4196 = vmatpush1.msra.mxu0 %v4159
    %4197 = vmatprep.subr.mxu0 0.0
    %4198 = vmatpush1.msra.mxu0 %v4158
    %4199 = vmatprep.subr.mxu0 0.0
    %4200 = vmatpush1.msra.mxu0 %v4157
    %4201 = vmatprep.subr.mxu0 0.0
    %4202 = vmatpush1.msra.mxu0 %v4156
    %4203 = vmatprep.subr.mxu0 0.0
    %4204 = vmatpush1.msra.mxu0 %v4155
    %4205 = vmatprep.subr.mxu0 0.0
    %4206 = vmatpush1.msra.mxu0 %v4154
    %4207 = vmatprep.subr.mxu0 0.0
    %4208 = vmatpush1.msra.mxu0 %v4153
    %4209 = vmatprep.subr.mxu0 0.0
    %4210 = vmatpush1.msra.mxu0 %v4152
    %4211 = vmatprep.subr.mxu0 0.0
    %4212 = vmatpush1.msra.mxu0 %v4151
    %4213 = vmatprep.subr.mxu0 0.0
    %4214 = vmatpush1.msra.mxu0 %v4150
    %4215 = vmatprep.subr.mxu0 0.0
    %4216 = vmatpush1.msra.mxu0 %v4149
    %4217 = vmatprep.subr.mxu0 0.0
    %4218 = vmatpush1.msra.mxu0 %v4148
    %4219 = vmatprep.subr.mxu0 0.0
    %4220 = vmatpush2.msra.mxu0 %v4179
    %4221 = vmatprep.subr.mxu0 0.0
    %4222 = vmatpush2.msra.mxu0 %v4178
    %4223 = vmatprep.subr.mxu0 0.0
    %4224 = vmatpush2.msra.mxu0 %v4177
    %4225 = vmatprep.subr.mxu0 0.0
    %4226 = vmatpush2.msra.mxu0 %v4176
    %4227 = vmatprep.subr.mxu0 0.0
    %4228 = vmatpush2.msra.mxu0 %v4175
    %4229 = vmatprep.subr.mxu0 0.0
    %4230 = vmatpush2.msra.mxu0 %v4174
    %4231 = vmatprep.subr.mxu0 0.0
    %4232 = vmatpush2.msra.mxu0 %v4173
    %4233 = vmatprep.subr.mxu0 0.0
    %4234 = vmatpush2.msra.mxu0 %v4172
    %4235 = vmatprep.subr.mxu0 0.0
    %4236 = vmatpush2.msra.mxu0 %v4171
    %4237 = vmatprep.subr.mxu0 0.0
    %4238 = vmatpush2.msra.mxu0 %v4170
    %4239 = vmatprep.subr.mxu0 0.0
    %4240 = vmatpush2.msra.mxu0 %v4169
    %4241 = vmatprep.subr.mxu0 0.0
    %4242 = vmatpush2.msra.mxu0 %v4168
    %4243 = vmatprep.subr.mxu0 0.0
    %4244 = vmatpush2.msra.mxu0 %v4167
    %4245 = vmatprep.subr.mxu0 0.0
    %4246 = vmatpush2.msra.mxu0 %v4166
    %4247 = vmatprep.subr.mxu0 0.0
    %4248 = vmatpush2.msra.mxu0 %v4165
    %4249 = vmatprep.subr.mxu0 0.0
    %4250 = vmatpush2.msra.mxu0 %v4164
    %4251 = vmatprep.mubr.f32.mxu0 %v4115
    %4252 = vmatmul.mubr.f32.gmra.mxu0 %v4114
    %v4253 = vpop.f32.mrf.mxu0
    %v4254 = vadd.f32 %v4185, %v4253
    %v4255 = vpop.f32.mrf.mxu0
    %4256 = vdwg.mxu0
    %4257 = vst [vmem:[%s19] sm:$0xff] %v4254
    // Predicated region
    $region98: #{forward.1} parent=1 // pred_check
      _
    $region99: #{forward.1} parent=1 // pred_check_branch
      %4259 = sbr.rel (0) target = $region101
    $region100: #{forward.1} parent=1 // pred_region
      _
    $region101: #{forward.1} parent=1 // pred_fallthru
      _
    // Predicated region
    $region102: #{forward.1} parent=1 // pred_check
      _
    $region103: #{forward.1} parent=1 // pred_check_branch
      %4261 = sbr.rel (0) target = $region105
    $region104: #{forward.1} parent=1 // pred_region
      _
    $region105: #{forward.1} parent=1 // pred_fallthru
      _
    // Predicated region
    $region106: #{forward.1} parent=1 // pred_check
      _
    $region107: #{forward.1} parent=1 // pred_check_branch
      %4263 = sbr.rel (0) target = $region109
    $region108: #{forward.1} parent=1 // pred_region
      _
    $region109: #{forward.1} parent=1 // pred_fallthru
      _
    // Predicated region
    $region110: #{forward.1} parent=1 // pred_check
      _
    $region111: #{forward.1} parent=1 // pred_check_branch
      %4265 = sbr.rel (0) target = $region113
    $region112: #{forward.1} parent=1 // pred_region
      _
    $region113: #{forward.1} parent=1 // pred_fallthru
      _
    // Predicated region
    $region114: #{forward.1} parent=1 // pred_check
      _
    $region115: #{forward.1} parent=1 // pred_check_branch
      %4267 = sbr.rel (0) target = $region117
    $region116: #{forward.1} parent=1 // pred_region
      _
    $region117: #{forward.1} parent=1 // pred_fallthru
      _
    // Predicated region
    $region118: #{forward.1} parent=1 // pred_check
      _
    $region119: #{forward.1} parent=1 // pred_check_branch
      %4269 = sbr.rel (0) target = $region121
    $region120: #{forward.1} parent=1 // pred_region
      _
    $region121: #{forward.1} parent=1 // pred_fallthru
      _
    %4270 = vsyncpa [#allocation5], 1
    %4271 = vsyncpa [#allocation7], 1
    %4272 = vsyncpa [#allocation10], 1
    %4273 = vsyncpa [#allocation13], 1

</llo_original>
